<compile_context>
chip_gen: v5e
topology: v5e:2x2
jax: 0.10.0
libtpu: 0.0.40
codegen_flags: <defaults>
</compile_context>

<pallas_src>
import jax
import jax.numpy as jnp
import numpy as np
from jax.experimental import pallas as pl
from jax.experimental.pallas import tpu as pltpu

EPS = 1e-6        # nn.LayerNorm(d_model, eps=1e-06)
HEAD_PAD = 128    # lane-dense padded width of the merged (rot | trans) head output


# ---------------------------------------------------------------------------
# Fused kernel: LayerNorm -> literal-reshape pool -> bbox emb -> fc_out/ReLU -> head
# ---------------------------------------------------------------------------
def fused_forward_kernel(x_ref, bbox_ref, ln_ref, pool_ref, bw_ref,
                         fwx_ref, fwb_ref, bias_ref, wh_ref, out_ref):
    f32 = jnp.float32
    bf16 = jnp.bfloat16
    D = fwx_ref.shape[0]          # d_model
    HID = fwx_ref.shape[1]        # fc_out width (1024)
    HWD = x_ref.shape[1]          # HW * D
    HW = HWD // D                 # number of spatial tokens

    gamma = ln_ref[0:1, :]        # (1, D)
    beta = ln_ref[1:2, :]         # (1, D)

    x = x_ref[...]                # (BT, HW*D) f32, NHWC row-major flat, D on lanes

    # ---- LayerNorm over d_model per token.
    # Each token occupies a lane-aligned 128-wide slice -> static slice (vreg
    # column select), XLU lane reduce, VPU normalize.  Two-pass variance, f32.
    cols = []
    for t in range(HW):                                 # unrolled at trace time (HW small)
        xt = x[:, t * D:(t + 1) * D]                    # (BT, D) lane-aligned slice
        mu = jnp.mean(xt, axis=-1, keepdims=True)       # (BT, 1)
        xc = xt - mu
        var = jnp.mean(xc * xc, axis=-1, keepdims=True)
        inv = jax.lax.rsqrt(var + EPS)                  # EUP
        cols.append(xc * inv * gamma + beta)
    xn = jnp.concatenate(cols, axis=-1)                 # (BT, HW*D), lane-wise concat

    # ---- literal `x.reshape(bs, feat, h*w)` + AdaptiveAvgPool1d(1):
    # one matmul against the precomputed 0/1 chunk-selection matrix (bf16
    # operands are exact for 0/1; f32 accumulation; 1/HW applied afterwards so
    # it is exact for any HW).
    pooled = jnp.dot(xn.astype(bf16), pool_ref[...],
                     preferred_element_type=f32) * (1.0 / HW)      # (BT, D)

    # ---- bbox embedding (K=4): VPU broadcast FMAs in f32, no MXU push.
    # TODO(synk): BoundingBoxEmbeddingCombined not provided; modeled as Linear(4, emb_dim).
    # Its bias is folded into the fc bias row at init time (exact for a linear layer).
    bbox = bbox_ref[...]                                # (BT, 4)
    bw = bw_ref[...]                                    # (4, Eb)
    bemb = (bbox[:, 0:1] * bw[0:1, :] + bbox[:, 1:2] * bw[1:2, :]
            + bbox[:, 2:3] * bw[2:3, :] + bbox[:, 3:4] * bw[3:4, :])

    # ---- cat([pooled, bemb]) @ W_fc == pooled @ W_fc[:D] + bemb @ W_fc[D:]
    fc_b = bias_ref[:, :HID]                            # (1, HID)
    head_b = bias_ref[:, HID:]                          # (1, HEAD_PAD)
    h = (jnp.dot(pooled.astype(bf16), fwx_ref[...], preferred_element_type=f32)
         + jnp.dot(bemb.astype(bf16), fwb_ref[...], preferred_element_type=f32)
         + fc_b)
    h = jnp.maximum(h, 0.0)                             # F.relu, f32

    # ---- merged rot|trans head: one lane-dense (hidden, 128) zero-padded matmul.
    # TODO(synk): `head` module not provided; modeled as two Linear heads (rot 6D, trans 3D).
    out_ref[...] = (jnp.dot(h.astype(bf16), wh_ref[...],
                            preferred_element_type=f32) + head_b)


def fused_forward_pallas(x_flat, bbox, p):
    B, HWD = x_flat.shape
    D, HID = p["fc_wx_b16"].shape
    EB = p["fc_wb_b16"].shape[0]

    # Batch tile: sublane-aligned (multiple of 8).  Re-derive for v7x's 64 MiB
    # VMEM at production HW*D (halve the tile or use bf16 activations there).
    b_tile = 8 if B % 8 == 0 else B
    grid = (B // b_tile,)
    const = lambda i: (0, 0)      # weights: constant block -> stays VMEM-resident

    return pl.pallas_call(
        fused_forward_kernel,
        out_shape=jax.ShapeDtypeStruct((B, HEAD_PAD), jnp.float32),
        grid_spec=pltpu.PrefetchScalarGridSpec(
            num_scalar_prefetch=0,
            grid=grid,
            in_specs=[
                pl.BlockSpec((b_tile, HWD), lambda i: (i, 0)),   # activations (pipelined)
                pl.BlockSpec((b_tile, 4), lambda i: (i, 0)),     # bbox
                pl.BlockSpec((2, D), const),                     # gamma | beta
                pl.BlockSpec((HWD, D), const),                   # pool selection (bf16, 0/1)
                pl.BlockSpec((4, EB), const),                    # bbox-emb weight
                pl.BlockSpec((D, HID), const),                   # fc weight (pooled slice)
                pl.BlockSpec((EB, HID), const),                  # fc weight (bbox slice)
                pl.BlockSpec((1, HID + HEAD_PAD), const),        # fc_b_eff | head_b
                pl.BlockSpec((HID, HEAD_PAD), const),            # merged head weight
            ],
            out_specs=pl.BlockSpec((b_tile, HEAD_PAD), lambda i: (i, 0)),
        ),
        compiler_params=pltpu.CompilerParams(
            dimension_semantics=("parallel",),      # shards batch over v7x's 2 TCs
            vmem_limit_bytes=32 * 1024 * 1024,
        ),
    )(x_flat, bbox, p["ln_affine"], p["pool_mat"], p["bbox_w"],
      p["fc_wx_b16"], p["fc_wb_b16"], p["bias_cat"], p["w_head_b16"])


# ---------------------------------------------------------------------------
# Full forward (wrapper does layout-only work)
# ---------------------------------------------------------------------------
def direct_pose_net_forward(roi_feat_nchw, bbox, params):
    # TODO(synk): backbone not provided; roi_feat_nchw stands in for its last feature map.
    # TODO(synk): have the backbone emit NHWC directly so this permute (a full HBM
    # read+write at real sizes) disappears; kept here to match `.permute(0, 2, 3, 1)`.
    B, D, H, W = roi_feat_nchw.shape
    HW = H * W
    x_flat = jnp.transpose(roi_feat_nchw, (0, 2, 3, 1)).reshape(B, HW * D)
    out = fused_forward_pallas(x_flat, bbox, params)
    rot_dim = params["wr"].shape[1]
    return out[:, :rot_dim], out[:, rot_dim:rot_dim + 3]


# ---------------------------------------------------------------------------
# Precomputed constants / parameter packing
# ---------------------------------------------------------------------------
def build_pool_matrix(hw, d_model):
    # P01[f, d] = 1 iff flat NHWC index f lies in the d-th contiguous chunk of
    # length HW, i.e. the literal torch reshape (B, HW*D)->(B, D, HW) followed by
    # AdaptiveAvgPool1d(1); the 1/HW factor is applied in-kernel (exact for any HW).
    f = np.arange(hw * d_model)[:, None]
    d = np.arange(d_model)[None, :]
    return jnp.asarray((f // hw) == d, dtype=jnp.bfloat16)      # 0/1 exact in bf16


def init_params(key, d_model, hw, bbox_emb_dim=256, rot_dim=6, hidden=1024):
    ks = jax.random.split(key, 10)
    p = {}
    # LN affine perturbed from ones/zeros so the gamma/beta path is exercised.
    p["ln_g"] = 1.0 + 0.1 * jax.random.normal(ks[0], (d_model,), jnp.float32)
    p["ln_b"] = 0.05 * jax.random.normal(ks[1], (d_model,), jnp.float32)
    # TODO(synk): BoundingBoxEmbeddingCombined not provided; modeled as Linear(4, emb_dim).
    p["bbox_w"] = 0.02 * jax.random.normal(ks[2], (4, bbox_emb_dim), jnp.float32)
    p["bbox_b"] = 0.02 * jax.random.normal(ks[3], (1, bbox_emb_dim), jnp.float32)
    fc_w = 0.02 * jax.random.normal(ks[4], (d_model + bbox_emb_dim, hidden), jnp.float32)
    p["fc_wx"] = fc_w[:d_model]            # slice acting on the pooled features
    p["fc_wb"] = fc_w[d_model:]            # slice acting on the bbox embedding
    p["fc_b"] = 0.02 * jax.random.normal(ks[5], (1, hidden), jnp.float32)
    # TODO(synk): `head` module not provided; modeled as two Linear heads (rot 6D, trans 3D).
    p["wr"] = 0.02 * jax.random.normal(ks[6], (hidden, rot_dim), jnp.float32)
    p["br"] = 0.02 * jax.random.normal(ks[7], (1, rot_dim), jnp.float32)
    p["wt"] = 0.02 * jax.random.normal(ks[8], (hidden, 3), jnp.float32)
    p["bt"] = 0.02 * jax.random.normal(ks[9], (1, 3), jnp.float32)

    # ---- one-time kernel-side packing (fewer DMAs, no per-call tiles) ----
    p["ln_affine"] = jnp.stack([p["ln_g"], p["ln_b"]], axis=0)           # (2, D)
    p["pool_mat"] = build_pool_matrix(hw, d_model)                       # (HW*D, D) bf16
    # bf16 copies of the MXU weight operands (f32 accumulation stays in-kernel).
    p["fc_wx_b16"] = p["fc_wx"].astype(jnp.bfloat16)
    p["fc_wb_b16"] = p["fc_wb"].astype(jnp.bfloat16)
    # Merged, zero-padded (rot | trans | 0...) head -> lane-dense 128-wide output.
    w_head = jnp.zeros((hidden, HEAD_PAD), jnp.float32)
    w_head = w_head.at[:, :rot_dim].set(p["wr"]).at[:, rot_dim:rot_dim + 3].set(p["wt"])
    p["w_head_b16"] = w_head.astype(jnp.bfloat16)
    b_head = jnp.zeros((1, HEAD_PAD), jnp.float32)
    b_head = b_head.at[:, :rot_dim].set(p["br"]).at[:, rot_dim:rot_dim + 3].set(p["bt"])
    # Fold the (linear) bbox-embedding bias through fc, then pack fc and head
    # biases into one row: (bbox@W + b)@Wfc + fc_b == bbox@W@Wfc + (b@Wfc + fc_b).
    fc_b_eff = p["fc_b"] + p["bbox_b"] @ p["fc_wb"]
    p["bias_cat"] = jnp.concatenate([fc_b_eff, b_head], axis=-1)         # (1, hidden+128)
    return p


# ---------------------------------------------------------------------------
# Pure-JAX reference (mirrors the PyTorch forward semantics exactly, f32)
# ---------------------------------------------------------------------------
def reference_forward(roi_feat_nchw, bbox, p):
    B, D, H, W = roi_feat_nchw.shape
    x = jnp.transpose(roi_feat_nchw, (0, 2, 3, 1))           # permute(0, 2, 3, 1)
    mu = jnp.mean(x, -1, keepdims=True)
    var = jnp.mean((x - mu) ** 2, -1, keepdims=True)
    x = (x - mu) / jnp.sqrt(var + EPS) * p["ln_g"] + p["ln_b"]
    x = x.reshape(B, D, H * W)                               # literal torch reshape on NHWC data
    pooled = jnp.mean(x, -1)                                 # AdaptiveAvgPool1d(1) + flatten
    bemb = bbox @ p["bbox_w"] + p["bbox_b"]
    xcat = jnp.concatenate([pooled, bemb], axis=-1)
    fc_w = jnp.concatenate([p["fc_wx"], p["fc_wb"]], axis=0)
    h = jax.nn.relu(xcat @ fc_w + p["fc_b"])
    return h @ p["wr"] + p["br"], h @ p["wt"] + p["bt"]


if __name__ == "__main__":
    # Small shapes; B=16 so the batch grid (two 8-row tiles) is actually exercised.
    B, D, H, W = 16, 128, 4, 4       # d_model=128 (small), 4x4 feature map
    key = jax.random.PRNGKey(0)
    k_feat, k_bbox, k_par = jax.random.split(key, 3)

    roi_feat = jax.random.normal(k_feat, (B, D, H, W), jnp.float32)   # backbone output (NCHW)
    bbox = jax.random.uniform(k_bbox, (B, 4), jnp.float32)            # squeezed bbox
    params = init_params(k_par, D, H * W)

    r, t = jax.jit(direct_pose_net_forward)(roi_feat, bbox, params)
    jax.block_until_ready((r, t))

    r_ref, t_ref = reference_forward(roi_feat, bbox, params)
    assert r.shape == (B, 6) and t.shape == (B, 3)
    # Tolerance reflects bf16 MXU operands (f32 accumulation); observed error is
    # well below this (the f32-everywhere variant matched at 1e-4).
    assert jnp.allclose(r, r_ref, rtol=5e-2, atol=5e-3)
    assert jnp.allclose(t, t_ref, rtol=5e-2, atol=5e-3)
    print("KERNEL_OK")
</pallas_src>

<mosaic_0001>
module attributes {stable_mosaic.version = 11 : i64} {
  func.func @fused_forward_kernel(%arg0: i32, %arg1: memref<8x2048xf32, #tpu.memory_space<vmem>>, %arg2: memref<8x4xf32, #tpu.memory_space<vmem>>, %arg3: memref<2x128xf32, #tpu.memory_space<vmem>>, %arg4: memref<2048x128xbf16, #tpu.memory_space<vmem>>, %arg5: memref<4x256xf32, #tpu.memory_space<vmem>>, %arg6: memref<128x1024xbf16, #tpu.memory_space<vmem>>, %arg7: memref<256x1024xbf16, #tpu.memory_space<vmem>>, %arg8: memref<1x1152xf32, #tpu.memory_space<vmem>>, %arg9: memref<1024x128xbf16, #tpu.memory_space<vmem>>, %arg10: memref<8x128xf32, #tpu.memory_space<vmem>>) attributes {dimension_semantics = [#tpu.dimension_semantics<parallel>], iteration_bounds = array<i64: 2>, scalar_prefetch = 0 : i64, scratch_operands = 0 : i64, tpu.core_type = #tpu.core_type<tc>, window_params = [{transform_indices = @transform_0, window_bounds = array<i64: 8, 2048>}, {transform_indices = @transform_1, window_bounds = array<i64: 8, 4>}, {pipeline_mode = #tpu.pipeline_mode<synchronous>, transform_indices = @transform_2, window_bounds = array<i64: 2, 128>}, {pipeline_mode = #tpu.pipeline_mode<synchronous>, transform_indices = @transform_3, window_bounds = array<i64: 2048, 128>}, {pipeline_mode = #tpu.pipeline_mode<synchronous>, transform_indices = @transform_4, window_bounds = array<i64: 4, 256>}, {pipeline_mode = #tpu.pipeline_mode<synchronous>, transform_indices = @transform_5, window_bounds = array<i64: 128, 1024>}, {pipeline_mode = #tpu.pipeline_mode<synchronous>, transform_indices = @transform_6, window_bounds = array<i64: 256, 1024>}, {pipeline_mode = #tpu.pipeline_mode<synchronous>, transform_indices = @transform_7, window_bounds = array<i64: 1, 1152>}, {pipeline_mode = #tpu.pipeline_mode<synchronous>, transform_indices = @transform_8, window_bounds = array<i64: 1024, 128>}, {transform_indices = @transform_9, window_bounds = array<i64: 8, 128>}]} {
    %c0 = arith.constant 0 : index
    %c0_0 = arith.constant 0 : index
    %0 = vector.load %arg3[%c0, %c0_0] : memref<2x128xf32, #tpu.memory_space<vmem>>, vector<1x128xf32>
    %c1 = arith.constant 1 : index
    %c0_1 = arith.constant 0 : index
    %1 = vector.load %arg3[%c1, %c0_1] : memref<2x128xf32, #tpu.memory_space<vmem>>, vector<1x128xf32>
    %c0_2 = arith.constant 0 : index
    %c0_3 = arith.constant 0 : index
    %2 = vector.load %arg1[%c0_2, %c0_3] : memref<8x2048xf32, #tpu.memory_space<vmem>>, vector<8x2048xf32>
    %3 = vector.extract_strided_slice %2 {offsets = [0, 0], sizes = [8, 128], strides = [1, 1]} : vector<8x2048xf32> to vector<8x128xf32>
    %cst = arith.constant dense<0.000000e+00> : vector<8xf32>
    %4 = vector.multi_reduction <add>, %3, %cst [1] : vector<8x128xf32> to vector<8xf32>
    %5 = vector.shape_cast %4 : vector<8xf32> to vector<8x1xf32>
    %cst_4 = arith.constant 1.280000e+02 : f32
    %6 = vector.broadcast %cst_4 : f32 to vector<8x1xf32>
    %7 = arith.divf %5, %6 : vector<8x1xf32>
    %8 = vector.broadcast %7 : vector<8x1xf32> to vector<8x128xf32>
    %9 = arith.subf %3, %8 : vector<8x128xf32>
    %10 = arith.mulf %9, %9 : vector<8x128xf32>
    %cst_5 = arith.constant dense<0.000000e+00> : vector<8xf32>
    %11 = vector.multi_reduction <add>, %10, %cst_5 [1] : vector<8x128xf32> to vector<8xf32>
    %12 = vector.shape_cast %11 : vector<8xf32> to vector<8x1xf32>
    %cst_6 = arith.constant 1.280000e+02 : f32
    %13 = vector.broadcast %cst_6 : f32 to vector<8x1xf32>
    %14 = arith.divf %12, %13 : vector<8x1xf32>
    %cst_7 = arith.constant 9.99999997E-7 : f32
    %15 = vector.broadcast %cst_7 : f32 to vector<8x1xf32>
    %16 = arith.addf %14, %15 : vector<8x1xf32>
    %17 = math.rsqrt %16 : vector<8x1xf32>
    %18 = vector.broadcast %17 : vector<8x1xf32> to vector<8x128xf32>
    %19 = arith.mulf %9, %18 : vector<8x128xf32>
    %20 = vector.broadcast %0 : vector<1x128xf32> to vector<8x128xf32>
    %21 = arith.mulf %19, %20 : vector<8x128xf32>
    %22 = vector.broadcast %1 : vector<1x128xf32> to vector<8x128xf32>
    %23 = arith.addf %21, %22 : vector<8x128xf32>
    %24 = vector.extract_strided_slice %2 {offsets = [0, 128], sizes = [8, 128], strides = [1, 1]} : vector<8x2048xf32> to vector<8x128xf32>
    %cst_8 = arith.constant dense<0.000000e+00> : vector<8xf32>
    %25 = vector.multi_reduction <add>, %24, %cst_8 [1] : vector<8x128xf32> to vector<8xf32>
    %26 = vector.shape_cast %25 : vector<8xf32> to vector<8x1xf32>
    %cst_9 = arith.constant 1.280000e+02 : f32
    %27 = vector.broadcast %cst_9 : f32 to vector<8x1xf32>
    %28 = arith.divf %26, %27 : vector<8x1xf32>
    %29 = vector.broadcast %28 : vector<8x1xf32> to vector<8x128xf32>
    %30 = arith.subf %24, %29 : vector<8x128xf32>
    %31 = arith.mulf %30, %30 : vector<8x128xf32>
    %cst_10 = arith.constant dense<0.000000e+00> : vector<8xf32>
    %32 = vector.multi_reduction <add>, %31, %cst_10 [1] : vector<8x128xf32> to vector<8xf32>
    %33 = vector.shape_cast %32 : vector<8xf32> to vector<8x1xf32>
    %cst_11 = arith.constant 1.280000e+02 : f32
    %34 = vector.broadcast %cst_11 : f32 to vector<8x1xf32>
    %35 = arith.divf %33, %34 : vector<8x1xf32>
    %cst_12 = arith.constant 9.99999997E-7 : f32
    %36 = vector.broadcast %cst_12 : f32 to vector<8x1xf32>
    %37 = arith.addf %35, %36 : vector<8x1xf32>
    %38 = math.rsqrt %37 : vector<8x1xf32>
    %39 = vector.broadcast %38 : vector<8x1xf32> to vector<8x128xf32>
    %40 = arith.mulf %30, %39 : vector<8x128xf32>
    %41 = vector.broadcast %0 : vector<1x128xf32> to vector<8x128xf32>
    %42 = arith.mulf %40, %41 : vector<8x128xf32>
    %43 = vector.broadcast %1 : vector<1x128xf32> to vector<8x128xf32>
    %44 = arith.addf %42, %43 : vector<8x128xf32>
    %45 = vector.extract_strided_slice %2 {offsets = [0, 256], sizes = [8, 128], strides = [1, 1]} : vector<8x2048xf32> to vector<8x128xf32>
    %cst_13 = arith.constant dense<0.000000e+00> : vector<8xf32>
    %46 = vector.multi_reduction <add>, %45, %cst_13 [1] : vector<8x128xf32> to vector<8xf32>
    %47 = vector.shape_cast %46 : vector<8xf32> to vector<8x1xf32>
    %cst_14 = arith.constant 1.280000e+02 : f32
    %48 = vector.broadcast %cst_14 : f32 to vector<8x1xf32>
    %49 = arith.divf %47, %48 : vector<8x1xf32>
    %50 = vector.broadcast %49 : vector<8x1xf32> to vector<8x128xf32>
    %51 = arith.subf %45, %50 : vector<8x128xf32>
    %52 = arith.mulf %51, %51 : vector<8x128xf32>
    %cst_15 = arith.constant dense<0.000000e+00> : vector<8xf32>
    %53 = vector.multi_reduction <add>, %52, %cst_15 [1] : vector<8x128xf32> to vector<8xf32>
    %54 = vector.shape_cast %53 : vector<8xf32> to vector<8x1xf32>
    %cst_16 = arith.constant 1.280000e+02 : f32
    %55 = vector.broadcast %cst_16 : f32 to vector<8x1xf32>
    %56 = arith.divf %54, %55 : vector<8x1xf32>
    %cst_17 = arith.constant 9.99999997E-7 : f32
    %57 = vector.broadcast %cst_17 : f32 to vector<8x1xf32>
    %58 = arith.addf %56, %57 : vector<8x1xf32>
    %59 = math.rsqrt %58 : vector<8x1xf32>
    %60 = vector.broadcast %59 : vector<8x1xf32> to vector<8x128xf32>
    %61 = arith.mulf %51, %60 : vector<8x128xf32>
    %62 = vector.broadcast %0 : vector<1x128xf32> to vector<8x128xf32>
    %63 = arith.mulf %61, %62 : vector<8x128xf32>
    %64 = vector.broadcast %1 : vector<1x128xf32> to vector<8x128xf32>
    %65 = arith.addf %63, %64 : vector<8x128xf32>
    %66 = vector.extract_strided_slice %2 {offsets = [0, 384], sizes = [8, 128], strides = [1, 1]} : vector<8x2048xf32> to vector<8x128xf32>
    %cst_18 = arith.constant dense<0.000000e+00> : vector<8xf32>
    %67 = vector.multi_reduction <add>, %66, %cst_18 [1] : vector<8x128xf32> to vector<8xf32>
    %68 = vector.shape_cast %67 : vector<8xf32> to vector<8x1xf32>
    %cst_19 = arith.constant 1.280000e+02 : f32
    %69 = vector.broadcast %cst_19 : f32 to vector<8x1xf32>
    %70 = arith.divf %68, %69 : vector<8x1xf32>
    %71 = vector.broadcast %70 : vector<8x1xf32> to vector<8x128xf32>
    %72 = arith.subf %66, %71 : vector<8x128xf32>
    %73 = arith.mulf %72, %72 : vector<8x128xf32>
    %cst_20 = arith.constant dense<0.000000e+00> : vector<8xf32>
    %74 = vector.multi_reduction <add>, %73, %cst_20 [1] : vector<8x128xf32> to vector<8xf32>
    %75 = vector.shape_cast %74 : vector<8xf32> to vector<8x1xf32>
    %cst_21 = arith.constant 1.280000e+02 : f32
    %76 = vector.broadcast %cst_21 : f32 to vector<8x1xf32>
    %77 = arith.divf %75, %76 : vector<8x1xf32>
    %cst_22 = arith.constant 9.99999997E-7 : f32
    %78 = vector.broadcast %cst_22 : f32 to vector<8x1xf32>
    %79 = arith.addf %77, %78 : vector<8x1xf32>
    %80 = math.rsqrt %79 : vector<8x1xf32>
    %81 = vector.broadcast %80 : vector<8x1xf32> to vector<8x128xf32>
    %82 = arith.mulf %72, %81 : vector<8x128xf32>
    %83 = vector.broadcast %0 : vector<1x128xf32> to vector<8x128xf32>
    %84 = arith.mulf %82, %83 : vector<8x128xf32>
    %85 = vector.broadcast %1 : vector<1x128xf32> to vector<8x128xf32>
    %86 = arith.addf %84, %85 : vector<8x128xf32>
    %87 = vector.extract_strided_slice %2 {offsets = [0, 512], sizes = [8, 128], strides = [1, 1]} : vector<8x2048xf32> to vector<8x128xf32>
    %cst_23 = arith.constant dense<0.000000e+00> : vector<8xf32>
    %88 = vector.multi_reduction <add>, %87, %cst_23 [1] : vector<8x128xf32> to vector<8xf32>
    %89 = vector.shape_cast %88 : vector<8xf32> to vector<8x1xf32>
    %cst_24 = arith.constant 1.280000e+02 : f32
    %90 = vector.broadcast %cst_24 : f32 to vector<8x1xf32>
    %91 = arith.divf %89, %90 : vector<8x1xf32>
    %92 = vector.broadcast %91 : vector<8x1xf32> to vector<8x128xf32>
    %93 = arith.subf %87, %92 : vector<8x128xf32>
    %94 = arith.mulf %93, %93 : vector<8x128xf32>
    %cst_25 = arith.constant dense<0.000000e+00> : vector<8xf32>
    %95 = vector.multi_reduction <add>, %94, %cst_25 [1] : vector<8x128xf32> to vector<8xf32>
    %96 = vector.shape_cast %95 : vector<8xf32> to vector<8x1xf32>
    %cst_26 = arith.constant 1.280000e+02 : f32
    %97 = vector.broadcast %cst_26 : f32 to vector<8x1xf32>
    %98 = arith.divf %96, %97 : vector<8x1xf32>
    %cst_27 = arith.constant 9.99999997E-7 : f32
    %99 = vector.broadcast %cst_27 : f32 to vector<8x1xf32>
    %100 = arith.addf %98, %99 : vector<8x1xf32>
    %101 = math.rsqrt %100 : vector<8x1xf32>
    %102 = vector.broadcast %101 : vector<8x1xf32> to vector<8x128xf32>
    %103 = arith.mulf %93, %102 : vector<8x128xf32>
    %104 = vector.broadcast %0 : vector<1x128xf32> to vector<8x128xf32>
    %105 = arith.mulf %103, %104 : vector<8x128xf32>
    %106 = vector.broadcast %1 : vector<1x128xf32> to vector<8x128xf32>
    %107 = arith.addf %105, %106 : vector<8x128xf32>
    %108 = vector.extract_strided_slice %2 {offsets = [0, 640], sizes = [8, 128], strides = [1, 1]} : vector<8x2048xf32> to vector<8x128xf32>
    %cst_28 = arith.constant dense<0.000000e+00> : vector<8xf32>
    %109 = vector.multi_reduction <add>, %108, %cst_28 [1] : vector<8x128xf32> to vector<8xf32>
    %110 = vector.shape_cast %109 : vector<8xf32> to vector<8x1xf32>
    %cst_29 = arith.constant 1.280000e+02 : f32
    %111 = vector.broadcast %cst_29 : f32 to vector<8x1xf32>
    %112 = arith.divf %110, %111 : vector<8x1xf32>
    %113 = vector.broadcast %112 : vector<8x1xf32> to vector<8x128xf32>
    %114 = arith.subf %108, %113 : vector<8x128xf32>
    %115 = arith.mulf %114, %114 : vector<8x128xf32>
    %cst_30 = arith.constant dense<0.000000e+00> : vector<8xf32>
    %116 = vector.multi_reduction <add>, %115, %cst_30 [1] : vector<8x128xf32> to vector<8xf32>
    %117 = vector.shape_cast %116 : vector<8xf32> to vector<8x1xf32>
    %cst_31 = arith.constant 1.280000e+02 : f32
    %118 = vector.broadcast %cst_31 : f32 to vector<8x1xf32>
    %119 = arith.divf %117, %118 : vector<8x1xf32>
    %cst_32 = arith.constant 9.99999997E-7 : f32
    %120 = vector.broadcast %cst_32 : f32 to vector<8x1xf32>
    %121 = arith.addf %119, %120 : vector<8x1xf32>
    %122 = math.rsqrt %121 : vector<8x1xf32>
    %123 = vector.broadcast %122 : vector<8x1xf32> to vector<8x128xf32>
    %124 = arith.mulf %114, %123 : vector<8x128xf32>
    %125 = vector.broadcast %0 : vector<1x128xf32> to vector<8x128xf32>
    %126 = arith.mulf %124, %125 : vector<8x128xf32>
    %127 = vector.broadcast %1 : vector<1x128xf32> to vector<8x128xf32>
    %128 = arith.addf %126, %127 : vector<8x128xf32>
    %129 = vector.extract_strided_slice %2 {offsets = [0, 768], sizes = [8, 128], strides = [1, 1]} : vector<8x2048xf32> to vector<8x128xf32>
    %cst_33 = arith.constant dense<0.000000e+00> : vector<8xf32>
    %130 = vector.multi_reduction <add>, %129, %cst_33 [1] : vector<8x128xf32> to vector<8xf32>
    %131 = vector.shape_cast %130 : vector<8xf32> to vector<8x1xf32>
    %cst_34 = arith.constant 1.280000e+02 : f32
    %132 = vector.broadcast %cst_34 : f32 to vector<8x1xf32>
    %133 = arith.divf %131, %132 : vector<8x1xf32>
    %134 = vector.broadcast %133 : vector<8x1xf32> to vector<8x128xf32>
    %135 = arith.subf %129, %134 : vector<8x128xf32>
    %136 = arith.mulf %135, %135 : vector<8x128xf32>
    %cst_35 = arith.constant dense<0.000000e+00> : vector<8xf32>
    %137 = vector.multi_reduction <add>, %136, %cst_35 [1] : vector<8x128xf32> to vector<8xf32>
    %138 = vector.shape_cast %137 : vector<8xf32> to vector<8x1xf32>
    %cst_36 = arith.constant 1.280000e+02 : f32
    %139 = vector.broadcast %cst_36 : f32 to vector<8x1xf32>
    %140 = arith.divf %138, %139 : vector<8x1xf32>
    %cst_37 = arith.constant 9.99999997E-7 : f32
    %141 = vector.broadcast %cst_37 : f32 to vector<8x1xf32>
    %142 = arith.addf %140, %141 : vector<8x1xf32>
    %143 = math.rsqrt %142 : vector<8x1xf32>
    %144 = vector.broadcast %143 : vector<8x1xf32> to vector<8x128xf32>
    %145 = arith.mulf %135, %144 : vector<8x128xf32>
    %146 = vector.broadcast %0 : vector<1x128xf32> to vector<8x128xf32>
    %147 = arith.mulf %145, %146 : vector<8x128xf32>
    %148 = vector.broadcast %1 : vector<1x128xf32> to vector<8x128xf32>
    %149 = arith.addf %147, %148 : vector<8x128xf32>
    %150 = vector.extract_strided_slice %2 {offsets = [0, 896], sizes = [8, 128], strides = [1, 1]} : vector<8x2048xf32> to vector<8x128xf32>
    %cst_38 = arith.constant dense<0.000000e+00> : vector<8xf32>
    %151 = vector.multi_reduction <add>, %150, %cst_38 [1] : vector<8x128xf32> to vector<8xf32>
    %152 = vector.shape_cast %151 : vector<8xf32> to vector<8x1xf32>
    %cst_39 = arith.constant 1.280000e+02 : f32
    %153 = vector.broadcast %cst_39 : f32 to vector<8x1xf32>
    %154 = arith.divf %152, %153 : vector<8x1xf32>
    %155 = vector.broadcast %154 : vector<8x1xf32> to vector<8x128xf32>
    %156 = arith.subf %150, %155 : vector<8x128xf32>
    %157 = arith.mulf %156, %156 : vector<8x128xf32>
    %cst_40 = arith.constant dense<0.000000e+00> : vector<8xf32>
    %158 = vector.multi_reduction <add>, %157, %cst_40 [1] : vector<8x128xf32> to vector<8xf32>
    %159 = vector.shape_cast %158 : vector<8xf32> to vector<8x1xf32>
    %cst_41 = arith.constant 1.280000e+02 : f32
    %160 = vector.broadcast %cst_41 : f32 to vector<8x1xf32>
    %161 = arith.divf %159, %160 : vector<8x1xf32>
    %cst_42 = arith.constant 9.99999997E-7 : f32
    %162 = vector.broadcast %cst_42 : f32 to vector<8x1xf32>
    %163 = arith.addf %161, %162 : vector<8x1xf32>
    %164 = math.rsqrt %163 : vector<8x1xf32>
    %165 = vector.broadcast %164 : vector<8x1xf32> to vector<8x128xf32>
    %166 = arith.mulf %156, %165 : vector<8x128xf32>
    %167 = vector.broadcast %0 : vector<1x128xf32> to vector<8x128xf32>
    %168 = arith.mulf %166, %167 : vector<8x128xf32>
    %169 = vector.broadcast %1 : vector<1x128xf32> to vector<8x128xf32>
    %170 = arith.addf %168, %169 : vector<8x128xf32>
    %171 = vector.extract_strided_slice %2 {offsets = [0, 1024], sizes = [8, 128], strides = [1, 1]} : vector<8x2048xf32> to vector<8x128xf32>
    %cst_43 = arith.constant dense<0.000000e+00> : vector<8xf32>
    %172 = vector.multi_reduction <add>, %171, %cst_43 [1] : vector<8x128xf32> to vector<8xf32>
    %173 = vector.shape_cast %172 : vector<8xf32> to vector<8x1xf32>
    %cst_44 = arith.constant 1.280000e+02 : f32
    %174 = vector.broadcast %cst_44 : f32 to vector<8x1xf32>
    %175 = arith.divf %173, %174 : vector<8x1xf32>
    %176 = vector.broadcast %175 : vector<8x1xf32> to vector<8x128xf32>
    %177 = arith.subf %171, %176 : vector<8x128xf32>
    %178 = arith.mulf %177, %177 : vector<8x128xf32>
    %cst_45 = arith.constant dense<0.000000e+00> : vector<8xf32>
    %179 = vector.multi_reduction <add>, %178, %cst_45 [1] : vector<8x128xf32> to vector<8xf32>
    %180 = vector.shape_cast %179 : vector<8xf32> to vector<8x1xf32>
    %cst_46 = arith.constant 1.280000e+02 : f32
    %181 = vector.broadcast %cst_46 : f32 to vector<8x1xf32>
    %182 = arith.divf %180, %181 : vector<8x1xf32>
    %cst_47 = arith.constant 9.99999997E-7 : f32
    %183 = vector.broadcast %cst_47 : f32 to vector<8x1xf32>
    %184 = arith.addf %182, %183 : vector<8x1xf32>
    %185 = math.rsqrt %184 : vector<8x1xf32>
    %186 = vector.broadcast %185 : vector<8x1xf32> to vector<8x128xf32>
    %187 = arith.mulf %177, %186 : vector<8x128xf32>
    %188 = vector.broadcast %0 : vector<1x128xf32> to vector<8x128xf32>
    %189 = arith.mulf %187, %188 : vector<8x128xf32>
    %190 = vector.broadcast %1 : vector<1x128xf32> to vector<8x128xf32>
    %191 = arith.addf %189, %190 : vector<8x128xf32>
    %192 = vector.extract_strided_slice %2 {offsets = [0, 1152], sizes = [8, 128], strides = [1, 1]} : vector<8x2048xf32> to vector<8x128xf32>
    %cst_48 = arith.constant dense<0.000000e+00> : vector<8xf32>
    %193 = vector.multi_reduction <add>, %192, %cst_48 [1] : vector<8x128xf32> to vector<8xf32>
    %194 = vector.shape_cast %193 : vector<8xf32> to vector<8x1xf32>
    %cst_49 = arith.constant 1.280000e+02 : f32
    %195 = vector.broadcast %cst_49 : f32 to vector<8x1xf32>
    %196 = arith.divf %194, %195 : vector<8x1xf32>
    %197 = vector.broadcast %196 : vector<8x1xf32> to vector<8x128xf32>
    %198 = arith.subf %192, %197 : vector<8x128xf32>
    %199 = arith.mulf %198, %198 : vector<8x128xf32>
    %cst_50 = arith.constant dense<0.000000e+00> : vector<8xf32>
    %200 = vector.multi_reduction <add>, %199, %cst_50 [1] : vector<8x128xf32> to vector<8xf32>
    %201 = vector.shape_cast %200 : vector<8xf32> to vector<8x1xf32>
    %cst_51 = arith.constant 1.280000e+02 : f32
    %202 = vector.broadcast %cst_51 : f32 to vector<8x1xf32>
    %203 = arith.divf %201, %202 : vector<8x1xf32>
    %cst_52 = arith.constant 9.99999997E-7 : f32
    %204 = vector.broadcast %cst_52 : f32 to vector<8x1xf32>
    %205 = arith.addf %203, %204 : vector<8x1xf32>
    %206 = math.rsqrt %205 : vector<8x1xf32>
    %207 = vector.broadcast %206 : vector<8x1xf32> to vector<8x128xf32>
    %208 = arith.mulf %198, %207 : vector<8x128xf32>
    %209 = vector.broadcast %0 : vector<1x128xf32> to vector<8x128xf32>
    %210 = arith.mulf %208, %209 : vector<8x128xf32>
    %211 = vector.broadcast %1 : vector<1x128xf32> to vector<8x128xf32>
    %212 = arith.addf %210, %211 : vector<8x128xf32>
    %213 = vector.extract_strided_slice %2 {offsets = [0, 1280], sizes = [8, 128], strides = [1, 1]} : vector<8x2048xf32> to vector<8x128xf32>
    %cst_53 = arith.constant dense<0.000000e+00> : vector<8xf32>
    %214 = vector.multi_reduction <add>, %213, %cst_53 [1] : vector<8x128xf32> to vector<8xf32>
    %215 = vector.shape_cast %214 : vector<8xf32> to vector<8x1xf32>
    %cst_54 = arith.constant 1.280000e+02 : f32
    %216 = vector.broadcast %cst_54 : f32 to vector<8x1xf32>
    %217 = arith.divf %215, %216 : vector<8x1xf32>
    %218 = vector.broadcast %217 : vector<8x1xf32> to vector<8x128xf32>
    %219 = arith.subf %213, %218 : vector<8x128xf32>
    %220 = arith.mulf %219, %219 : vector<8x128xf32>
    %cst_55 = arith.constant dense<0.000000e+00> : vector<8xf32>
    %221 = vector.multi_reduction <add>, %220, %cst_55 [1] : vector<8x128xf32> to vector<8xf32>
    %222 = vector.shape_cast %221 : vector<8xf32> to vector<8x1xf32>
    %cst_56 = arith.constant 1.280000e+02 : f32
    %223 = vector.broadcast %cst_56 : f32 to vector<8x1xf32>
    %224 = arith.divf %222, %223 : vector<8x1xf32>
    %cst_57 = arith.constant 9.99999997E-7 : f32
    %225 = vector.broadcast %cst_57 : f32 to vector<8x1xf32>
    %226 = arith.addf %224, %225 : vector<8x1xf32>
    %227 = math.rsqrt %226 : vector<8x1xf32>
    %228 = vector.broadcast %227 : vector<8x1xf32> to vector<8x128xf32>
    %229 = arith.mulf %219, %228 : vector<8x128xf32>
    %230 = vector.broadcast %0 : vector<1x128xf32> to vector<8x128xf32>
    %231 = arith.mulf %229, %230 : vector<8x128xf32>
    %232 = vector.broadcast %1 : vector<1x128xf32> to vector<8x128xf32>
    %233 = arith.addf %231, %232 : vector<8x128xf32>
    %234 = vector.extract_strided_slice %2 {offsets = [0, 1408], sizes = [8, 128], strides = [1, 1]} : vector<8x2048xf32> to vector<8x128xf32>
    %cst_58 = arith.constant dense<0.000000e+00> : vector<8xf32>
    %235 = vector.multi_reduction <add>, %234, %cst_58 [1] : vector<8x128xf32> to vector<8xf32>
    %236 = vector.shape_cast %235 : vector<8xf32> to vector<8x1xf32>
    %cst_59 = arith.constant 1.280000e+02 : f32
    %237 = vector.broadcast %cst_59 : f32 to vector<8x1xf32>
    %238 = arith.divf %236, %237 : vector<8x1xf32>
    %239 = vector.broadcast %238 : vector<8x1xf32> to vector<8x128xf32>
    %240 = arith.subf %234, %239 : vector<8x128xf32>
    %241 = arith.mulf %240, %240 : vector<8x128xf32>
    %cst_60 = arith.constant dense<0.000000e+00> : vector<8xf32>
    %242 = vector.multi_reduction <add>, %241, %cst_60 [1] : vector<8x128xf32> to vector<8xf32>
    %243 = vector.shape_cast %242 : vector<8xf32> to vector<8x1xf32>
    %cst_61 = arith.constant 1.280000e+02 : f32
    %244 = vector.broadcast %cst_61 : f32 to vector<8x1xf32>
    %245 = arith.divf %243, %244 : vector<8x1xf32>
    %cst_62 = arith.constant 9.99999997E-7 : f32
    %246 = vector.broadcast %cst_62 : f32 to vector<8x1xf32>
    %247 = arith.addf %245, %246 : vector<8x1xf32>
    %248 = math.rsqrt %247 : vector<8x1xf32>
    %249 = vector.broadcast %248 : vector<8x1xf32> to vector<8x128xf32>
    %250 = arith.mulf %240, %249 : vector<8x128xf32>
    %251 = vector.broadcast %0 : vector<1x128xf32> to vector<8x128xf32>
    %252 = arith.mulf %250, %251 : vector<8x128xf32>
    %253 = vector.broadcast %1 : vector<1x128xf32> to vector<8x128xf32>
    %254 = arith.addf %252, %253 : vector<8x128xf32>
    %255 = vector.extract_strided_slice %2 {offsets = [0, 1536], sizes = [8, 128], strides = [1, 1]} : vector<8x2048xf32> to vector<8x128xf32>
    %cst_63 = arith.constant dense<0.000000e+00> : vector<8xf32>
    %256 = vector.multi_reduction <add>, %255, %cst_63 [1] : vector<8x128xf32> to vector<8xf32>
    %257 = vector.shape_cast %256 : vector<8xf32> to vector<8x1xf32>
    %cst_64 = arith.constant 1.280000e+02 : f32
    %258 = vector.broadcast %cst_64 : f32 to vector<8x1xf32>
    %259 = arith.divf %257, %258 : vector<8x1xf32>
    %260 = vector.broadcast %259 : vector<8x1xf32> to vector<8x128xf32>
    %261 = arith.subf %255, %260 : vector<8x128xf32>
    %262 = arith.mulf %261, %261 : vector<8x128xf32>
    %cst_65 = arith.constant dense<0.000000e+00> : vector<8xf32>
    %263 = vector.multi_reduction <add>, %262, %cst_65 [1] : vector<8x128xf32> to vector<8xf32>
    %264 = vector.shape_cast %263 : vector<8xf32> to vector<8x1xf32>
    %cst_66 = arith.constant 1.280000e+02 : f32
    %265 = vector.broadcast %cst_66 : f32 to vector<8x1xf32>
    %266 = arith.divf %264, %265 : vector<8x1xf32>
    %cst_67 = arith.constant 9.99999997E-7 : f32
    %267 = vector.broadcast %cst_67 : f32 to vector<8x1xf32>
    %268 = arith.addf %266, %267 : vector<8x1xf32>
    %269 = math.rsqrt %268 : vector<8x1xf32>
    %270 = vector.broadcast %269 : vector<8x1xf32> to vector<8x128xf32>
    %271 = arith.mulf %261, %270 : vector<8x128xf32>
    %272 = vector.broadcast %0 : vector<1x128xf32> to vector<8x128xf32>
    %273 = arith.mulf %271, %272 : vector<8x128xf32>
    %274 = vector.broadcast %1 : vector<1x128xf32> to vector<8x128xf32>
    %275 = arith.addf %273, %274 : vector<8x128xf32>
    %276 = vector.extract_strided_slice %2 {offsets = [0, 1664], sizes = [8, 128], strides = [1, 1]} : vector<8x2048xf32> to vector<8x128xf32>
    %cst_68 = arith.constant dense<0.000000e+00> : vector<8xf32>
    %277 = vector.multi_reduction <add>, %276, %cst_68 [1] : vector<8x128xf32> to vector<8xf32>
    %278 = vector.shape_cast %277 : vector<8xf32> to vector<8x1xf32>
    %cst_69 = arith.constant 1.280000e+02 : f32
    %279 = vector.broadcast %cst_69 : f32 to vector<8x1xf32>
    %280 = arith.divf %278, %279 : vector<8x1xf32>
    %281 = vector.broadcast %280 : vector<8x1xf32> to vector<8x128xf32>
    %282 = arith.subf %276, %281 : vector<8x128xf32>
    %283 = arith.mulf %282, %282 : vector<8x128xf32>
    %cst_70 = arith.constant dense<0.000000e+00> : vector<8xf32>
    %284 = vector.multi_reduction <add>, %283, %cst_70 [1] : vector<8x128xf32> to vector<8xf32>
    %285 = vector.shape_cast %284 : vector<8xf32> to vector<8x1xf32>
    %cst_71 = arith.constant 1.280000e+02 : f32
    %286 = vector.broadcast %cst_71 : f32 to vector<8x1xf32>
    %287 = arith.divf %285, %286 : vector<8x1xf32>
    %cst_72 = arith.constant 9.99999997E-7 : f32
    %288 = vector.broadcast %cst_72 : f32 to vector<8x1xf32>
    %289 = arith.addf %287, %288 : vector<8x1xf32>
    %290 = math.rsqrt %289 : vector<8x1xf32>
    %291 = vector.broadcast %290 : vector<8x1xf32> to vector<8x128xf32>
    %292 = arith.mulf %282, %291 : vector<8x128xf32>
    %293 = vector.broadcast %0 : vector<1x128xf32> to vector<8x128xf32>
    %294 = arith.mulf %292, %293 : vector<8x128xf32>
    %295 = vector.broadcast %1 : vector<1x128xf32> to vector<8x128xf32>
    %296 = arith.addf %294, %295 : vector<8x128xf32>
    %297 = vector.extract_strided_slice %2 {offsets = [0, 1792], sizes = [8, 128], strides = [1, 1]} : vector<8x2048xf32> to vector<8x128xf32>
    %cst_73 = arith.constant dense<0.000000e+00> : vector<8xf32>
    %298 = vector.multi_reduction <add>, %297, %cst_73 [1] : vector<8x128xf32> to vector<8xf32>
    %299 = vector.shape_cast %298 : vector<8xf32> to vector<8x1xf32>
    %cst_74 = arith.constant 1.280000e+02 : f32
    %300 = vector.broadcast %cst_74 : f32 to vector<8x1xf32>
    %301 = arith.divf %299, %300 : vector<8x1xf32>
    %302 = vector.broadcast %301 : vector<8x1xf32> to vector<8x128xf32>
    %303 = arith.subf %297, %302 : vector<8x128xf32>
    %304 = arith.mulf %303, %303 : vector<8x128xf32>
    %cst_75 = arith.constant dense<0.000000e+00> : vector<8xf32>
    %305 = vector.multi_reduction <add>, %304, %cst_75 [1] : vector<8x128xf32> to vector<8xf32>
    %306 = vector.shape_cast %305 : vector<8xf32> to vector<8x1xf32>
    %cst_76 = arith.constant 1.280000e+02 : f32
    %307 = vector.broadcast %cst_76 : f32 to vector<8x1xf32>
    %308 = arith.divf %306, %307 : vector<8x1xf32>
    %cst_77 = arith.constant 9.99999997E-7 : f32
    %309 = vector.broadcast %cst_77 : f32 to vector<8x1xf32>
    %310 = arith.addf %308, %309 : vector<8x1xf32>
    %311 = math.rsqrt %310 : vector<8x1xf32>
    %312 = vector.broadcast %311 : vector<8x1xf32> to vector<8x128xf32>
    %313 = arith.mulf %303, %312 : vector<8x128xf32>
    %314 = vector.broadcast %0 : vector<1x128xf32> to vector<8x128xf32>
    %315 = arith.mulf %313, %314 : vector<8x128xf32>
    %316 = vector.broadcast %1 : vector<1x128xf32> to vector<8x128xf32>
    %317 = arith.addf %315, %316 : vector<8x128xf32>
    %318 = vector.extract_strided_slice %2 {offsets = [0, 1920], sizes = [8, 128], strides = [1, 1]} : vector<8x2048xf32> to vector<8x128xf32>
    %cst_78 = arith.constant dense<0.000000e+00> : vector<8xf32>
    %319 = vector.multi_reduction <add>, %318, %cst_78 [1] : vector<8x128xf32> to vector<8xf32>
    %320 = vector.shape_cast %319 : vector<8xf32> to vector<8x1xf32>
    %cst_79 = arith.constant 1.280000e+02 : f32
    %321 = vector.broadcast %cst_79 : f32 to vector<8x1xf32>
    %322 = arith.divf %320, %321 : vector<8x1xf32>
    %323 = vector.broadcast %322 : vector<8x1xf32> to vector<8x128xf32>
    %324 = arith.subf %318, %323 : vector<8x128xf32>
    %325 = arith.mulf %324, %324 : vector<8x128xf32>
    %cst_80 = arith.constant dense<0.000000e+00> : vector<8xf32>
    %326 = vector.multi_reduction <add>, %325, %cst_80 [1] : vector<8x128xf32> to vector<8xf32>
    %327 = vector.shape_cast %326 : vector<8xf32> to vector<8x1xf32>
    %cst_81 = arith.constant 1.280000e+02 : f32
    %328 = vector.broadcast %cst_81 : f32 to vector<8x1xf32>
    %329 = arith.divf %327, %328 : vector<8x1xf32>
    %cst_82 = arith.constant 9.99999997E-7 : f32
    %330 = vector.broadcast %cst_82 : f32 to vector<8x1xf32>
    %331 = arith.addf %329, %330 : vector<8x1xf32>
    %332 = math.rsqrt %331 : vector<8x1xf32>
    %333 = vector.broadcast %332 : vector<8x1xf32> to vector<8x128xf32>
    %334 = arith.mulf %324, %333 : vector<8x128xf32>
    %335 = vector.broadcast %0 : vector<1x128xf32> to vector<8x128xf32>
    %336 = arith.mulf %334, %335 : vector<8x128xf32>
    %337 = vector.broadcast %1 : vector<1x128xf32> to vector<8x128xf32>
    %338 = arith.addf %336, %337 : vector<8x128xf32>
    %339 = tpu.concatenate %23, %44, %65, %86, %107, %128, %149, %170, %191, %212, %233, %254, %275, %296, %317, %338 in 1 : vector<8x128xf32>, vector<8x128xf32>, vector<8x128xf32>, vector<8x128xf32>, vector<8x128xf32>, vector<8x128xf32>, vector<8x128xf32>, vector<8x128xf32>, vector<8x128xf32>, vector<8x128xf32>, vector<8x128xf32>, vector<8x128xf32>, vector<8x128xf32>, vector<8x128xf32>, vector<8x128xf32>, vector<8x128xf32> -> vector<8x2048xf32>
    %340 = arith.truncf %339 : vector<8x2048xf32> to vector<8x2048xbf16>
    %c0_83 = arith.constant 0 : index
    %c0_84 = arith.constant 0 : index
    %341 = vector.load %arg4[%c0_83, %c0_84] : memref<2048x128xbf16, #tpu.memory_space<vmem>>, vector<2048x128xbf16>
    %cst_85 = arith.constant dense<0.000000e+00> : vector<8x128xf32>
    %342 = tpu.matmul %340, %341, %cst_85 {dimension_numbers = #tpu.dot_dimension_numbers<[1], [0], [0], [1], [0, 0, 1, 1], [], []>} : vector<8x2048xbf16>, vector<2048x128xbf16>, vector<8x128xf32> -> vector<8x128xf32>
    %cst_86 = arith.constant 6.250000e-02 : f32
    %343 = vector.broadcast %cst_86 : f32 to vector<8x128xf32>
    %344 = arith.mulf %342, %343 : vector<8x128xf32>
    %c0_87 = arith.constant 0 : index
    %c0_88 = arith.constant 0 : index
    %345 = vector.load %arg2[%c0_87, %c0_88] : memref<8x4xf32, #tpu.memory_space<vmem>>, vector<8x4xf32>
    %c0_89 = arith.constant 0 : index
    %c0_90 = arith.constant 0 : index
    %346 = vector.load %arg5[%c0_89, %c0_90] : memref<4x256xf32, #tpu.memory_space<vmem>>, vector<4x256xf32>
    %347 = vector.extract_strided_slice %345 {offsets = [0, 0], sizes = [8, 1], strides = [1, 1]} : vector<8x4xf32> to vector<8x1xf32>
    %348 = vector.extract_strided_slice %346 {offsets = [0, 0], sizes = [1, 256], strides = [1, 1]} : vector<4x256xf32> to vector<1x256xf32>
    %349 = vector.broadcast %347 : vector<8x1xf32> to vector<8x256xf32>
    %350 = vector.broadcast %348 : vector<1x256xf32> to vector<8x256xf32>
    %351 = arith.mulf %349, %350 : vector<8x256xf32>
    %352 = vector.extract_strided_slice %345 {offsets = [0, 1], sizes = [8, 1], strides = [1, 1]} : vector<8x4xf32> to vector<8x1xf32>
    %353 = vector.extract_strided_slice %346 {offsets = [1, 0], sizes = [1, 256], strides = [1, 1]} : vector<4x256xf32> to vector<1x256xf32>
    %354 = vector.broadcast %352 : vector<8x1xf32> to vector<8x256xf32>
    %355 = vector.broadcast %353 : vector<1x256xf32> to vector<8x256xf32>
    %356 = arith.mulf %354, %355 : vector<8x256xf32>
    %357 = arith.addf %351, %356 : vector<8x256xf32>
    %358 = vector.extract_strided_slice %345 {offsets = [0, 2], sizes = [8, 1], strides = [1, 1]} : vector<8x4xf32> to vector<8x1xf32>
    %359 = vector.extract_strided_slice %346 {offsets = [2, 0], sizes = [1, 256], strides = [1, 1]} : vector<4x256xf32> to vector<1x256xf32>
    %360 = vector.broadcast %358 : vector<8x1xf32> to vector<8x256xf32>
    %361 = vector.broadcast %359 : vector<1x256xf32> to vector<8x256xf32>
    %362 = arith.mulf %360, %361 : vector<8x256xf32>
    %363 = arith.addf %357, %362 : vector<8x256xf32>
    %364 = vector.extract_strided_slice %345 {offsets = [0, 3], sizes = [8, 1], strides = [1, 1]} : vector<8x4xf32> to vector<8x1xf32>
    %365 = vector.extract_strided_slice %346 {offsets = [3, 0], sizes = [1, 256], strides = [1, 1]} : vector<4x256xf32> to vector<1x256xf32>
    %366 = vector.broadcast %364 : vector<8x1xf32> to vector<8x256xf32>
    %367 = vector.broadcast %365 : vector<1x256xf32> to vector<8x256xf32>
    %368 = arith.mulf %366, %367 : vector<8x256xf32>
    %369 = arith.addf %363, %368 : vector<8x256xf32>
    %c0_91 = arith.constant 0 : index
    %c0_92 = arith.constant 0 : index
    %370 = vector.load %arg8[%c0_91, %c0_92] : memref<1x1152xf32, #tpu.memory_space<vmem>>, vector<1x1024xf32>
    %c0_93 = arith.constant 0 : index
    %c1024 = arith.constant 1024 : index
    %371 = vector.load %arg8[%c0_93, %c1024] : memref<1x1152xf32, #tpu.memory_space<vmem>>, vector<1x128xf32>
    %372 = arith.truncf %344 : vector<8x128xf32> to vector<8x128xbf16>
    %c0_94 = arith.constant 0 : index
    %c0_95 = arith.constant 0 : index
    %373 = vector.load %arg6[%c0_94, %c0_95] : memref<128x1024xbf16, #tpu.memory_space<vmem>>, vector<128x1024xbf16>
    %cst_96 = arith.constant dense<0.000000e+00> : vector<8x1024xf32>
    %374 = tpu.matmul %372, %373, %cst_96 {dimension_numbers = #tpu.dot_dimension_numbers<[1], [0], [0], [1], [0, 0, 1, 1], [], []>} : vector<8x128xbf16>, vector<128x1024xbf16>, vector<8x1024xf32> -> vector<8x1024xf32>
    %375 = arith.truncf %369 : vector<8x256xf32> to vector<8x256xbf16>
    %c0_97 = arith.constant 0 : index
    %c0_98 = arith.constant 0 : index
    %376 = vector.load %arg7[%c0_97, %c0_98] : memref<256x1024xbf16, #tpu.memory_space<vmem>>, vector<256x1024xbf16>
    %cst_99 = arith.constant dense<0.000000e+00> : vector<8x1024xf32>
    %377 = tpu.matmul %375, %376, %cst_99 {dimension_numbers = #tpu.dot_dimension_numbers<[1], [0], [0], [1], [0, 0, 1, 1], [], []>} : vector<8x256xbf16>, vector<256x1024xbf16>, vector<8x1024xf32> -> vector<8x1024xf32>
    %378 = arith.addf %374, %377 : vector<8x1024xf32>
    %379 = vector.broadcast %370 : vector<1x1024xf32> to vector<8x1024xf32>
    %380 = arith.addf %378, %379 : vector<8x1024xf32>
    %cst_100 = arith.constant 0.000000e+00 : f32
    %381 = vector.broadcast %cst_100 : f32 to vector<8x1024xf32>
    %382 = arith.maximumf %380, %381 : vector<8x1024xf32>
    %383 = arith.truncf %382 : vector<8x1024xf32> to vector<8x1024xbf16>
    %c0_101 = arith.constant 0 : index
    %c0_102 = arith.constant 0 : index
    %384 = vector.load %arg9[%c0_101, %c0_102] : memref<1024x128xbf16, #tpu.memory_space<vmem>>, vector<1024x128xbf16>
    %cst_103 = arith.constant dense<0.000000e+00> : vector<8x128xf32>
    %385 = tpu.matmul %383, %384, %cst_103 {dimension_numbers = #tpu.dot_dimension_numbers<[1], [0], [0], [1], [0, 0, 1, 1], [], []>} : vector<8x1024xbf16>, vector<1024x128xbf16>, vector<8x128xf32> -> vector<8x128xf32>
    %386 = vector.broadcast %371 : vector<1x128xf32> to vector<8x128xf32>
    %387 = arith.addf %385, %386 : vector<8x128xf32>
    %c0_104 = arith.constant 0 : index
    %c0_105 = arith.constant 0 : index
    %388 = vector.load %arg10[%c0_104, %c0_105] : memref<8x128xf32, #tpu.memory_space<vmem>>, vector<8x128xf32>
    tpu.vector_store %arg10[%c0_104, %c0_105], %387 {strides = array<i32>} : memref<8x128xf32, #tpu.memory_space<vmem>>, vector<8x128xf32>,
    return
  }
  func.func @transform_0(%arg0: i32) -> (i32, i32) {
    %c0_i32 = arith.constant 0 : i32
    %c0_i32_0 = arith.constant 0 : i32
    return %arg0, %c0_i32 : i32, i32
  }
  func.func @transform_1(%arg0: i32) -> (i32, i32) {
    %c0_i32 = arith.constant 0 : i32
    %c0_i32_0 = arith.constant 0 : i32
    return %arg0, %c0_i32 : i32, i32
  }
  func.func @transform_2(%arg0: i32) -> (i32, i32) {
    %c0_i32 = arith.constant 0 : i32
    %c0_i32_0 = arith.constant 0 : i32
    %c0_i32_1 = arith.constant 0 : i32
    return %c0_i32, %c0_i32_0 : i32, i32
  }
  func.func @transform_3(%arg0: i32) -> (i32, i32) {
    %c0_i32 = arith.constant 0 : i32
    %c0_i32_0 = arith.constant 0 : i32
    %c0_i32_1 = arith.constant 0 : i32
    return %c0_i32, %c0_i32_0 : i32, i32
  }
  func.func @transform_4(%arg0: i32) -> (i32, i32) {
    %c0_i32 = arith.constant 0 : i32
    %c0_i32_0 = arith.constant 0 : i32
    %c0_i32_1 = arith.constant 0 : i32
    return %c0_i32, %c0_i32_0 : i32, i32
  }
  func.func @transform_5(%arg0: i32) -> (i32, i32) {
    %c0_i32 = arith.constant 0 : i32
    %c0_i32_0 = arith.constant 0 : i32
    %c0_i32_1 = arith.constant 0 : i32
    return %c0_i32, %c0_i32_0 : i32, i32
  }
  func.func @transform_6(%arg0: i32) -> (i32, i32) {
    %c0_i32 = arith.constant 0 : i32
    %c0_i32_0 = arith.constant 0 : i32
    %c0_i32_1 = arith.constant 0 : i32
    return %c0_i32, %c0_i32_0 : i32, i32
  }
  func.func @transform_7(%arg0: i32) -> (i32, i32) {
    %c0_i32 = arith.constant 0 : i32
    %c0_i32_0 = arith.constant 0 : i32
    %c0_i32_1 = arith.constant 0 : i32
    return %c0_i32, %c0_i32_0 : i32, i32
  }
  func.func @transform_8(%arg0: i32) -> (i32, i32) {
    %c0_i32 = arith.constant 0 : i32
    %c0_i32_0 = arith.constant 0 : i32
    %c0_i32_1 = arith.constant 0 : i32
    return %c0_i32, %c0_i32_0 : i32, i32
  }
  func.func @transform_9(%arg0: i32) -> (i32, i32) {
    %c0_i32 = arith.constant 0 : i32
    %c0_i32_0 = arith.constant 0 : i32
    return %arg0, %c0_i32 : i32, i32
  }
}

</mosaic_0001>

<llo_original>
// kernel: direct_pose_net_forward.1
$region0: #{direct_pose_net_forward.1}
  #allocation0 [shape = 'u32[]', space=smem, size = 0x4, offset = 0x4, fixed_abs, tag = 'smem constant byte address 0x4 - core index']
  #allocation1 [shape = 'u32[72,128]{1,0:T(1,128)}', space=vmem, size = 0x9000, scoped, tag = 'internal scratch']
  %s0 = inlined_call_operand.vmem [shape: f32[16,2048], index: 0, kind: input, shape index: {}]
  %s1 = inlined_call_operand.vmem [shape: f32[16,4], index: 1, kind: input, shape index: {}]
  %s2 = inlined_call_operand.vmem [shape: f32[2,128], index: 2, kind: input, shape index: {}]
  %s3 = inlined_call_operand.hbm [shape: bf16[2048,128], index: 3, kind: input, shape index: {}]
  %s4 = inlined_call_operand.vmem [shape: f32[4,256], index: 4, kind: input, shape index: {}]
  %s5 = inlined_call_operand.vmem [shape: bf16[128,1024], index: 5, kind: input, shape index: {}]
  %s6 = inlined_call_operand.hbm [shape: bf16[256,1024], index: 6, kind: input, shape index: {}]
  %s7 = inlined_call_operand.vmem [shape: f32[1,1152], index: 7, kind: input, shape index: {}]
  %s8 = inlined_call_operand.hbm [shape: bf16[1024,128], index: 8, kind: input, shape index: {}]
  %s9 = inlined_call_operand.vmem [shape: f32[16,128], index: 9, kind: output, shape index: {}]
  %s10 = sld [smem:[#allocation0]]
  $region81: #{direct_pose_net_forward.1} parent=0
    _
  %s12 = ssub.s32 1, %s10
  %s13 = scalar_select 0, %s12, %s10
  $region1: #{direct_pose_net_forward.1} parent=0
    #allocation2 [shape = 'u8[524288]{0}', space=vmem, size = 0x80000, scoped, tag = 'input window, operand 3, single buffered']
    #allocation3 [shape = 's32[2]{0}', space=sflag, size = 0x8, scoped, tag = 'scoped memory for direct_pose_net_forward.1']
    #allocation4 [shape = 'u8[524288]{0}', space=vmem, size = 0x80000, scoped, tag = 'input window, operand 6, single buffered']
    #allocation5 [shape = 's32[1]{0}', space=sflag, size = 0x4, scoped, tag = 'scoped memory for direct_pose_net_forward.1']
    #allocation6 [shape = 'u8[262144]{0}', space=vmem, size = 0x40000, scoped, tag = 'input window, operand 8, single buffered']
    %14 = vsyncpa [#allocation3], 0
    %15 = vsyncpa [#allocation5], 0
    loop: start=0, step=1, limit=4
    $region2: #{direct_pose_net_forward.1} parent=1 // loop_pre_header
      _
    $region3: #{direct_pose_net_forward.1} parent=1 // loop_header
      %s17 = sphi 0, %s21
      %p18 = scmp.ge.s32.totalorder %s17, 4
      %s27 = sphi 0, %s29
      %s30 = sphi 0, %s27
      %s31 = sphi 0, %s30
      %s47 = sphi 0, %s31
      %s53 = sphi 0, %s55
      %s56 = sphi 0, %s53
      %s57 = sphi 0, %s56
      %s73 = sphi 0, %s57
      %s77 = sphi 0, %s77
      %s79 = sphi 0, %s77
      %s80 = sphi 0, %s79
      %s94 = sphi 0, %s80
      %s98 = sphi 0, %s98
      %s100 = sphi 0, %s98
      %s101 = sphi 0, %s100
      %s115 = sphi 0, %s101
      %s119 = sphi 0, %s119
      %s121 = sphi 0, %s119
      %s122 = sphi 0, %s121
      %s136 = sphi 0, %s122
      %s140 = sphi 0, %s140
      %s142 = sphi 0, %s140
      %s143 = sphi 0, %s142
      %s157 = sphi 0, %s143
      %s161 = sphi 0, %s161
      %s163 = sphi 0, %s161
      %s164 = sphi 0, %s163
      %s178 = sphi 0, %s164
      %s182 = sphi 0, %s182
      %s184 = sphi 0, %s182
      %s185 = sphi 0, %s184
      %s199 = sphi 0, %s185
      %s203 = sphi 0, %s203
      %s205 = sphi 0, %s203
      %s206 = sphi 0, %s205
      %s220 = sphi 0, %s206
      %s226 = sphi 0, %s228
      %s229 = sphi 0, %s226
      %s230 = sphi 0, %s229
      %s246 = sphi 0, %s230
    $region4: #{direct_pose_net_forward.1} parent=1 // loop_header_branch
      %20 = sbr.rel (%p18) target = $region8
    $region5: #{direct_pose_net_forward.1} parent=1 // loop_body
      %s22 = ssub.s32 %s17, 1
      %s23 = ssub.s32 %s17, 2
      %s24 = sadd.s32 %s17, 1
      %s25 = ssub.s32 %s17, %s24
      %p26 = scmp.eq.s32.totalorder %s25, 0
      %s28 = sadd.s32 %s27, 1
      %s29 = scalar_select %p26, %s27, %s28
      %p32 = pneg %p26
      %p33 = scmp.eq.s32.totalorder %s17, 1
      %p34 = por %p32, %p33
      %p35 = scmp.ne.s32.totalorder %s27, %s30
      %p36 = scmp.eq.s32.totalorder %s17, 0
      %p37 = por %p35, %p36
      %p38 = scmp.ne.s32.totalorder %s27, %s30
      %p39 = scmp.eq.s32.totalorder %s22, 1
      %p40 = por %p38, %p39
      %p41 = scmp.ne.s32.totalorder %s30, %s31
      %p42 = scmp.eq.s32.totalorder %s22, 0
      %p43 = por %p41, %p42
      %p44 = scmp.ne.s32.totalorder %s30, %s31
      %p45 = scmp.eq.s32.totalorder %s23, 1
      %p46 = por %p44, %p45
      %p48 = scmp.ne.s32.totalorder %s31, %s47
      %p49 = scmp.eq.s32.totalorder %s23, 0
      %p50 = por %p48, %p49
      %s51 = ssub.s32 %s17, %s24
      %p52 = scmp.eq.s32.totalorder %s51, 0
      %s54 = sadd.s32 %s53, 1
      %s55 = scalar_select %p52, %s53, %s54
      %p58 = pneg %p52
      %p59 = scmp.eq.s32.totalorder %s17, 1
      %p60 = por %p58, %p59
      %p61 = scmp.ne.s32.totalorder %s53, %s56
      %p62 = scmp.eq.s32.totalorder %s17, 0
      %p63 = por %p61, %p62
      %p64 = scmp.ne.s32.totalorder %s53, %s56
      %p65 = scmp.eq.s32.totalorder %s22, 1
      %p66 = por %p64, %p65
      %p67 = scmp.ne.s32.totalorder %s56, %s57
      %p68 = scmp.eq.s32.totalorder %s22, 0
      %p69 = por %p67, %p68
      %p70 = scmp.ne.s32.totalorder %s56, %s57
      %p71 = scmp.eq.s32.totalorder %s23, 1
      %p72 = por %p70, %p71
      %p74 = scmp.ne.s32.totalorder %s57, %s73
      %p75 = scmp.eq.s32.totalorder %s23, 0
      %p76 = por %p74, %p75
      %s78 = sadd.s32 %s77, 1
      %p81 = scmp.eq.s32.totalorder %s17, 1
      %p82 = scmp.ne.s32.totalorder %s77, %s79
      %p83 = scmp.eq.s32.totalorder %s17, 0
      %p84 = por %p82, %p83
      %p85 = scmp.ne.s32.totalorder %s77, %s79
      %p86 = scmp.eq.s32.totalorder %s22, 1
      %p87 = por %p85, %p86
      %p88 = scmp.ne.s32.totalorder %s79, %s80
      %p89 = scmp.eq.s32.totalorder %s22, 0
      %p90 = por %p88, %p89
      %p91 = scmp.ne.s32.totalorder %s79, %s80
      %p92 = scmp.eq.s32.totalorder %s23, 1
      %p93 = por %p91, %p92
      %p95 = scmp.ne.s32.totalorder %s80, %s94
      %p96 = scmp.eq.s32.totalorder %s23, 0
      %p97 = por %p95, %p96
      %s99 = sadd.s32 %s98, 1
      %p102 = scmp.eq.s32.totalorder %s17, 1
      %p103 = scmp.ne.s32.totalorder %s98, %s100
      %p104 = scmp.eq.s32.totalorder %s17, 0
      %p105 = por %p103, %p104
      %p106 = scmp.ne.s32.totalorder %s98, %s100
      %p107 = scmp.eq.s32.totalorder %s22, 1
      %p108 = por %p106, %p107
      %p109 = scmp.ne.s32.totalorder %s100, %s101
      %p110 = scmp.eq.s32.totalorder %s22, 0
      %p111 = por %p109, %p110
      %p112 = scmp.ne.s32.totalorder %s100, %s101
      %p113 = scmp.eq.s32.totalorder %s23, 1
      %p114 = por %p112, %p113
      %p116 = scmp.ne.s32.totalorder %s101, %s115
      %p117 = scmp.eq.s32.totalorder %s23, 0
      %p118 = por %p116, %p117
      %s120 = sadd.s32 %s119, 1
      %p123 = scmp.eq.s32.totalorder %s17, 1
      %p124 = scmp.ne.s32.totalorder %s119, %s121
      %p125 = scmp.eq.s32.totalorder %s17, 0
      %p126 = por %p124, %p125
      %p127 = scmp.ne.s32.totalorder %s119, %s121
      %p128 = scmp.eq.s32.totalorder %s22, 1
      %p129 = por %p127, %p128
      %p130 = scmp.ne.s32.totalorder %s121, %s122
      %p131 = scmp.eq.s32.totalorder %s22, 0
      %p132 = por %p130, %p131
      %p133 = scmp.ne.s32.totalorder %s121, %s122
      %p134 = scmp.eq.s32.totalorder %s23, 1
      %p135 = por %p133, %p134
      %p137 = scmp.ne.s32.totalorder %s122, %s136
      %p138 = scmp.eq.s32.totalorder %s23, 0
      %p139 = por %p137, %p138
      %s141 = sadd.s32 %s140, 1
      %p144 = scmp.eq.s32.totalorder %s17, 1
      %p145 = scmp.ne.s32.totalorder %s140, %s142
      %p146 = scmp.eq.s32.totalorder %s17, 0
      %p147 = por %p145, %p146
      %p148 = scmp.ne.s32.totalorder %s140, %s142
      %p149 = scmp.eq.s32.totalorder %s22, 1
      %p150 = por %p148, %p149
      %p151 = scmp.ne.s32.totalorder %s142, %s143
      %p152 = scmp.eq.s32.totalorder %s22, 0
      %p153 = por %p151, %p152
      %p154 = scmp.ne.s32.totalorder %s142, %s143
      %p155 = scmp.eq.s32.totalorder %s23, 1
      %p156 = por %p154, %p155
      %p158 = scmp.ne.s32.totalorder %s143, %s157
      %p159 = scmp.eq.s32.totalorder %s23, 0
      %p160 = por %p158, %p159
      %s162 = sadd.s32 %s161, 1
      %p165 = scmp.eq.s32.totalorder %s17, 1
      %p166 = scmp.ne.s32.totalorder %s161, %s163
      %p167 = scmp.eq.s32.totalorder %s17, 0
      %p168 = por %p166, %p167
      %p169 = scmp.ne.s32.totalorder %s161, %s163
      %p170 = scmp.eq.s32.totalorder %s22, 1
      %p171 = por %p169, %p170
      %p172 = scmp.ne.s32.totalorder %s163, %s164
      %p173 = scmp.eq.s32.totalorder %s22, 0
      %p174 = por %p172, %p173
      %p175 = scmp.ne.s32.totalorder %s163, %s164
      %p176 = scmp.eq.s32.totalorder %s23, 1
      %p177 = por %p175, %p176
      %p179 = scmp.ne.s32.totalorder %s164, %s178
      %p180 = scmp.eq.s32.totalorder %s23, 0
      %p181 = por %p179, %p180
      %s183 = sadd.s32 %s182, 1
      %p186 = scmp.eq.s32.totalorder %s17, 1
      %p187 = scmp.ne.s32.totalorder %s182, %s184
      %p188 = scmp.eq.s32.totalorder %s17, 0
      %p189 = por %p187, %p188
      %p190 = scmp.ne.s32.totalorder %s182, %s184
      %p191 = scmp.eq.s32.totalorder %s22, 1
      %p192 = por %p190, %p191
      %p193 = scmp.ne.s32.totalorder %s184, %s185
      %p194 = scmp.eq.s32.totalorder %s22, 0
      %p195 = por %p193, %p194
      %p196 = scmp.ne.s32.totalorder %s184, %s185
      %p197 = scmp.eq.s32.totalorder %s23, 1
      %p198 = por %p196, %p197
      %p200 = scmp.ne.s32.totalorder %s185, %s199
      %p201 = scmp.eq.s32.totalorder %s23, 0
      %p202 = por %p200, %p201
      %s204 = sadd.s32 %s203, 1
      %p207 = scmp.eq.s32.totalorder %s17, 1
      %p208 = scmp.ne.s32.totalorder %s203, %s205
      %p209 = scmp.eq.s32.totalorder %s17, 0
      %p210 = por %p208, %p209
      %p211 = scmp.ne.s32.totalorder %s203, %s205
      %p212 = scmp.eq.s32.totalorder %s22, 1
      %p213 = por %p211, %p212
      %p214 = scmp.ne.s32.totalorder %s205, %s206
      %p215 = scmp.eq.s32.totalorder %s22, 0
      %p216 = por %p214, %p215
      %p217 = scmp.ne.s32.totalorder %s205, %s206
      %p218 = scmp.eq.s32.totalorder %s23, 1
      %p219 = por %p217, %p218
      %p221 = scmp.ne.s32.totalorder %s206, %s220
      %p222 = scmp.eq.s32.totalorder %s23, 0
      %p223 = por %p221, %p222
      %s224 = ssub.s32 %s17, %s24
      %p225 = scmp.eq.s32.totalorder %s224, 0
      %s227 = sadd.s32 %s226, 1
      %s228 = scalar_select %p225, %s226, %s227
      %p231 = pneg %p225
      %p232 = scmp.eq.s32.totalorder %s17, 1
      %p233 = por %p231, %p232
      %p234 = scmp.ne.s32.totalorder %s226, %s229
      %p235 = scmp.eq.s32.totalorder %s17, 0
      %p236 = por %p234, %p235
      %p237 = scmp.ne.s32.totalorder %s226, %s229
      %p238 = scmp.eq.s32.totalorder %s22, 1
      %p239 = por %p237, %p238
      %p240 = scmp.ne.s32.totalorder %s229, %s230
      %p241 = scmp.eq.s32.totalorder %s22, 0
      %p242 = por %p240, %p241
      %p243 = scmp.ne.s32.totalorder %s229, %s230
      %p244 = scmp.eq.s32.totalorder %s23, 1
      %p245 = por %p243, %p244
      %p247 = scmp.ne.s32.totalorder %s230, %s246
      %p248 = scmp.eq.s32.totalorder %s23, 0
      %p249 = por %p247, %p248
      %p250 = scmp.le.s32.totalorder 1, %s17
      %p251 = scmp.lt.s32.totalorder %s17, 3
      %p252 = pnand %p250, %p251
      %p253 = pneg %p252
      // Predicated region
      $region9: #{direct_pose_net_forward.1} parent=5 // pred_check
        _
      $region10: #{direct_pose_net_forward.1} parent=5 // pred_check_branch
        %255 = sbr.rel (%p252) target = $region12
      $region11: #{direct_pose_net_forward.1} parent=5 // pred_region
        %s256 = ssub.s32 %s17, 1
        // Predicated region
        $region13: #{direct_pose_net_forward.1} parent=11 // pred_check
          %p257 = pneg %p90
        $region14: #{direct_pose_net_forward.1} parent=11 // pred_check_branch
          %259 = sbr.rel (%p257) target = $region16
        $region15: #{direct_pose_net_forward.1} parent=11 // pred_region
          _
        $region16: #{direct_pose_net_forward.1} parent=11 // pred_fallthru
          _
        // Predicated region
        $region17: #{direct_pose_net_forward.1} parent=11 // pred_check
          %p260 = pneg %p111
        $region18: #{direct_pose_net_forward.1} parent=11 // pred_check_branch
          %262 = sbr.rel (%p260) target = $region20
        $region19: #{direct_pose_net_forward.1} parent=11 // pred_region
          %264 = vsyncadd [#allocation3], 0
          %s265 = sshll.u32 %s3, 4
          %s266 = int_to_ptr.hbm [resolvable:$true] %s265
          %s267 = sshll.u32 [#allocation2], 4
          %s268 = int_to_ptr.vmem [resolvable:$true] %s267
          %273 = dma.hbm_to_vmem [thread:$0]  %s266, 16384, %s268, [#allocation3], 64, 64, 4
        $region20: #{direct_pose_net_forward.1} parent=11 // pred_fallthru
          _
        // Predicated region
        $region21: #{direct_pose_net_forward.1} parent=11 // pred_check
          %p274 = pneg %p132
        $region22: #{direct_pose_net_forward.1} parent=11 // pred_check_branch
          %276 = sbr.rel (%p274) target = $region24
        $region23: #{direct_pose_net_forward.1} parent=11 // pred_region
          _
        $region24: #{direct_pose_net_forward.1} parent=11 // pred_fallthru
          _
        // Predicated region
        $region25: #{direct_pose_net_forward.1} parent=11 // pred_check
          %p277 = pneg %p153
        $region26: #{direct_pose_net_forward.1} parent=11 // pred_check_branch
          %279 = sbr.rel (%p277) target = $region28
        $region27: #{direct_pose_net_forward.1} parent=11 // pred_region
          _
        $region28: #{direct_pose_net_forward.1} parent=11 // pred_fallthru
          _
        // Predicated region
        $region29: #{direct_pose_net_forward.1} parent=11 // pred_check
          %p280 = pneg %p174
        $region30: #{direct_pose_net_forward.1} parent=11 // pred_check_branch
          %282 = sbr.rel (%p280) target = $region32
        $region31: #{direct_pose_net_forward.1} parent=11 // pred_region
          %284 = vsyncadd [#allocation5], 0
          %s285 = sshll.u32 %s6, 4
          %s286 = int_to_ptr.hbm [resolvable:$true] %s285
          %s287 = sshll.u32 [#allocation4], 4
          %s288 = int_to_ptr.vmem [resolvable:$true] %s287
          %293 = dma.hbm_to_vmem [thread:$0]  %s286, 16384, %s288, [#allocation5], 512, 512, 32
        $region32: #{direct_pose_net_forward.1} parent=11 // pred_fallthru
          _
        // Predicated region
        $region33: #{direct_pose_net_forward.1} parent=11 // pred_check
          %p294 = pneg %p195
        $region34: #{direct_pose_net_forward.1} parent=11 // pred_check_branch
          %296 = sbr.rel (%p294) target = $region36
        $region35: #{direct_pose_net_forward.1} parent=11 // pred_region
          _
        $region36: #{direct_pose_net_forward.1} parent=11 // pred_fallthru
          _
        // Predicated region
        $region37: #{direct_pose_net_forward.1} parent=11 // pred_check
          %p297 = pneg %p216
        $region38: #{direct_pose_net_forward.1} parent=11 // pred_check_branch
          %299 = sbr.rel (%p297) target = $region40
        $region39: #{direct_pose_net_forward.1} parent=11 // pred_region
          %301 = vsyncadd [#allocation5], 0
          %s302 = sshll.u32 %s8, 4
          %s303 = int_to_ptr.hbm [resolvable:$true] %s302
          %s304 = sshll.u32 [#allocation6], 4
          %s305 = int_to_ptr.vmem [resolvable:$true] %s304
          %310 = dma.hbm_to_vmem [thread:$0]  %s303, 8192, %s305, [#allocation5], 64, 64, 4
        $region40: #{direct_pose_net_forward.1} parent=11 // pred_fallthru
          _
      $region12: #{direct_pose_net_forward.1} parent=5 // pred_fallthru
        _
      %p311 = scmp.lt.s32.totalorder %s17, 2
      // Predicated region
      $region41: #{direct_pose_net_forward.1} parent=5 // pred_check
        %p312 = pneg %p311
      $region42: #{direct_pose_net_forward.1} parent=5 // pred_check_branch
        %314 = sbr.rel (%p312) target = $region44
      $region43: #{direct_pose_net_forward.1} parent=5 // pred_region
        // Predicated region
        $region45: #{direct_pose_net_forward.1} parent=43 // pred_check
          %p315 = pneg %p37
        $region46: #{direct_pose_net_forward.1} parent=43 // pred_check_branch
          %317 = sbr.rel (%p315) target = $region48
        $region47: #{direct_pose_net_forward.1} parent=43 // pred_region
          %p318 = scmp.lt.s32.totalorder %s17, 1
          %s319 = scalar_select %p318, %s17, 1
          %s320 = smul.addr %s319, 16
          %s321 = smul.addr %s320, 8
          %s322 = scalar_lea.vmem %s0, %s321
        $region48: #{direct_pose_net_forward.1} parent=43 // pred_fallthru
          _
        // Predicated region
        $region49: #{direct_pose_net_forward.1} parent=43 // pred_check
          %p323 = pneg %p63
        $region50: #{direct_pose_net_forward.1} parent=43 // pred_check_branch
          %325 = sbr.rel (%p323) target = $region52
        $region51: #{direct_pose_net_forward.1} parent=43 // pred_region
          %p326 = scmp.lt.s32.totalorder %s17, 1
          %s327 = scalar_select %p326, %s17, 1
          %s328 = smul.addr %s327, 8
          %s329 = scalar_lea.vmem %s1, %s328
        $region52: #{direct_pose_net_forward.1} parent=43 // pred_fallthru
          _
      $region44: #{direct_pose_net_forward.1} parent=5 // pred_fallthru
        _
      %p330 = scmp.le.s32.totalorder 1, %s17
      %p331 = scmp.lt.s32.totalorder %s17, 3
      %p332 = pnand %p330, %p331
      %p333 = pneg %p332
      // Predicated region
      $region53: #{direct_pose_net_forward.1} parent=5 // pred_check
        _
      $region54: #{direct_pose_net_forward.1} parent=5 // pred_check_branch
        %335 = sbr.rel (%p332) target = $region56
      $region55: #{direct_pose_net_forward.1} parent=5 // pred_region
        %s336 = ssub.s32 %s17, 1
        // Predicated region
        $region57: #{direct_pose_net_forward.1} parent=55 // pred_check
          %p337 = pneg %p111
        $region58: #{direct_pose_net_forward.1} parent=55 // pred_check_branch
          %339 = sbr.rel (%p337) target = $region60
        $region59: #{direct_pose_net_forward.1} parent=55 // pred_region
          %341 = dma.done [#allocation3], 16384
        $region60: #{direct_pose_net_forward.1} parent=55 // pred_fallthru
          _
        // Predicated region
        $region61: #{direct_pose_net_forward.1} parent=55 // pred_check
          %p342 = pneg %p174
        $region62: #{direct_pose_net_forward.1} parent=55 // pred_check_branch
          %344 = sbr.rel (%p342) target = $region64
        $region63: #{direct_pose_net_forward.1} parent=55 // pred_region
          %346 = dma.done [#allocation5], 16384
        $region64: #{direct_pose_net_forward.1} parent=55 // pred_fallthru
          _
        // Predicated region
        $region65: #{direct_pose_net_forward.1} parent=55 // pred_check
          %p347 = pneg %p216
        $region66: #{direct_pose_net_forward.1} parent=55 // pred_check_branch
          %349 = sbr.rel (%p347) target = $region68
        $region67: #{direct_pose_net_forward.1} parent=55 // pred_region
          %351 = dma.done [#allocation5], 8192
        $region68: #{direct_pose_net_forward.1} parent=55 // pred_fallthru
          _
        %p352 = scmp.lt.s32.totalorder %s22, 1
        %s353 = scalar_select %p352, %s22, 1
        %s354 = smul.addr %s353, 16
        %s355 = smul.addr %s354, 8
        %s356 = scalar_lea.vmem %s0, %s355
        %p357 = pneg %p43
        %p358 = pneg %p40
        %p359 = scmp.lt.s32.totalorder %s22, 1
        %s360 = scalar_select %p359, %s22, 1
        %s361 = smul.addr %s360, 8
        %s362 = scalar_lea.vmem %s1, %s361
        %p363 = pneg %p69
        %p364 = pneg %p66
        %p365 = pneg %p90
        %p366 = pneg %p87
        %p367 = pneg %p111
        %p368 = pneg %p108
        %p369 = pneg %p132
        %p370 = pneg %p129
        %p371 = pneg %p153
        %p372 = pneg %p150
        %p373 = pneg %p174
        %p374 = pneg %p171
        %p375 = pneg %p195
        %p376 = pneg %p192
        %p377 = pneg %p216
        %p378 = pneg %p213
        %p379 = pneg %p242
        %p380 = pneg %p239
        %p381 = scmp.lt.s32.totalorder %s22, 1
        %s382 = scalar_select %p381, %s22, 1
        %s383 = smul.addr %s382, 8
        %s384 = scalar_lea.vmem %s9, %s383
        %p385 = scmp.lt.s32.totalorder %s22, 1
        %s386 = scalar_select %p385, %s22, 1
        %s387 = smul.addr %s386, 16
        %s388 = smul.addr %s387, 8
        %s389 = scalar_lea.vmem %s0, %s388
        %p390 = scmp.lt.s32.totalorder %s22, 1
        %s391 = scalar_select %p390, %s22, 1
        %s392 = smul.addr %s391, 8
        %s393 = scalar_lea.vmem %s1, %s392
        %p394 = scmp.lt.s32.totalorder %s22, 1
        %s395 = scalar_select %p394, %s22, 1
        %s396 = smul.addr %s395, 8
        %s397 = scalar_lea.vmem %s9, %s396
        %v398 = vld [vmem:[%s2] sm:$0x1]
        %v399 = vld [vmem:[%s2 + $0x1] sm:$0x1]
        %v400 = vld [vmem:[%s389] sm:$0xff]
        %v401 = vld [vmem:[%s389 + $0x8] sm:$0xff]
        %v402 = vld [vmem:[%s389 + $0x10] sm:$0xff]
        %v403 = vld [vmem:[%s389 + $0x18] sm:$0xff]
        %v404 = vld [vmem:[%s389 + $0x20] sm:$0xff]
        %v405 = vld [vmem:[%s389 + $0x28] sm:$0xff]
        %v406 = vld [vmem:[%s389 + $0x30] sm:$0xff]
        %v407 = vld [vmem:[%s389 + $0x38] sm:$0xff]
        %v408 = vld [vmem:[%s389 + $0x40] sm:$0xff]
        %v409 = vld [vmem:[%s389 + $0x48] sm:$0xff]
        %v410 = vld [vmem:[%s389 + $0x50] sm:$0xff]
        %v411 = vld [vmem:[%s389 + $0x58] sm:$0xff]
        %v412 = vld [vmem:[%s389 + $0x60] sm:$0xff]
        %v413 = vld [vmem:[%s389 + $0x68] sm:$0xff]
        %v414 = vld [vmem:[%s389 + $0x70] sm:$0xff]
        %v415 = vld [vmem:[%s389 + $0x78] sm:$0xff]
        %416 = vadd.xlane.f32.xlu0 %v400
        %v417 = vpop.xlane.xlu0 %416
        %v418 = vrcp.pop 128.0
        %v419 = vmul.f32 128.0, %v418
        %v420 = vsub.f32 1.0, %v419
        %v421 = vmul.f32 %v418, %v420
        %v422 = vadd.f32 %v418, %v421
        %vm423 = vweird.f32 %v418
        %v424 = vsel %vm423, %v418, %v422
        %v425 = vmul.f32 %v417, %v424
        %v426 = vsub.f32 %v400, %v425
        %v427 = vmul.f32 %v426, %v426
        %428 = vadd.xlane.f32.xlu0 %v427
        %v429 = vpop.xlane.xlu0 %428
        %v430 = vmul.f32 %v429, %v424
        %v431 = vadd.f32 %v430, 1e-06
        %v432 = vrsqrt.pop %v431
        %v433 = vmul.f32 %v432, %v431
        %v434 = vmul.f32 %v433, %v432
        %v435 = vmul.f32 0.5, %v434
        %v436 = vsub.f32 1.5, %v435
        %v437 = vmul.f32 %v432, %v436
        %vm438 = vweird.f32 %v431
        %vm439 = vweird.f32 %v432
        %vm440 = vmor %vm438, %vm439
        %v441 = vsel %vm440, %v432, %v437
        %v442 = vmul.f32 %v426, %v441
        %v443 = vperm.slane %v398, 0
        %v444 = vmul.f32 %v442, %v443
        %v445 = vperm.slane %v399, 0
        %v446 = vadd.f32 %v444, %v445
        %447 = vadd.xlane.f32.xlu0 %v401
        %v448 = vpop.xlane.xlu0 %447
        %v449 = vmul.f32 %v448, %v424
        %v450 = vsub.f32 %v401, %v449
        %v451 = vmul.f32 %v450, %v450
        %452 = vadd.xlane.f32.xlu0 %v451
        %v453 = vpop.xlane.xlu0 %452
        %v454 = vmul.f32 %v453, %v424
        %v455 = vadd.f32 %v454, 1e-06
        %v456 = vrsqrt.pop %v455
        %v457 = vmul.f32 %v456, %v455
        %v458 = vmul.f32 %v457, %v456
        %v459 = vmul.f32 0.5, %v458
        %v460 = vsub.f32 1.5, %v459
        %v461 = vmul.f32 %v456, %v460
        %vm462 = vweird.f32 %v455
        %vm463 = vweird.f32 %v456
        %vm464 = vmor %vm462, %vm463
        %v465 = vsel %vm464, %v456, %v461
        %v466 = vmul.f32 %v450, %v465
        %v467 = vmul.f32 %v466, %v443
        %v468 = vadd.f32 %v467, %v445
        %469 = vadd.xlane.f32.xlu0 %v402
        %v470 = vpop.xlane.xlu0 %469
        %v471 = vmul.f32 %v470, %v424
        %v472 = vsub.f32 %v402, %v471
        %v473 = vmul.f32 %v472, %v472
        %474 = vadd.xlane.f32.xlu0 %v473
        %v475 = vpop.xlane.xlu0 %474
        %v476 = vmul.f32 %v475, %v424
        %v477 = vadd.f32 %v476, 1e-06
        %v478 = vrsqrt.pop %v477
        %v479 = vmul.f32 %v478, %v477
        %v480 = vmul.f32 %v479, %v478
        %v481 = vmul.f32 0.5, %v480
        %v482 = vsub.f32 1.5, %v481
        %v483 = vmul.f32 %v478, %v482
        %vm484 = vweird.f32 %v477
        %vm485 = vweird.f32 %v478
        %vm486 = vmor %vm484, %vm485
        %v487 = vsel %vm486, %v478, %v483
        %v488 = vmul.f32 %v472, %v487
        %v489 = vmul.f32 %v488, %v443
        %v490 = vadd.f32 %v489, %v445
        %491 = vadd.xlane.f32.xlu0 %v403
        %v492 = vpop.xlane.xlu0 %491
        %v493 = vmul.f32 %v492, %v424
        %v494 = vsub.f32 %v403, %v493
        %v495 = vmul.f32 %v494, %v494
        %496 = vadd.xlane.f32.xlu0 %v495
        %v497 = vpop.xlane.xlu0 %496
        %v498 = vmul.f32 %v497, %v424
        %v499 = vadd.f32 %v498, 1e-06
        %v500 = vrsqrt.pop %v499
        %v501 = vmul.f32 %v500, %v499
        %v502 = vmul.f32 %v501, %v500
        %v503 = vmul.f32 0.5, %v502
        %v504 = vsub.f32 1.5, %v503
        %v505 = vmul.f32 %v500, %v504
        %vm506 = vweird.f32 %v499
        %vm507 = vweird.f32 %v500
        %vm508 = vmor %vm506, %vm507
        %v509 = vsel %vm508, %v500, %v505
        %v510 = vmul.f32 %v494, %v509
        %v511 = vmul.f32 %v510, %v443
        %v512 = vadd.f32 %v511, %v445
        %513 = vadd.xlane.f32.xlu0 %v404
        %v514 = vpop.xlane.xlu0 %513
        %v515 = vmul.f32 %v514, %v424
        %v516 = vsub.f32 %v404, %v515
        %v517 = vmul.f32 %v516, %v516
        %518 = vadd.xlane.f32.xlu0 %v517
        %v519 = vpop.xlane.xlu0 %518
        %v520 = vmul.f32 %v519, %v424
        %v521 = vadd.f32 %v520, 1e-06
        %v522 = vrsqrt.pop %v521
        %v523 = vmul.f32 %v522, %v521
        %v524 = vmul.f32 %v523, %v522
        %v525 = vmul.f32 0.5, %v524
        %v526 = vsub.f32 1.5, %v525
        %v527 = vmul.f32 %v522, %v526
        %vm528 = vweird.f32 %v521
        %vm529 = vweird.f32 %v522
        %vm530 = vmor %vm528, %vm529
        %v531 = vsel %vm530, %v522, %v527
        %v532 = vmul.f32 %v516, %v531
        %v533 = vmul.f32 %v532, %v443
        %v534 = vadd.f32 %v533, %v445
        %535 = vadd.xlane.f32.xlu0 %v405
        %v536 = vpop.xlane.xlu0 %535
        %v537 = vmul.f32 %v536, %v424
        %v538 = vsub.f32 %v405, %v537
        %v539 = vmul.f32 %v538, %v538
        %540 = vadd.xlane.f32.xlu0 %v539
        %v541 = vpop.xlane.xlu0 %540
        %v542 = vmul.f32 %v541, %v424
        %v543 = vadd.f32 %v542, 1e-06
        %v544 = vrsqrt.pop %v543
        %v545 = vmul.f32 %v544, %v543
        %v546 = vmul.f32 %v545, %v544
        %v547 = vmul.f32 0.5, %v546
        %v548 = vsub.f32 1.5, %v547
        %v549 = vmul.f32 %v544, %v548
        %vm550 = vweird.f32 %v543
        %vm551 = vweird.f32 %v544
        %vm552 = vmor %vm550, %vm551
        %v553 = vsel %vm552, %v544, %v549
        %v554 = vmul.f32 %v538, %v553
        %v555 = vmul.f32 %v554, %v443
        %v556 = vadd.f32 %v555, %v445
        %557 = vadd.xlane.f32.xlu0 %v406
        %v558 = vpop.xlane.xlu0 %557
        %v559 = vmul.f32 %v558, %v424
        %v560 = vsub.f32 %v406, %v559
        %v561 = vmul.f32 %v560, %v560
        %562 = vadd.xlane.f32.xlu0 %v561
        %v563 = vpop.xlane.xlu0 %562
        %v564 = vmul.f32 %v563, %v424
        %v565 = vadd.f32 %v564, 1e-06
        %v566 = vrsqrt.pop %v565
        %v567 = vmul.f32 %v566, %v565
        %v568 = vmul.f32 %v567, %v566
        %v569 = vmul.f32 0.5, %v568
        %v570 = vsub.f32 1.5, %v569
        %v571 = vmul.f32 %v566, %v570
        %vm572 = vweird.f32 %v565
        %vm573 = vweird.f32 %v566
        %vm574 = vmor %vm572, %vm573
        %v575 = vsel %vm574, %v566, %v571
        %v576 = vmul.f32 %v560, %v575
        %v577 = vmul.f32 %v576, %v443
        %v578 = vadd.f32 %v577, %v445
        %579 = vadd.xlane.f32.xlu0 %v407
        %v580 = vpop.xlane.xlu0 %579
        %v581 = vmul.f32 %v580, %v424
        %v582 = vsub.f32 %v407, %v581
        %v583 = vmul.f32 %v582, %v582
        %584 = vadd.xlane.f32.xlu0 %v583
        %v585 = vpop.xlane.xlu0 %584
        %v586 = vmul.f32 %v585, %v424
        %v587 = vadd.f32 %v586, 1e-06
        %v588 = vrsqrt.pop %v587
        %v589 = vmul.f32 %v588, %v587
        %v590 = vmul.f32 %v589, %v588
        %v591 = vmul.f32 0.5, %v590
        %v592 = vsub.f32 1.5, %v591
        %v593 = vmul.f32 %v588, %v592
        %vm594 = vweird.f32 %v587
        %vm595 = vweird.f32 %v588
        %vm596 = vmor %vm594, %vm595
        %v597 = vsel %vm596, %v588, %v593
        %v598 = vmul.f32 %v582, %v597
        %v599 = vmul.f32 %v598, %v443
        %v600 = vadd.f32 %v599, %v445
        %601 = vadd.xlane.f32.xlu0 %v408
        %v602 = vpop.xlane.xlu0 %601
        %v603 = vmul.f32 %v602, %v424
        %v604 = vsub.f32 %v408, %v603
        %v605 = vmul.f32 %v604, %v604
        %606 = vadd.xlane.f32.xlu0 %v605
        %v607 = vpop.xlane.xlu0 %606
        %v608 = vmul.f32 %v607, %v424
        %v609 = vadd.f32 %v608, 1e-06
        %v610 = vrsqrt.pop %v609
        %v611 = vmul.f32 %v610, %v609
        %v612 = vmul.f32 %v611, %v610
        %v613 = vmul.f32 0.5, %v612
        %v614 = vsub.f32 1.5, %v613
        %v615 = vmul.f32 %v610, %v614
        %vm616 = vweird.f32 %v609
        %vm617 = vweird.f32 %v610
        %vm618 = vmor %vm616, %vm617
        %v619 = vsel %vm618, %v610, %v615
        %v620 = vmul.f32 %v604, %v619
        %v621 = vmul.f32 %v620, %v443
        %v622 = vadd.f32 %v621, %v445
        %623 = vadd.xlane.f32.xlu0 %v409
        %v624 = vpop.xlane.xlu0 %623
        %v625 = vmul.f32 %v624, %v424
        %v626 = vsub.f32 %v409, %v625
        %v627 = vmul.f32 %v626, %v626
        %628 = vadd.xlane.f32.xlu0 %v627
        %v629 = vpop.xlane.xlu0 %628
        %v630 = vmul.f32 %v629, %v424
        %v631 = vadd.f32 %v630, 1e-06
        %v632 = vrsqrt.pop %v631
        %v633 = vmul.f32 %v632, %v631
        %v634 = vmul.f32 %v633, %v632
        %v635 = vmul.f32 0.5, %v634
        %v636 = vsub.f32 1.5, %v635
        %v637 = vmul.f32 %v632, %v636
        %vm638 = vweird.f32 %v631
        %vm639 = vweird.f32 %v632
        %vm640 = vmor %vm638, %vm639
        %v641 = vsel %vm640, %v632, %v637
        %v642 = vmul.f32 %v626, %v641
        %v643 = vmul.f32 %v642, %v443
        %v644 = vadd.f32 %v643, %v445
        %645 = vadd.xlane.f32.xlu0 %v410
        %v646 = vpop.xlane.xlu0 %645
        %v647 = vmul.f32 %v646, %v424
        %v648 = vsub.f32 %v410, %v647
        %v649 = vmul.f32 %v648, %v648
        %650 = vadd.xlane.f32.xlu0 %v649
        %v651 = vpop.xlane.xlu0 %650
        %v652 = vmul.f32 %v651, %v424
        %v653 = vadd.f32 %v652, 1e-06
        %v654 = vrsqrt.pop %v653
        %v655 = vmul.f32 %v654, %v653
        %v656 = vmul.f32 %v655, %v654
        %v657 = vmul.f32 0.5, %v656
        %v658 = vsub.f32 1.5, %v657
        %v659 = vmul.f32 %v654, %v658
        %vm660 = vweird.f32 %v653
        %vm661 = vweird.f32 %v654
        %vm662 = vmor %vm660, %vm661
        %v663 = vsel %vm662, %v654, %v659
        %v664 = vmul.f32 %v648, %v663
        %v665 = vmul.f32 %v664, %v443
        %v666 = vadd.f32 %v665, %v445
        %667 = vadd.xlane.f32.xlu0 %v411
        %v668 = vpop.xlane.xlu0 %667
        %v669 = vmul.f32 %v668, %v424
        %v670 = vsub.f32 %v411, %v669
        %v671 = vmul.f32 %v670, %v670
        %672 = vadd.xlane.f32.xlu0 %v671
        %v673 = vpop.xlane.xlu0 %672
        %v674 = vmul.f32 %v673, %v424
        %v675 = vadd.f32 %v674, 1e-06
        %v676 = vrsqrt.pop %v675
        %v677 = vmul.f32 %v676, %v675
        %v678 = vmul.f32 %v677, %v676
        %v679 = vmul.f32 0.5, %v678
        %v680 = vsub.f32 1.5, %v679
        %v681 = vmul.f32 %v676, %v680
        %vm682 = vweird.f32 %v675
        %vm683 = vweird.f32 %v676
        %vm684 = vmor %vm682, %vm683
        %v685 = vsel %vm684, %v676, %v681
        %v686 = vmul.f32 %v670, %v685
        %v687 = vmul.f32 %v686, %v443
        %v688 = vadd.f32 %v687, %v445
        %689 = vadd.xlane.f32.xlu0 %v412
        %v690 = vpop.xlane.xlu0 %689
        %v691 = vmul.f32 %v690, %v424
        %v692 = vsub.f32 %v412, %v691
        %v693 = vmul.f32 %v692, %v692
        %694 = vadd.xlane.f32.xlu0 %v693
        %v695 = vpop.xlane.xlu0 %694
        %v696 = vmul.f32 %v695, %v424
        %v697 = vadd.f32 %v696, 1e-06
        %v698 = vrsqrt.pop %v697
        %v699 = vmul.f32 %v698, %v697
        %v700 = vmul.f32 %v699, %v698
        %v701 = vmul.f32 0.5, %v700
        %v702 = vsub.f32 1.5, %v701
        %v703 = vmul.f32 %v698, %v702
        %vm704 = vweird.f32 %v697
        %vm705 = vweird.f32 %v698
        %vm706 = vmor %vm704, %vm705
        %v707 = vsel %vm706, %v698, %v703
        %v708 = vmul.f32 %v692, %v707
        %v709 = vmul.f32 %v708, %v443
        %v710 = vadd.f32 %v709, %v445
        %711 = vadd.xlane.f32.xlu0 %v413
        %v712 = vpop.xlane.xlu0 %711
        %v713 = vmul.f32 %v712, %v424
        %v714 = vsub.f32 %v413, %v713
        %v715 = vmul.f32 %v714, %v714
        %716 = vadd.xlane.f32.xlu0 %v715
        %v717 = vpop.xlane.xlu0 %716
        %v718 = vmul.f32 %v717, %v424
        %v719 = vadd.f32 %v718, 1e-06
        %v720 = vrsqrt.pop %v719
        %v721 = vmul.f32 %v720, %v719
        %v722 = vmul.f32 %v721, %v720
        %v723 = vmul.f32 0.5, %v722
        %v724 = vsub.f32 1.5, %v723
        %v725 = vmul.f32 %v720, %v724
        %vm726 = vweird.f32 %v719
        %vm727 = vweird.f32 %v720
        %vm728 = vmor %vm726, %vm727
        %v729 = vsel %vm728, %v720, %v725
        %v730 = vmul.f32 %v714, %v729
        %v731 = vmul.f32 %v730, %v443
        %v732 = vadd.f32 %v731, %v445
        %733 = vadd.xlane.f32.xlu0 %v414
        %v734 = vpop.xlane.xlu0 %733
        %v735 = vmul.f32 %v734, %v424
        %v736 = vsub.f32 %v414, %v735
        %v737 = vmul.f32 %v736, %v736
        %738 = vadd.xlane.f32.xlu0 %v737
        %v739 = vpop.xlane.xlu0 %738
        %v740 = vmul.f32 %v739, %v424
        %v741 = vadd.f32 %v740, 1e-06
        %v742 = vrsqrt.pop %v741
        %v743 = vmul.f32 %v742, %v741
        %v744 = vmul.f32 %v743, %v742
        %v745 = vmul.f32 0.5, %v744
        %v746 = vsub.f32 1.5, %v745
        %v747 = vmul.f32 %v742, %v746
        %vm748 = vweird.f32 %v741
        %vm749 = vweird.f32 %v742
        %vm750 = vmor %vm748, %vm749
        %v751 = vsel %vm750, %v742, %v747
        %v752 = vmul.f32 %v736, %v751
        %v753 = vmul.f32 %v752, %v443
        %v754 = vadd.f32 %v753, %v445
        %755 = vadd.xlane.f32.xlu0 %v415
        %v756 = vpop.xlane.xlu0 %755
        %v757 = vmul.f32 %v756, %v424
        %v758 = vsub.f32 %v415, %v757
        %v759 = vmul.f32 %v758, %v758
        %760 = vadd.xlane.f32.xlu0 %v759
        %v761 = vpop.xlane.xlu0 %760
        %v762 = vmul.f32 %v761, %v424
        %v763 = vadd.f32 %v762, 1e-06
        %v764 = vrsqrt.pop %v763
        %v765 = vmul.f32 %v764, %v763
        %v766 = vmul.f32 %v765, %v764
        %v767 = vmul.f32 0.5, %v766
        %v768 = vsub.f32 1.5, %v767
        %v769 = vmul.f32 %v764, %v768
        %vm770 = vweird.f32 %v763
        %vm771 = vweird.f32 %v764
        %vm772 = vmor %vm770, %vm771
        %v773 = vsel %vm772, %v764, %v769
        %v774 = vmul.f32 %v758, %v773
        %v775 = vmul.f32 %v774, %v443
        %v776 = vadd.f32 %v775, %v445
        %v777 = vpack.c.bf16 %v446, %v446
        %v778 = vpack.c.bf16 %v468, %v468
        %v779 = vpack.c.bf16 %v490, %v490
        %v780 = vpack.c.bf16 %v512, %v512
        %v781 = vpack.c.bf16 %v534, %v534
        %v782 = vpack.c.bf16 %v556, %v556
        %v783 = vpack.c.bf16 %v578, %v578
        %v784 = vpack.c.bf16 %v600, %v600
        %v785 = vpack.c.bf16 %v622, %v622
        %v786 = vpack.c.bf16 %v644, %v644
        %v787 = vpack.c.bf16 %v666, %v666
        %v788 = vpack.c.bf16 %v688, %v688
        %v789 = vpack.c.bf16 %v710, %v710
        %v790 = vpack.c.bf16 %v732, %v732
        %v791 = vpack.c.bf16 %v754, %v754
        %v792 = vpack.c.bf16 %v776, %v776
        %v793 = vld [vmem:[#allocation2] sm:$0xf]
        %v794 = vld [vmem:[#allocation2 + $0x4] sm:$0xf]
        %v795 = vld [vmem:[#allocation2 + $0x8] sm:$0xf]
        %v796 = vld [vmem:[#allocation2 + $0xc] sm:$0xf]
        %v797 = vld [vmem:[#allocation2 + $0x10] sm:$0xf]
        %v798 = vld [vmem:[#allocation2 + $0x14] sm:$0xf]
        %v799 = vld [vmem:[#allocation2 + $0x18] sm:$0xf]
        %v800 = vld [vmem:[#allocation2 + $0x1c] sm:$0xf]
        %v801 = vld [vmem:[#allocation2 + $0x20] sm:$0xf]
        %v802 = vld [vmem:[#allocation2 + $0x24] sm:$0xf]
        %v803 = vld [vmem:[#allocation2 + $0x28] sm:$0xf]
        %v804 = vld [vmem:[#allocation2 + $0x2c] sm:$0xf]
        %v805 = vld [vmem:[#allocation2 + $0x30] sm:$0xf]
        %v806 = vld [vmem:[#allocation2 + $0x34] sm:$0xf]
        %v807 = vld [vmem:[#allocation2 + $0x38] sm:$0xf]
        %v808 = vld [vmem:[#allocation2 + $0x3c] sm:$0xf]
        %v809 = vld [vmem:[#allocation2 + $0x40] sm:$0xf]
        %v810 = vld [vmem:[#allocation2 + $0x44] sm:$0xf]
        %v811 = vld [vmem:[#allocation2 + $0x48] sm:$0xf]
        %v812 = vld [vmem:[#allocation2 + $0x4c] sm:$0xf]
        %v813 = vld [vmem:[#allocation2 + $0x50] sm:$0xf]
        %v814 = vld [vmem:[#allocation2 + $0x54] sm:$0xf]
        %v815 = vld [vmem:[#allocation2 + $0x58] sm:$0xf]
        %v816 = vld [vmem:[#allocation2 + $0x5c] sm:$0xf]
        %v817 = vld [vmem:[#allocation2 + $0x60] sm:$0xf]
        %v818 = vld [vmem:[#allocation2 + $0x64] sm:$0xf]
        %v819 = vld [vmem:[#allocation2 + $0x68] sm:$0xf]
        %v820 = vld [vmem:[#allocation2 + $0x6c] sm:$0xf]
        %v821 = vld [vmem:[#allocation2 + $0x70] sm:$0xf]
        %v822 = vld [vmem:[#allocation2 + $0x74] sm:$0xf]
        %v823 = vld [vmem:[#allocation2 + $0x78] sm:$0xf]
        %v824 = vld [vmem:[#allocation2 + $0x7c] sm:$0xf]
        %v825 = vld [vmem:[#allocation2 + $0x80] sm:$0xf]
        %v826 = vld [vmem:[#allocation2 + $0x84] sm:$0xf]
        %v827 = vld [vmem:[#allocation2 + $0x88] sm:$0xf]
        %v828 = vld [vmem:[#allocation2 + $0x8c] sm:$0xf]
        %v829 = vld [vmem:[#allocation2 + $0x90] sm:$0xf]
        %v830 = vld [vmem:[#allocation2 + $0x94] sm:$0xf]
        %v831 = vld [vmem:[#allocation2 + $0x98] sm:$0xf]
        %v832 = vld [vmem:[#allocation2 + $0x9c] sm:$0xf]
        %v833 = vld [vmem:[#allocation2 + $0xa0] sm:$0xf]
        %v834 = vld [vmem:[#allocation2 + $0xa4] sm:$0xf]
        %v835 = vld [vmem:[#allocation2 + $0xa8] sm:$0xf]
        %v836 = vld [vmem:[#allocation2 + $0xac] sm:$0xf]
        %v837 = vld [vmem:[#allocation2 + $0xb0] sm:$0xf]
        %v838 = vld [vmem:[#allocation2 + $0xb4] sm:$0xf]
        %v839 = vld [vmem:[#allocation2 + $0xb8] sm:$0xf]
        %v840 = vld [vmem:[#allocation2 + $0xbc] sm:$0xf]
        %v841 = vld [vmem:[#allocation2 + $0xc0] sm:$0xf]
        %v842 = vld [vmem:[#allocation2 + $0xc4] sm:$0xf]
        %v843 = vld [vmem:[#allocation2 + $0xc8] sm:$0xf]
        %v844 = vld [vmem:[#allocation2 + $0xcc] sm:$0xf]
        %v845 = vld [vmem:[#allocation2 + $0xd0] sm:$0xf]
        %v846 = vld [vmem:[#allocation2 + $0xd4] sm:$0xf]
        %v847 = vld [vmem:[#allocation2 + $0xd8] sm:$0xf]
        %v848 = vld [vmem:[#allocation2 + $0xdc] sm:$0xf]
        %v849 = vld [vmem:[#allocation2 + $0xe0] sm:$0xf]
        %v850 = vld [vmem:[#allocation2 + $0xe4] sm:$0xf]
        %v851 = vld [vmem:[#allocation2 + $0xe8] sm:$0xf]
        %v852 = vld [vmem:[#allocation2 + $0xec] sm:$0xf]
        %v853 = vld [vmem:[#allocation2 + $0xf0] sm:$0xf]
        %v854 = vld [vmem:[#allocation2 + $0xf4] sm:$0xf]
        %v855 = vld [vmem:[#allocation2 + $0xf8] sm:$0xf]
        %v856 = vld [vmem:[#allocation2 + $0xfc] sm:$0xf]
        %v857 = vld [vmem:[#allocation2 + $0x100] sm:$0xf]
        %v858 = vld [vmem:[#allocation2 + $0x104] sm:$0xf]
        %v859 = vld [vmem:[#allocation2 + $0x108] sm:$0xf]
        %v860 = vld [vmem:[#allocation2 + $0x10c] sm:$0xf]
        %v861 = vld [vmem:[#allocation2 + $0x110] sm:$0xf]
        %v862 = vld [vmem:[#allocation2 + $0x114] sm:$0xf]
        %v863 = vld [vmem:[#allocation2 + $0x118] sm:$0xf]
        %v864 = vld [vmem:[#allocation2 + $0x11c] sm:$0xf]
        %v865 = vld [vmem:[#allocation2 + $0x120] sm:$0xf]
        %v866 = vld [vmem:[#allocation2 + $0x124] sm:$0xf]
        %v867 = vld [vmem:[#allocation2 + $0x128] sm:$0xf]
        %v868 = vld [vmem:[#allocation2 + $0x12c] sm:$0xf]
        %v869 = vld [vmem:[#allocation2 + $0x130] sm:$0xf]
        %v870 = vld [vmem:[#allocation2 + $0x134] sm:$0xf]
        %v871 = vld [vmem:[#allocation2 + $0x138] sm:$0xf]
        %v872 = vld [vmem:[#allocation2 + $0x13c] sm:$0xf]
        %v873 = vld [vmem:[#allocation2 + $0x140] sm:$0xf]
        %v874 = vld [vmem:[#allocation2 + $0x144] sm:$0xf]
        %v875 = vld [vmem:[#allocation2 + $0x148] sm:$0xf]
        %v876 = vld [vmem:[#allocation2 + $0x14c] sm:$0xf]
        %v877 = vld [vmem:[#allocation2 + $0x150] sm:$0xf]
        %v878 = vld [vmem:[#allocation2 + $0x154] sm:$0xf]
        %v879 = vld [vmem:[#allocation2 + $0x158] sm:$0xf]
        %v880 = vld [vmem:[#allocation2 + $0x15c] sm:$0xf]
        %v881 = vld [vmem:[#allocation2 + $0x160] sm:$0xf]
        %v882 = vld [vmem:[#allocation2 + $0x164] sm:$0xf]
        %v883 = vld [vmem:[#allocation2 + $0x168] sm:$0xf]
        %v884 = vld [vmem:[#allocation2 + $0x16c] sm:$0xf]
        %v885 = vld [vmem:[#allocation2 + $0x170] sm:$0xf]
        %v886 = vld [vmem:[#allocation2 + $0x174] sm:$0xf]
        %v887 = vld [vmem:[#allocation2 + $0x178] sm:$0xf]
        %v888 = vld [vmem:[#allocation2 + $0x17c] sm:$0xf]
        %v889 = vld [vmem:[#allocation2 + $0x180] sm:$0xf]
        %v890 = vld [vmem:[#allocation2 + $0x184] sm:$0xf]
        %v891 = vld [vmem:[#allocation2 + $0x188] sm:$0xf]
        %v892 = vld [vmem:[#allocation2 + $0x18c] sm:$0xf]
        %v893 = vld [vmem:[#allocation2 + $0x190] sm:$0xf]
        %v894 = vld [vmem:[#allocation2 + $0x194] sm:$0xf]
        %v895 = vld [vmem:[#allocation2 + $0x198] sm:$0xf]
        %v896 = vld [vmem:[#allocation2 + $0x19c] sm:$0xf]
        %v897 = vld [vmem:[#allocation2 + $0x1a0] sm:$0xf]
        %v898 = vld [vmem:[#allocation2 + $0x1a4] sm:$0xf]
        %v899 = vld [vmem:[#allocation2 + $0x1a8] sm:$0xf]
        %v900 = vld [vmem:[#allocation2 + $0x1ac] sm:$0xf]
        %v901 = vld [vmem:[#allocation2 + $0x1b0] sm:$0xf]
        %v902 = vld [vmem:[#allocation2 + $0x1b4] sm:$0xf]
        %v903 = vld [vmem:[#allocation2 + $0x1b8] sm:$0xf]
        %v904 = vld [vmem:[#allocation2 + $0x1bc] sm:$0xf]
        %v905 = vld [vmem:[#allocation2 + $0x1c0] sm:$0xf]
        %v906 = vld [vmem:[#allocation2 + $0x1c4] sm:$0xf]
        %v907 = vld [vmem:[#allocation2 + $0x1c8] sm:$0xf]
        %v908 = vld [vmem:[#allocation2 + $0x1cc] sm:$0xf]
        %v909 = vld [vmem:[#allocation2 + $0x1d0] sm:$0xf]
        %v910 = vld [vmem:[#allocation2 + $0x1d4] sm:$0xf]
        %v911 = vld [vmem:[#allocation2 + $0x1d8] sm:$0xf]
        %v912 = vld [vmem:[#allocation2 + $0x1dc] sm:$0xf]
        %v913 = vld [vmem:[#allocation2 + $0x1e0] sm:$0xf]
        %v914 = vld [vmem:[#allocation2 + $0x1e4] sm:$0xf]
        %v915 = vld [vmem:[#allocation2 + $0x1e8] sm:$0xf]
        %v916 = vld [vmem:[#allocation2 + $0x1ec] sm:$0xf]
        %v917 = vld [vmem:[#allocation2 + $0x1f0] sm:$0xf]
        %v918 = vld [vmem:[#allocation2 + $0x1f4] sm:$0xf]
        %v919 = vld [vmem:[#allocation2 + $0x1f8] sm:$0xf]
        %v920 = vld [vmem:[#allocation2 + $0x1fc] sm:$0xf]
        %v921 = vld [vmem:[#allocation2 + $0x200] sm:$0xf]
        %v922 = vld [vmem:[#allocation2 + $0x204] sm:$0xf]
        %v923 = vld [vmem:[#allocation2 + $0x208] sm:$0xf]
        %v924 = vld [vmem:[#allocation2 + $0x20c] sm:$0xf]
        %v925 = vld [vmem:[#allocation2 + $0x210] sm:$0xf]
        %v926 = vld [vmem:[#allocation2 + $0x214] sm:$0xf]
        %v927 = vld [vmem:[#allocation2 + $0x218] sm:$0xf]
        %v928 = vld [vmem:[#allocation2 + $0x21c] sm:$0xf]
        %v929 = vld [vmem:[#allocation2 + $0x220] sm:$0xf]
        %v930 = vld [vmem:[#allocation2 + $0x224] sm:$0xf]
        %v931 = vld [vmem:[#allocation2 + $0x228] sm:$0xf]
        %v932 = vld [vmem:[#allocation2 + $0x22c] sm:$0xf]
        %v933 = vld [vmem:[#allocation2 + $0x230] sm:$0xf]
        %v934 = vld [vmem:[#allocation2 + $0x234] sm:$0xf]
        %v935 = vld [vmem:[#allocation2 + $0x238] sm:$0xf]
        %v936 = vld [vmem:[#allocation2 + $0x23c] sm:$0xf]
        %v937 = vld [vmem:[#allocation2 + $0x240] sm:$0xf]
        %v938 = vld [vmem:[#allocation2 + $0x244] sm:$0xf]
        %v939 = vld [vmem:[#allocation2 + $0x248] sm:$0xf]
        %v940 = vld [vmem:[#allocation2 + $0x24c] sm:$0xf]
        %v941 = vld [vmem:[#allocation2 + $0x250] sm:$0xf]
        %v942 = vld [vmem:[#allocation2 + $0x254] sm:$0xf]
        %v943 = vld [vmem:[#allocation2 + $0x258] sm:$0xf]
        %v944 = vld [vmem:[#allocation2 + $0x25c] sm:$0xf]
        %v945 = vld [vmem:[#allocation2 + $0x260] sm:$0xf]
        %v946 = vld [vmem:[#allocation2 + $0x264] sm:$0xf]
        %v947 = vld [vmem:[#allocation2 + $0x268] sm:$0xf]
        %v948 = vld [vmem:[#allocation2 + $0x26c] sm:$0xf]
        %v949 = vld [vmem:[#allocation2 + $0x270] sm:$0xf]
        %v950 = vld [vmem:[#allocation2 + $0x274] sm:$0xf]
        %v951 = vld [vmem:[#allocation2 + $0x278] sm:$0xf]
        %v952 = vld [vmem:[#allocation2 + $0x27c] sm:$0xf]
        %v953 = vld [vmem:[#allocation2 + $0x280] sm:$0xf]
        %v954 = vld [vmem:[#allocation2 + $0x284] sm:$0xf]
        %v955 = vld [vmem:[#allocation2 + $0x288] sm:$0xf]
        %v956 = vld [vmem:[#allocation2 + $0x28c] sm:$0xf]
        %v957 = vld [vmem:[#allocation2 + $0x290] sm:$0xf]
        %v958 = vld [vmem:[#allocation2 + $0x294] sm:$0xf]
        %v959 = vld [vmem:[#allocation2 + $0x298] sm:$0xf]
        %v960 = vld [vmem:[#allocation2 + $0x29c] sm:$0xf]
        %v961 = vld [vmem:[#allocation2 + $0x2a0] sm:$0xf]
        %v962 = vld [vmem:[#allocation2 + $0x2a4] sm:$0xf]
        %v963 = vld [vmem:[#allocation2 + $0x2a8] sm:$0xf]
        %v964 = vld [vmem:[#allocation2 + $0x2ac] sm:$0xf]
        %v965 = vld [vmem:[#allocation2 + $0x2b0] sm:$0xf]
        %v966 = vld [vmem:[#allocation2 + $0x2b4] sm:$0xf]
        %v967 = vld [vmem:[#allocation2 + $0x2b8] sm:$0xf]
        %v968 = vld [vmem:[#allocation2 + $0x2bc] sm:$0xf]
        %v969 = vld [vmem:[#allocation2 + $0x2c0] sm:$0xf]
        %v970 = vld [vmem:[#allocation2 + $0x2c4] sm:$0xf]
        %v971 = vld [vmem:[#allocation2 + $0x2c8] sm:$0xf]
        %v972 = vld [vmem:[#allocation2 + $0x2cc] sm:$0xf]
        %v973 = vld [vmem:[#allocation2 + $0x2d0] sm:$0xf]
        %v974 = vld [vmem:[#allocation2 + $0x2d4] sm:$0xf]
        %v975 = vld [vmem:[#allocation2 + $0x2d8] sm:$0xf]
        %v976 = vld [vmem:[#allocation2 + $0x2dc] sm:$0xf]
        %v977 = vld [vmem:[#allocation2 + $0x2e0] sm:$0xf]
        %v978 = vld [vmem:[#allocation2 + $0x2e4] sm:$0xf]
        %v979 = vld [vmem:[#allocation2 + $0x2e8] sm:$0xf]
        %v980 = vld [vmem:[#allocation2 + $0x2ec] sm:$0xf]
        %v981 = vld [vmem:[#allocation2 + $0x2f0] sm:$0xf]
        %v982 = vld [vmem:[#allocation2 + $0x2f4] sm:$0xf]
        %v983 = vld [vmem:[#allocation2 + $0x2f8] sm:$0xf]
        %v984 = vld [vmem:[#allocation2 + $0x2fc] sm:$0xf]
        %v985 = vld [vmem:[#allocation2 + $0x300] sm:$0xf]
        %v986 = vld [vmem:[#allocation2 + $0x304] sm:$0xf]
        %v987 = vld [vmem:[#allocation2 + $0x308] sm:$0xf]
        %v988 = vld [vmem:[#allocation2 + $0x30c] sm:$0xf]
        %v989 = vld [vmem:[#allocation2 + $0x310] sm:$0xf]
        %v990 = vld [vmem:[#allocation2 + $0x314] sm:$0xf]
        %v991 = vld [vmem:[#allocation2 + $0x318] sm:$0xf]
        %v992 = vld [vmem:[#allocation2 + $0x31c] sm:$0xf]
        %v993 = vld [vmem:[#allocation2 + $0x320] sm:$0xf]
        %v994 = vld [vmem:[#allocation2 + $0x324] sm:$0xf]
        %v995 = vld [vmem:[#allocation2 + $0x328] sm:$0xf]
        %v996 = vld [vmem:[#allocation2 + $0x32c] sm:$0xf]
        %v997 = vld [vmem:[#allocation2 + $0x330] sm:$0xf]
        %v998 = vld [vmem:[#allocation2 + $0x334] sm:$0xf]
        %v999 = vld [vmem:[#allocation2 + $0x338] sm:$0xf]
        %v1000 = vld [vmem:[#allocation2 + $0x33c] sm:$0xf]
        %v1001 = vld [vmem:[#allocation2 + $0x340] sm:$0xf]
        %v1002 = vld [vmem:[#allocation2 + $0x344] sm:$0xf]
        %v1003 = vld [vmem:[#allocation2 + $0x348] sm:$0xf]
        %v1004 = vld [vmem:[#allocation2 + $0x34c] sm:$0xf]
        %v1005 = vld [vmem:[#allocation2 + $0x350] sm:$0xf]
        %v1006 = vld [vmem:[#allocation2 + $0x354] sm:$0xf]
        %v1007 = vld [vmem:[#allocation2 + $0x358] sm:$0xf]
        %v1008 = vld [vmem:[#allocation2 + $0x35c] sm:$0xf]
        %v1009 = vld [vmem:[#allocation2 + $0x360] sm:$0xf]
        %v1010 = vld [vmem:[#allocation2 + $0x364] sm:$0xf]
        %v1011 = vld [vmem:[#allocation2 + $0x368] sm:$0xf]
        %v1012 = vld [vmem:[#allocation2 + $0x36c] sm:$0xf]
        %v1013 = vld [vmem:[#allocation2 + $0x370] sm:$0xf]
        %v1014 = vld [vmem:[#allocation2 + $0x374] sm:$0xf]
        %v1015 = vld [vmem:[#allocation2 + $0x378] sm:$0xf]
        %v1016 = vld [vmem:[#allocation2 + $0x37c] sm:$0xf]
        %v1017 = vld [vmem:[#allocation2 + $0x380] sm:$0xf]
        %v1018 = vld [vmem:[#allocation2 + $0x384] sm:$0xf]
        %v1019 = vld [vmem:[#allocation2 + $0x388] sm:$0xf]
        %v1020 = vld [vmem:[#allocation2 + $0x38c] sm:$0xf]
        %v1021 = vld [vmem:[#allocation2 + $0x390] sm:$0xf]
        %v1022 = vld [vmem:[#allocation2 + $0x394] sm:$0xf]
        %v1023 = vld [vmem:[#allocation2 + $0x398] sm:$0xf]
        %v1024 = vld [vmem:[#allocation2 + $0x39c] sm:$0xf]
        %v1025 = vld [vmem:[#allocation2 + $0x3a0] sm:$0xf]
        %v1026 = vld [vmem:[#allocation2 + $0x3a4] sm:$0xf]
        %v1027 = vld [vmem:[#allocation2 + $0x3a8] sm:$0xf]
        %v1028 = vld [vmem:[#allocation2 + $0x3ac] sm:$0xf]
        %v1029 = vld [vmem:[#allocation2 + $0x3b0] sm:$0xf]
        %v1030 = vld [vmem:[#allocation2 + $0x3b4] sm:$0xf]
        %v1031 = vld [vmem:[#allocation2 + $0x3b8] sm:$0xf]
        %v1032 = vld [vmem:[#allocation2 + $0x3bc] sm:$0xf]
        %v1033 = vld [vmem:[#allocation2 + $0x3c0] sm:$0xf]
        %v1034 = vld [vmem:[#allocation2 + $0x3c4] sm:$0xf]
        %v1035 = vld [vmem:[#allocation2 + $0x3c8] sm:$0xf]
        %v1036 = vld [vmem:[#allocation2 + $0x3cc] sm:$0xf]
        %v1037 = vld [vmem:[#allocation2 + $0x3d0] sm:$0xf]
        %v1038 = vld [vmem:[#allocation2 + $0x3d4] sm:$0xf]
        %v1039 = vld [vmem:[#allocation2 + $0x3d8] sm:$0xf]
        %v1040 = vld [vmem:[#allocation2 + $0x3dc] sm:$0xf]
        %v1041 = vld [vmem:[#allocation2 + $0x3e0] sm:$0xf]
        %v1042 = vld [vmem:[#allocation2 + $0x3e4] sm:$0xf]
        %v1043 = vld [vmem:[#allocation2 + $0x3e8] sm:$0xf]
        %v1044 = vld [vmem:[#allocation2 + $0x3ec] sm:$0xf]
        %v1045 = vld [vmem:[#allocation2 + $0x3f0] sm:$0xf]
        %v1046 = vld [vmem:[#allocation2 + $0x3f4] sm:$0xf]
        %v1047 = vld [vmem:[#allocation2 + $0x3f8] sm:$0xf]
        %v1048 = vld [vmem:[#allocation2 + $0x3fc] sm:$0xf]
        %v1305 = vunpack.c.l.b16 %v793
        %v1306 = vunpack.c.l.b16 %v794
        %v1307 = vunpack.c.l.b16 %v795
        %v1308 = vunpack.c.l.b16 %v796
        %v1309 = vunpack.c.l.b16 %v797
        %v1310 = vunpack.c.l.b16 %v798
        %v1311 = vunpack.c.l.b16 %v799
        %v1312 = vunpack.c.l.b16 %v800
        %v1313 = vunpack.c.l.b16 %v801
        %v1314 = vunpack.c.l.b16 %v802
        %v1315 = vunpack.c.l.b16 %v803
        %v1316 = vunpack.c.l.b16 %v804
        %v1317 = vunpack.c.l.b16 %v805
        %v1318 = vunpack.c.l.b16 %v806
        %v1319 = vunpack.c.l.b16 %v807
        %v1320 = vunpack.c.l.b16 %v808
        %v1321 = vunpack.c.l.b16 %v809
        %v1322 = vunpack.c.l.b16 %v810
        %v1323 = vunpack.c.l.b16 %v811
        %v1324 = vunpack.c.l.b16 %v812
        %v1325 = vunpack.c.l.b16 %v813
        %v1326 = vunpack.c.l.b16 %v814
        %v1327 = vunpack.c.l.b16 %v815
        %v1328 = vunpack.c.l.b16 %v816
        %v1329 = vunpack.c.l.b16 %v817
        %v1330 = vunpack.c.l.b16 %v818
        %v1331 = vunpack.c.l.b16 %v819
        %v1332 = vunpack.c.l.b16 %v820
        %v1333 = vunpack.c.l.b16 %v821
        %v1334 = vunpack.c.l.b16 %v822
        %v1335 = vunpack.c.l.b16 %v823
        %v1336 = vunpack.c.l.b16 %v824
        %v1337 = vunpack.c.l.b16 %v825
        %v1338 = vunpack.c.l.b16 %v826
        %v1339 = vunpack.c.l.b16 %v827
        %v1340 = vunpack.c.l.b16 %v828
        %v1341 = vunpack.c.l.b16 %v829
        %v1342 = vunpack.c.l.b16 %v830
        %v1343 = vunpack.c.l.b16 %v831
        %v1344 = vunpack.c.l.b16 %v832
        %v1345 = vunpack.c.l.b16 %v833
        %v1346 = vunpack.c.l.b16 %v834
        %v1347 = vunpack.c.l.b16 %v835
        %v1348 = vunpack.c.l.b16 %v836
        %v1349 = vunpack.c.l.b16 %v837
        %v1350 = vunpack.c.l.b16 %v838
        %v1351 = vunpack.c.l.b16 %v839
        %v1352 = vunpack.c.l.b16 %v840
        %v1353 = vunpack.c.l.b16 %v841
        %v1354 = vunpack.c.l.b16 %v842
        %v1355 = vunpack.c.l.b16 %v843
        %v1356 = vunpack.c.l.b16 %v844
        %v1357 = vunpack.c.l.b16 %v845
        %v1358 = vunpack.c.l.b16 %v846
        %v1359 = vunpack.c.l.b16 %v847
        %v1360 = vunpack.c.l.b16 %v848
        %v1361 = vunpack.c.l.b16 %v849
        %v1362 = vunpack.c.l.b16 %v850
        %v1363 = vunpack.c.l.b16 %v851
        %v1364 = vunpack.c.l.b16 %v852
        %v1365 = vunpack.c.l.b16 %v853
        %v1366 = vunpack.c.l.b16 %v854
        %v1367 = vunpack.c.l.b16 %v855
        %v1368 = vunpack.c.l.b16 %v856
        %v1369 = vunpack.c.l.b16 %v857
        %v1370 = vunpack.c.l.b16 %v858
        %v1371 = vunpack.c.l.b16 %v859
        %v1372 = vunpack.c.l.b16 %v860
        %v1373 = vunpack.c.l.b16 %v861
        %v1374 = vunpack.c.l.b16 %v862
        %v1375 = vunpack.c.l.b16 %v863
        %v1376 = vunpack.c.l.b16 %v864
        %v1377 = vunpack.c.l.b16 %v865
        %v1378 = vunpack.c.l.b16 %v866
        %v1379 = vunpack.c.l.b16 %v867
        %v1380 = vunpack.c.l.b16 %v868
        %v1381 = vunpack.c.l.b16 %v869
        %v1382 = vunpack.c.l.b16 %v870
        %v1383 = vunpack.c.l.b16 %v871
        %v1384 = vunpack.c.l.b16 %v872
        %v1385 = vunpack.c.l.b16 %v873
        %v1386 = vunpack.c.l.b16 %v874
        %v1387 = vunpack.c.l.b16 %v875
        %v1388 = vunpack.c.l.b16 %v876
        %v1389 = vunpack.c.l.b16 %v877
        %v1390 = vunpack.c.l.b16 %v878
        %v1391 = vunpack.c.l.b16 %v879
        %v1392 = vunpack.c.l.b16 %v880
        %v1393 = vunpack.c.l.b16 %v881
        %v1394 = vunpack.c.l.b16 %v882
        %v1395 = vunpack.c.l.b16 %v883
        %v1396 = vunpack.c.l.b16 %v884
        %v1397 = vunpack.c.l.b16 %v885
        %v1398 = vunpack.c.l.b16 %v886
        %v1399 = vunpack.c.l.b16 %v887
        %v1400 = vunpack.c.l.b16 %v888
        %v1401 = vunpack.c.l.b16 %v889
        %v1402 = vunpack.c.l.b16 %v890
        %v1403 = vunpack.c.l.b16 %v891
        %v1404 = vunpack.c.l.b16 %v892
        %v1405 = vunpack.c.l.b16 %v893
        %v1406 = vunpack.c.l.b16 %v894
        %v1407 = vunpack.c.l.b16 %v895
        %v1408 = vunpack.c.l.b16 %v896
        %v1409 = vunpack.c.l.b16 %v897
        %v1410 = vunpack.c.l.b16 %v898
        %v1411 = vunpack.c.l.b16 %v899
        %v1412 = vunpack.c.l.b16 %v900
        %v1413 = vunpack.c.l.b16 %v901
        %v1414 = vunpack.c.l.b16 %v902
        %v1415 = vunpack.c.l.b16 %v903
        %v1416 = vunpack.c.l.b16 %v904
        %v1417 = vunpack.c.l.b16 %v905
        %v1418 = vunpack.c.l.b16 %v906
        %v1419 = vunpack.c.l.b16 %v907
        %v1420 = vunpack.c.l.b16 %v908
        %v1421 = vunpack.c.l.b16 %v909
        %v1422 = vunpack.c.l.b16 %v910
        %v1423 = vunpack.c.l.b16 %v911
        %v1424 = vunpack.c.l.b16 %v912
        %v1425 = vunpack.c.l.b16 %v913
        %v1426 = vunpack.c.l.b16 %v914
        %v1427 = vunpack.c.l.b16 %v915
        %v1428 = vunpack.c.l.b16 %v916
        %v1429 = vunpack.c.l.b16 %v917
        %v1430 = vunpack.c.l.b16 %v918
        %v1431 = vunpack.c.l.b16 %v919
        %v1432 = vunpack.c.l.b16 %v920
        %v1433 = vunpack.c.l.b16 %v921
        %v1434 = vunpack.c.l.b16 %v922
        %v1435 = vunpack.c.l.b16 %v923
        %v1436 = vunpack.c.l.b16 %v924
        %v1437 = vunpack.c.l.b16 %v925
        %v1438 = vunpack.c.l.b16 %v926
        %v1439 = vunpack.c.l.b16 %v927
        %v1440 = vunpack.c.l.b16 %v928
        %v1441 = vunpack.c.l.b16 %v929
        %v1442 = vunpack.c.l.b16 %v930
        %v1443 = vunpack.c.l.b16 %v931
        %v1444 = vunpack.c.l.b16 %v932
        %v1445 = vunpack.c.l.b16 %v933
        %v1446 = vunpack.c.l.b16 %v934
        %v1447 = vunpack.c.l.b16 %v935
        %v1448 = vunpack.c.l.b16 %v936
        %v1449 = vunpack.c.l.b16 %v937
        %v1450 = vunpack.c.l.b16 %v938
        %v1451 = vunpack.c.l.b16 %v939
        %v1452 = vunpack.c.l.b16 %v940
        %v1453 = vunpack.c.l.b16 %v941
        %v1454 = vunpack.c.l.b16 %v942
        %v1455 = vunpack.c.l.b16 %v943
        %v1456 = vunpack.c.l.b16 %v944
        %v1457 = vunpack.c.l.b16 %v945
        %v1458 = vunpack.c.l.b16 %v946
        %v1459 = vunpack.c.l.b16 %v947
        %v1460 = vunpack.c.l.b16 %v948
        %v1461 = vunpack.c.l.b16 %v949
        %v1462 = vunpack.c.l.b16 %v950
        %v1463 = vunpack.c.l.b16 %v951
        %v1464 = vunpack.c.l.b16 %v952
        %v1465 = vunpack.c.l.b16 %v953
        %v1466 = vunpack.c.l.b16 %v954
        %v1467 = vunpack.c.l.b16 %v955
        %v1468 = vunpack.c.l.b16 %v956
        %v1469 = vunpack.c.l.b16 %v957
        %v1470 = vunpack.c.l.b16 %v958
        %v1471 = vunpack.c.l.b16 %v959
        %v1472 = vunpack.c.l.b16 %v960
        %v1473 = vunpack.c.l.b16 %v961
        %v1474 = vunpack.c.l.b16 %v962
        %v1475 = vunpack.c.l.b16 %v963
        %v1476 = vunpack.c.l.b16 %v964
        %v1477 = vunpack.c.l.b16 %v965
        %v1478 = vunpack.c.l.b16 %v966
        %v1479 = vunpack.c.l.b16 %v967
        %v1480 = vunpack.c.l.b16 %v968
        %v1481 = vunpack.c.l.b16 %v969
        %v1482 = vunpack.c.l.b16 %v970
        %v1483 = vunpack.c.l.b16 %v971
        %v1484 = vunpack.c.l.b16 %v972
        %v1485 = vunpack.c.l.b16 %v973
        %v1486 = vunpack.c.l.b16 %v974
        %v1487 = vunpack.c.l.b16 %v975
        %v1488 = vunpack.c.l.b16 %v976
        %v1489 = vunpack.c.l.b16 %v977
        %v1490 = vunpack.c.l.b16 %v978
        %v1491 = vunpack.c.l.b16 %v979
        %v1492 = vunpack.c.l.b16 %v980
        %v1493 = vunpack.c.l.b16 %v981
        %v1494 = vunpack.c.l.b16 %v982
        %v1495 = vunpack.c.l.b16 %v983
        %v1496 = vunpack.c.l.b16 %v984
        %v1497 = vunpack.c.l.b16 %v985
        %v1498 = vunpack.c.l.b16 %v986
        %v1499 = vunpack.c.l.b16 %v987
        %v1500 = vunpack.c.l.b16 %v988
        %v1501 = vunpack.c.l.b16 %v989
        %v1502 = vunpack.c.l.b16 %v990
        %v1503 = vunpack.c.l.b16 %v991
        %v1504 = vunpack.c.l.b16 %v992
        %v1505 = vunpack.c.l.b16 %v993
        %v1506 = vunpack.c.l.b16 %v994
        %v1507 = vunpack.c.l.b16 %v995
        %v1508 = vunpack.c.l.b16 %v996
        %v1509 = vunpack.c.l.b16 %v997
        %v1510 = vunpack.c.l.b16 %v998
        %v1511 = vunpack.c.l.b16 %v999
        %v1512 = vunpack.c.l.b16 %v1000
        %v1513 = vunpack.c.l.b16 %v1001
        %v1514 = vunpack.c.l.b16 %v1002
        %v1515 = vunpack.c.l.b16 %v1003
        %v1516 = vunpack.c.l.b16 %v1004
        %v1517 = vunpack.c.l.b16 %v1005
        %v1518 = vunpack.c.l.b16 %v1006
        %v1519 = vunpack.c.l.b16 %v1007
        %v1520 = vunpack.c.l.b16 %v1008
        %v1521 = vunpack.c.l.b16 %v1009
        %v1522 = vunpack.c.l.b16 %v1010
        %v1523 = vunpack.c.l.b16 %v1011
        %v1524 = vunpack.c.l.b16 %v1012
        %v1525 = vunpack.c.l.b16 %v1013
        %v1526 = vunpack.c.l.b16 %v1014
        %v1527 = vunpack.c.l.b16 %v1015
        %v1528 = vunpack.c.l.b16 %v1016
        %v1529 = vunpack.c.l.b16 %v1017
        %v1530 = vunpack.c.l.b16 %v1018
        %v1531 = vunpack.c.l.b16 %v1019
        %v1532 = vunpack.c.l.b16 %v1020
        %v1533 = vunpack.c.l.b16 %v1021
        %v1534 = vunpack.c.l.b16 %v1022
        %v1535 = vunpack.c.l.b16 %v1023
        %v1536 = vunpack.c.l.b16 %v1024
        %v1537 = vunpack.c.l.b16 %v1025
        %v1538 = vunpack.c.l.b16 %v1026
        %v1539 = vunpack.c.l.b16 %v1027
        %v1540 = vunpack.c.l.b16 %v1028
        %v1541 = vunpack.c.l.b16 %v1029
        %v1542 = vunpack.c.l.b16 %v1030
        %v1543 = vunpack.c.l.b16 %v1031
        %v1544 = vunpack.c.l.b16 %v1032
        %v1545 = vunpack.c.l.b16 %v1033
        %v1546 = vunpack.c.l.b16 %v1034
        %v1547 = vunpack.c.l.b16 %v1035
        %v1548 = vunpack.c.l.b16 %v1036
        %v1549 = vunpack.c.l.b16 %v1037
        %v1550 = vunpack.c.l.b16 %v1038
        %v1551 = vunpack.c.l.b16 %v1039
        %v1552 = vunpack.c.l.b16 %v1040
        %v1553 = vunpack.c.l.b16 %v1041
        %v1554 = vunpack.c.l.b16 %v1042
        %v1555 = vunpack.c.l.b16 %v1043
        %v1556 = vunpack.c.l.b16 %v1044
        %v1557 = vunpack.c.l.b16 %v1045
        %v1558 = vunpack.c.l.b16 %v1046
        %v1559 = vunpack.c.l.b16 %v1047
        %v1560 = vunpack.c.l.b16 %v1048
        %v1561 = vpack.c.b16 %v1306, %v1305
        %v1562 = vpack.c.b16 %v1308, %v1307
        %v1563 = vpack.c.b16 %v1310, %v1309
        %v1564 = vpack.c.b16 %v1312, %v1311
        %v1565 = vpack.c.b16 %v1314, %v1313
        %v1566 = vpack.c.b16 %v1316, %v1315
        %v1567 = vpack.c.b16 %v1318, %v1317
        %v1568 = vpack.c.b16 %v1320, %v1319
        %v1569 = vpack.c.b16 %v1322, %v1321
        %v1570 = vpack.c.b16 %v1324, %v1323
        %v1571 = vpack.c.b16 %v1326, %v1325
        %v1572 = vpack.c.b16 %v1328, %v1327
        %v1573 = vpack.c.b16 %v1330, %v1329
        %v1574 = vpack.c.b16 %v1332, %v1331
        %v1575 = vpack.c.b16 %v1334, %v1333
        %v1576 = vpack.c.b16 %v1336, %v1335
        %v1577 = vpack.c.b16 %v1338, %v1337
        %v1578 = vpack.c.b16 %v1340, %v1339
        %v1579 = vpack.c.b16 %v1342, %v1341
        %v1580 = vpack.c.b16 %v1344, %v1343
        %v1581 = vpack.c.b16 %v1346, %v1345
        %v1582 = vpack.c.b16 %v1348, %v1347
        %v1583 = vpack.c.b16 %v1350, %v1349
        %v1584 = vpack.c.b16 %v1352, %v1351
        %v1585 = vpack.c.b16 %v1354, %v1353
        %v1586 = vpack.c.b16 %v1356, %v1355
        %v1587 = vpack.c.b16 %v1358, %v1357
        %v1588 = vpack.c.b16 %v1360, %v1359
        %v1589 = vpack.c.b16 %v1362, %v1361
        %v1590 = vpack.c.b16 %v1364, %v1363
        %v1591 = vpack.c.b16 %v1366, %v1365
        %v1592 = vpack.c.b16 %v1368, %v1367
        %v1593 = vpack.c.b16 %v1370, %v1369
        %v1594 = vpack.c.b16 %v1372, %v1371
        %v1595 = vpack.c.b16 %v1374, %v1373
        %v1596 = vpack.c.b16 %v1376, %v1375
        %v1597 = vpack.c.b16 %v1378, %v1377
        %v1598 = vpack.c.b16 %v1380, %v1379
        %v1599 = vpack.c.b16 %v1382, %v1381
        %v1600 = vpack.c.b16 %v1384, %v1383
        %v1601 = vpack.c.b16 %v1386, %v1385
        %v1602 = vpack.c.b16 %v1388, %v1387
        %v1603 = vpack.c.b16 %v1390, %v1389
        %v1604 = vpack.c.b16 %v1392, %v1391
        %v1605 = vpack.c.b16 %v1394, %v1393
        %v1606 = vpack.c.b16 %v1396, %v1395
        %v1607 = vpack.c.b16 %v1398, %v1397
        %v1608 = vpack.c.b16 %v1400, %v1399
        %v1609 = vpack.c.b16 %v1402, %v1401
        %v1610 = vpack.c.b16 %v1404, %v1403
        %v1611 = vpack.c.b16 %v1406, %v1405
        %v1612 = vpack.c.b16 %v1408, %v1407
        %v1613 = vpack.c.b16 %v1410, %v1409
        %v1614 = vpack.c.b16 %v1412, %v1411
        %v1615 = vpack.c.b16 %v1414, %v1413
        %v1616 = vpack.c.b16 %v1416, %v1415
        %v1617 = vpack.c.b16 %v1418, %v1417
        %v1618 = vpack.c.b16 %v1420, %v1419
        %v1619 = vpack.c.b16 %v1422, %v1421
        %v1620 = vpack.c.b16 %v1424, %v1423
        %v1621 = vpack.c.b16 %v1426, %v1425
        %v1622 = vpack.c.b16 %v1428, %v1427
        %v1623 = vpack.c.b16 %v1430, %v1429
        %v1624 = vpack.c.b16 %v1432, %v1431
        %v1625 = vpack.c.b16 %v1434, %v1433
        %v1626 = vpack.c.b16 %v1436, %v1435
        %v1627 = vpack.c.b16 %v1438, %v1437
        %v1628 = vpack.c.b16 %v1440, %v1439
        %v1629 = vpack.c.b16 %v1442, %v1441
        %v1630 = vpack.c.b16 %v1444, %v1443
        %v1631 = vpack.c.b16 %v1446, %v1445
        %v1632 = vpack.c.b16 %v1448, %v1447
        %v1633 = vpack.c.b16 %v1450, %v1449
        %v1634 = vpack.c.b16 %v1452, %v1451
        %v1635 = vpack.c.b16 %v1454, %v1453
        %v1636 = vpack.c.b16 %v1456, %v1455
        %v1637 = vpack.c.b16 %v1458, %v1457
        %v1638 = vpack.c.b16 %v1460, %v1459
        %v1639 = vpack.c.b16 %v1462, %v1461
        %v1640 = vpack.c.b16 %v1464, %v1463
        %v1641 = vpack.c.b16 %v1466, %v1465
        %v1642 = vpack.c.b16 %v1468, %v1467
        %v1643 = vpack.c.b16 %v1470, %v1469
        %v1644 = vpack.c.b16 %v1472, %v1471
        %v1645 = vpack.c.b16 %v1474, %v1473
        %v1646 = vpack.c.b16 %v1476, %v1475
        %v1647 = vpack.c.b16 %v1478, %v1477
        %v1648 = vpack.c.b16 %v1480, %v1479
        %v1649 = vpack.c.b16 %v1482, %v1481
        %v1650 = vpack.c.b16 %v1484, %v1483
        %v1651 = vpack.c.b16 %v1486, %v1485
        %v1652 = vpack.c.b16 %v1488, %v1487
        %v1653 = vpack.c.b16 %v1490, %v1489
        %v1654 = vpack.c.b16 %v1492, %v1491
        %v1655 = vpack.c.b16 %v1494, %v1493
        %v1656 = vpack.c.b16 %v1496, %v1495
        %v1657 = vpack.c.b16 %v1498, %v1497
        %v1658 = vpack.c.b16 %v1500, %v1499
        %v1659 = vpack.c.b16 %v1502, %v1501
        %v1660 = vpack.c.b16 %v1504, %v1503
        %v1661 = vpack.c.b16 %v1506, %v1505
        %v1662 = vpack.c.b16 %v1508, %v1507
        %v1663 = vpack.c.b16 %v1510, %v1509
        %v1664 = vpack.c.b16 %v1512, %v1511
        %v1665 = vpack.c.b16 %v1514, %v1513
        %v1666 = vpack.c.b16 %v1516, %v1515
        %v1667 = vpack.c.b16 %v1518, %v1517
        %v1668 = vpack.c.b16 %v1520, %v1519
        %v1669 = vpack.c.b16 %v1522, %v1521
        %v1670 = vpack.c.b16 %v1524, %v1523
        %v1671 = vpack.c.b16 %v1526, %v1525
        %v1672 = vpack.c.b16 %v1528, %v1527
        %v1673 = vpack.c.b16 %v1530, %v1529
        %v1674 = vpack.c.b16 %v1532, %v1531
        %v1675 = vpack.c.b16 %v1534, %v1533
        %v1676 = vpack.c.b16 %v1536, %v1535
        %v1677 = vpack.c.b16 %v1538, %v1537
        %v1678 = vpack.c.b16 %v1540, %v1539
        %v1679 = vpack.c.b16 %v1542, %v1541
        %v1680 = vpack.c.b16 %v1544, %v1543
        %v1681 = vpack.c.b16 %v1546, %v1545
        %v1682 = vpack.c.b16 %v1548, %v1547
        %v1683 = vpack.c.b16 %v1550, %v1549
        %v1684 = vpack.c.b16 %v1552, %v1551
        %v1685 = vpack.c.b16 %v1554, %v1553
        %v1686 = vpack.c.b16 %v1556, %v1555
        %v1687 = vpack.c.b16 %v1558, %v1557
        %v1688 = vpack.c.b16 %v1560, %v1559
        %1817 = vmatpush.bf16.msra.mxu0 %v1568
        %1818 = vmatpush.bf16.msra.mxu0 %v1567
        %1819 = vmatpush.bf16.msra.mxu0 %v1566
        %1820 = vmatpush.bf16.msra.mxu0 %v1565
        %1821 = vmatpush.bf16.msra.mxu0 %v1564
        %1822 = vmatpush.bf16.msra.mxu0 %v1563
        %1823 = vmatpush.bf16.msra.mxu0 %v1562
        %1824 = vmatpush.bf16.msra.mxu0 %v1561
        %1825 = vmatmul.bf16.gmra.mxu0 %v777
        %v1826 = vpop.f32.mrf.mxu0
        %v1827 = vadd.f32 0.0, %v1826
        %v1828 = vpop.f32.mrf.mxu0
        %1829 = vdwg.mxu0
        %1830 = vmatpush.bf16.msra.mxu0 %v1576
        %1831 = vmatpush.bf16.msra.mxu0 %v1575
        %1832 = vmatpush.bf16.msra.mxu0 %v1574
        %1833 = vmatpush.bf16.msra.mxu0 %v1573
        %1834 = vmatpush.bf16.msra.mxu0 %v1572
        %1835 = vmatpush.bf16.msra.mxu0 %v1571
        %1836 = vmatpush.bf16.msra.mxu0 %v1570
        %1837 = vmatpush.bf16.msra.mxu0 %v1569
        %1838 = vmatmul.bf16.gmra.mxu0 %v778
        %v1839 = vpop.f32.mrf.mxu0
        %v1840 = vadd.f32 %v1827, %v1839
        %v1841 = vpop.f32.mrf.mxu0
        %1842 = vdwg.mxu0
        %1843 = vmatpush.bf16.msra.mxu0 %v1584
        %1844 = vmatpush.bf16.msra.mxu0 %v1583
        %1845 = vmatpush.bf16.msra.mxu0 %v1582
        %1846 = vmatpush.bf16.msra.mxu0 %v1581
        %1847 = vmatpush.bf16.msra.mxu0 %v1580
        %1848 = vmatpush.bf16.msra.mxu0 %v1579
        %1849 = vmatpush.bf16.msra.mxu0 %v1578
        %1850 = vmatpush.bf16.msra.mxu0 %v1577
        %1851 = vmatmul.bf16.gmra.mxu0 %v779
        %v1852 = vpop.f32.mrf.mxu0
        %v1853 = vadd.f32 %v1840, %v1852
        %v1854 = vpop.f32.mrf.mxu0
        %1855 = vdwg.mxu0
        %1856 = vmatpush.bf16.msra.mxu0 %v1592
        %1857 = vmatpush.bf16.msra.mxu0 %v1591
        %1858 = vmatpush.bf16.msra.mxu0 %v1590
        %1859 = vmatpush.bf16.msra.mxu0 %v1589
        %1860 = vmatpush.bf16.msra.mxu0 %v1588
        %1861 = vmatpush.bf16.msra.mxu0 %v1587
        %1862 = vmatpush.bf16.msra.mxu0 %v1586
        %1863 = vmatpush.bf16.msra.mxu0 %v1585
        %1864 = vmatmul.bf16.gmra.mxu0 %v780
        %v1865 = vpop.f32.mrf.mxu0
        %v1866 = vadd.f32 %v1853, %v1865
        %v1867 = vpop.f32.mrf.mxu0
        %1868 = vdwg.mxu0
        %1869 = vmatpush.bf16.msra.mxu0 %v1600
        %1870 = vmatpush.bf16.msra.mxu0 %v1599
        %1871 = vmatpush.bf16.msra.mxu0 %v1598
        %1872 = vmatpush.bf16.msra.mxu0 %v1597
        %1873 = vmatpush.bf16.msra.mxu0 %v1596
        %1874 = vmatpush.bf16.msra.mxu0 %v1595
        %1875 = vmatpush.bf16.msra.mxu0 %v1594
        %1876 = vmatpush.bf16.msra.mxu0 %v1593
        %1877 = vmatmul.bf16.gmra.mxu0 %v781
        %v1878 = vpop.f32.mrf.mxu0
        %v1879 = vadd.f32 %v1866, %v1878
        %v1880 = vpop.f32.mrf.mxu0
        %1881 = vdwg.mxu0
        %1882 = vmatpush.bf16.msra.mxu0 %v1608
        %1883 = vmatpush.bf16.msra.mxu0 %v1607
        %1884 = vmatpush.bf16.msra.mxu0 %v1606
        %1885 = vmatpush.bf16.msra.mxu0 %v1605
        %1886 = vmatpush.bf16.msra.mxu0 %v1604
        %1887 = vmatpush.bf16.msra.mxu0 %v1603
        %1888 = vmatpush.bf16.msra.mxu0 %v1602
        %1889 = vmatpush.bf16.msra.mxu0 %v1601
        %1890 = vmatmul.bf16.gmra.mxu0 %v782
        %v1891 = vpop.f32.mrf.mxu0
        %v1892 = vadd.f32 %v1879, %v1891
        %v1893 = vpop.f32.mrf.mxu0
        %1894 = vdwg.mxu0
        %1895 = vmatpush.bf16.msra.mxu0 %v1616
        %1896 = vmatpush.bf16.msra.mxu0 %v1615
        %1897 = vmatpush.bf16.msra.mxu0 %v1614
        %1898 = vmatpush.bf16.msra.mxu0 %v1613
        %1899 = vmatpush.bf16.msra.mxu0 %v1612
        %1900 = vmatpush.bf16.msra.mxu0 %v1611
        %1901 = vmatpush.bf16.msra.mxu0 %v1610
        %1902 = vmatpush.bf16.msra.mxu0 %v1609
        %1903 = vmatmul.bf16.gmra.mxu0 %v783
        %v1904 = vpop.f32.mrf.mxu0
        %v1905 = vadd.f32 %v1892, %v1904
        %v1906 = vpop.f32.mrf.mxu0
        %1907 = vdwg.mxu0
        %1908 = vmatpush.bf16.msra.mxu0 %v1624
        %1909 = vmatpush.bf16.msra.mxu0 %v1623
        %1910 = vmatpush.bf16.msra.mxu0 %v1622
        %1911 = vmatpush.bf16.msra.mxu0 %v1621
        %1912 = vmatpush.bf16.msra.mxu0 %v1620
        %1913 = vmatpush.bf16.msra.mxu0 %v1619
        %1914 = vmatpush.bf16.msra.mxu0 %v1618
        %1915 = vmatpush.bf16.msra.mxu0 %v1617
        %1916 = vmatmul.bf16.gmra.mxu0 %v784
        %v1917 = vpop.f32.mrf.mxu0
        %v1918 = vadd.f32 %v1905, %v1917
        %v1919 = vpop.f32.mrf.mxu0
        %1920 = vdwg.mxu0
        %1921 = vmatpush.bf16.msra.mxu0 %v1632
        %1922 = vmatpush.bf16.msra.mxu0 %v1631
        %1923 = vmatpush.bf16.msra.mxu0 %v1630
        %1924 = vmatpush.bf16.msra.mxu0 %v1629
        %1925 = vmatpush.bf16.msra.mxu0 %v1628
        %1926 = vmatpush.bf16.msra.mxu0 %v1627
        %1927 = vmatpush.bf16.msra.mxu0 %v1626
        %1928 = vmatpush.bf16.msra.mxu0 %v1625
        %1929 = vmatmul.bf16.gmra.mxu0 %v785
        %v1930 = vpop.f32.mrf.mxu0
        %v1931 = vadd.f32 %v1918, %v1930
        %v1932 = vpop.f32.mrf.mxu0
        %1933 = vdwg.mxu0
        %1934 = vmatpush.bf16.msra.mxu0 %v1640
        %1935 = vmatpush.bf16.msra.mxu0 %v1639
        %1936 = vmatpush.bf16.msra.mxu0 %v1638
        %1937 = vmatpush.bf16.msra.mxu0 %v1637
        %1938 = vmatpush.bf16.msra.mxu0 %v1636
        %1939 = vmatpush.bf16.msra.mxu0 %v1635
        %1940 = vmatpush.bf16.msra.mxu0 %v1634
        %1941 = vmatpush.bf16.msra.mxu0 %v1633
        %1942 = vmatmul.bf16.gmra.mxu0 %v786
        %v1943 = vpop.f32.mrf.mxu0
        %v1944 = vadd.f32 %v1931, %v1943
        %v1945 = vpop.f32.mrf.mxu0
        %1946 = vdwg.mxu0
        %1947 = vmatpush.bf16.msra.mxu0 %v1648
        %1948 = vmatpush.bf16.msra.mxu0 %v1647
        %1949 = vmatpush.bf16.msra.mxu0 %v1646
        %1950 = vmatpush.bf16.msra.mxu0 %v1645
        %1951 = vmatpush.bf16.msra.mxu0 %v1644
        %1952 = vmatpush.bf16.msra.mxu0 %v1643
        %1953 = vmatpush.bf16.msra.mxu0 %v1642
        %1954 = vmatpush.bf16.msra.mxu0 %v1641
        %1955 = vmatmul.bf16.gmra.mxu0 %v787
        %v1956 = vpop.f32.mrf.mxu0
        %v1957 = vadd.f32 %v1944, %v1956
        %v1958 = vpop.f32.mrf.mxu0
        %1959 = vdwg.mxu0
        %1960 = vmatpush.bf16.msra.mxu0 %v1656
        %1961 = vmatpush.bf16.msra.mxu0 %v1655
        %1962 = vmatpush.bf16.msra.mxu0 %v1654
        %1963 = vmatpush.bf16.msra.mxu0 %v1653
        %1964 = vmatpush.bf16.msra.mxu0 %v1652
        %1965 = vmatpush.bf16.msra.mxu0 %v1651
        %1966 = vmatpush.bf16.msra.mxu0 %v1650
        %1967 = vmatpush.bf16.msra.mxu0 %v1649
        %1968 = vmatmul.bf16.gmra.mxu0 %v788
        %v1969 = vpop.f32.mrf.mxu0
        %v1970 = vadd.f32 %v1957, %v1969
        %v1971 = vpop.f32.mrf.mxu0
        %1972 = vdwg.mxu0
        %1973 = vmatpush.bf16.msra.mxu0 %v1664
        %1974 = vmatpush.bf16.msra.mxu0 %v1663
        %1975 = vmatpush.bf16.msra.mxu0 %v1662
        %1976 = vmatpush.bf16.msra.mxu0 %v1661
        %1977 = vmatpush.bf16.msra.mxu0 %v1660
        %1978 = vmatpush.bf16.msra.mxu0 %v1659
        %1979 = vmatpush.bf16.msra.mxu0 %v1658
        %1980 = vmatpush.bf16.msra.mxu0 %v1657
        %1981 = vmatmul.bf16.gmra.mxu0 %v789
        %v1982 = vpop.f32.mrf.mxu0
        %v1983 = vadd.f32 %v1970, %v1982
        %v1984 = vpop.f32.mrf.mxu0
        %1985 = vdwg.mxu0
        %1986 = vmatpush.bf16.msra.mxu0 %v1672
        %1987 = vmatpush.bf16.msra.mxu0 %v1671
        %1988 = vmatpush.bf16.msra.mxu0 %v1670
        %1989 = vmatpush.bf16.msra.mxu0 %v1669
        %1990 = vmatpush.bf16.msra.mxu0 %v1668
        %1991 = vmatpush.bf16.msra.mxu0 %v1667
        %1992 = vmatpush.bf16.msra.mxu0 %v1666
        %1993 = vmatpush.bf16.msra.mxu0 %v1665
        %1994 = vmatmul.bf16.gmra.mxu0 %v790
        %v1995 = vpop.f32.mrf.mxu0
        %v1996 = vadd.f32 %v1983, %v1995
        %v1997 = vpop.f32.mrf.mxu0
        %1998 = vdwg.mxu0
        %1999 = vmatpush.bf16.msra.mxu0 %v1680
        %2000 = vmatpush.bf16.msra.mxu0 %v1679
        %2001 = vmatpush.bf16.msra.mxu0 %v1678
        %2002 = vmatpush.bf16.msra.mxu0 %v1677
        %2003 = vmatpush.bf16.msra.mxu0 %v1676
        %2004 = vmatpush.bf16.msra.mxu0 %v1675
        %2005 = vmatpush.bf16.msra.mxu0 %v1674
        %2006 = vmatpush.bf16.msra.mxu0 %v1673
        %2007 = vmatmul.bf16.gmra.mxu0 %v791
        %v2008 = vpop.f32.mrf.mxu0
        %v2009 = vadd.f32 %v1996, %v2008
        %v2010 = vpop.f32.mrf.mxu0
        %2011 = vdwg.mxu0
        %2012 = vmatpush.bf16.msra.mxu0 %v1688
        %2013 = vmatpush.bf16.msra.mxu0 %v1687
        %2014 = vmatpush.bf16.msra.mxu0 %v1686
        %2015 = vmatpush.bf16.msra.mxu0 %v1685
        %2016 = vmatpush.bf16.msra.mxu0 %v1684
        %2017 = vmatpush.bf16.msra.mxu0 %v1683
        %2018 = vmatpush.bf16.msra.mxu0 %v1682
        %2019 = vmatpush.bf16.msra.mxu0 %v1681
        %2020 = vmatmul.bf16.gmra.mxu0 %v792
        %v2021 = vpop.f32.mrf.mxu0
        %v2022 = vadd.f32 %v2009, %v2021
        %v2023 = vpop.f32.mrf.mxu0
        %2024 = vdwg.mxu0
        %v2025 = vmul.f32 %v2022, 0.0625
        %v2026 = vld [vmem:[%s393] sm:$0xff]
        %v2027 = vld [vmem:[%s4] sm:$0xff]
        %2029 = vset.pattern.permute.xlu0 0
        %2030 = vperm.xlu0 %2029, %v2026
        %v2031 = vpop.permute.xlu0 %2030
        %v2034 = vperm.slane %v2027, 0
        %v2035 = vperm.slane %v2027, 4
        %v2038 = vperm.slane %v2034, 0
        %v2039 = vperm.slane %v2035, 0
        %v2040 = vmul.f32 %v2031, %v2038
        %v2041 = vmul.f32 %v2031, %v2039
        %2042 = vset.pattern.permute.xlu0 1
        %2043 = vperm.xlu0 %2042, %v2026
        %v2044 = vpop.permute.xlu0 %2043
        %v2046 = vperm.slane %v2027, 1
        %v2047 = vperm.slane %v2027, 5
        %v2050 = vperm.slane %v2046, 1
        %v2051 = vperm.slane %v2047, 1
        %v2052 = vmul.f32 %v2044, %v2050
        %v2053 = vmul.f32 %v2044, %v2051
        %v2054 = vadd.f32 %v2040, %v2052
        %v2055 = vadd.f32 %v2041, %v2053
        %2056 = vset.pattern.permute.xlu0 2
        %2057 = vperm.xlu0 %2056, %v2026
        %v2058 = vpop.permute.xlu0 %2057
        %v2060 = vperm.slane %v2027, 2
        %v2061 = vperm.slane %v2027, 6
        %v2064 = vperm.slane %v2060, 2
        %v2065 = vperm.slane %v2061, 2
        %v2066 = vmul.f32 %v2058, %v2064
        %v2067 = vmul.f32 %v2058, %v2065
        %v2068 = vadd.f32 %v2054, %v2066
        %v2069 = vadd.f32 %v2055, %v2067
        %2070 = vset.pattern.permute.xlu0 3
        %2071 = vperm.xlu0 %2070, %v2026
        %v2072 = vpop.permute.xlu0 %2071
        %v2074 = vperm.slane %v2027, 3
        %v2075 = vperm.slane %v2027, 7
        %v2078 = vperm.slane %v2074, 3
        %v2079 = vperm.slane %v2075, 3
        %v2080 = vmul.f32 %v2072, %v2078
        %v2081 = vmul.f32 %v2072, %v2079
        %v2082 = vadd.f32 %v2068, %v2080
        %v2083 = vadd.f32 %v2069, %v2081
        %v2084 = vld [vmem:[%s7] sm:$0xff]
        %v2085 = vld [vmem:[%s7 + $0x8] sm:$0x1]
        %v2086 = vpack.c.bf16 %v2025, %v2025
        %v2087 = vld [vmem:[%s5] sm:$0xff]
        %v2088 = vld [vmem:[%s5 + $0x8] sm:$0xff]
        %v2089 = vld [vmem:[%s5 + $0x10] sm:$0xff]
        %v2090 = vld [vmem:[%s5 + $0x18] sm:$0xff]
        %v2091 = vld [vmem:[%s5 + $0x20] sm:$0xff]
        %v2092 = vld [vmem:[%s5 + $0x28] sm:$0xff]
        %v2093 = vld [vmem:[%s5 + $0x30] sm:$0xff]
        %v2094 = vld [vmem:[%s5 + $0x38] sm:$0xff]
        %v2095 = vld [vmem:[%s5 + $0x40] sm:$0xff]
        %v2096 = vld [vmem:[%s5 + $0x48] sm:$0xff]
        %v2097 = vld [vmem:[%s5 + $0x50] sm:$0xff]
        %v2098 = vld [vmem:[%s5 + $0x58] sm:$0xff]
        %v2099 = vld [vmem:[%s5 + $0x60] sm:$0xff]
        %v2100 = vld [vmem:[%s5 + $0x68] sm:$0xff]
        %v2101 = vld [vmem:[%s5 + $0x70] sm:$0xff]
        %v2102 = vld [vmem:[%s5 + $0x78] sm:$0xff]
        %v2103 = vld [vmem:[%s5 + $0x80] sm:$0xff]
        %v2104 = vld [vmem:[%s5 + $0x88] sm:$0xff]
        %v2105 = vld [vmem:[%s5 + $0x90] sm:$0xff]
        %v2106 = vld [vmem:[%s5 + $0x98] sm:$0xff]
        %v2107 = vld [vmem:[%s5 + $0xa0] sm:$0xff]
        %v2108 = vld [vmem:[%s5 + $0xa8] sm:$0xff]
        %v2109 = vld [vmem:[%s5 + $0xb0] sm:$0xff]
        %v2110 = vld [vmem:[%s5 + $0xb8] sm:$0xff]
        %v2111 = vld [vmem:[%s5 + $0xc0] sm:$0xff]
        %v2112 = vld [vmem:[%s5 + $0xc8] sm:$0xff]
        %v2113 = vld [vmem:[%s5 + $0xd0] sm:$0xff]
        %v2114 = vld [vmem:[%s5 + $0xd8] sm:$0xff]
        %v2115 = vld [vmem:[%s5 + $0xe0] sm:$0xff]
        %v2116 = vld [vmem:[%s5 + $0xe8] sm:$0xff]
        %v2117 = vld [vmem:[%s5 + $0xf0] sm:$0xff]
        %v2118 = vld [vmem:[%s5 + $0xf8] sm:$0xff]
        %v2119 = vld [vmem:[%s5 + $0x100] sm:$0xff]
        %v2120 = vld [vmem:[%s5 + $0x108] sm:$0xff]
        %v2121 = vld [vmem:[%s5 + $0x110] sm:$0xff]
        %v2122 = vld [vmem:[%s5 + $0x118] sm:$0xff]
        %v2123 = vld [vmem:[%s5 + $0x120] sm:$0xff]
        %v2124 = vld [vmem:[%s5 + $0x128] sm:$0xff]
        %v2125 = vld [vmem:[%s5 + $0x130] sm:$0xff]
        %v2126 = vld [vmem:[%s5 + $0x138] sm:$0xff]
        %v2127 = vld [vmem:[%s5 + $0x140] sm:$0xff]
        %v2128 = vld [vmem:[%s5 + $0x148] sm:$0xff]
        %v2129 = vld [vmem:[%s5 + $0x150] sm:$0xff]
        %v2130 = vld [vmem:[%s5 + $0x158] sm:$0xff]
        %v2131 = vld [vmem:[%s5 + $0x160] sm:$0xff]
        %v2132 = vld [vmem:[%s5 + $0x168] sm:$0xff]
        %v2133 = vld [vmem:[%s5 + $0x170] sm:$0xff]
        %v2134 = vld [vmem:[%s5 + $0x178] sm:$0xff]
        %v2135 = vld [vmem:[%s5 + $0x180] sm:$0xff]
        %v2136 = vld [vmem:[%s5 + $0x188] sm:$0xff]
        %v2137 = vld [vmem:[%s5 + $0x190] sm:$0xff]
        %v2138 = vld [vmem:[%s5 + $0x198] sm:$0xff]
        %v2139 = vld [vmem:[%s5 + $0x1a0] sm:$0xff]
        %v2140 = vld [vmem:[%s5 + $0x1a8] sm:$0xff]
        %v2141 = vld [vmem:[%s5 + $0x1b0] sm:$0xff]
        %v2142 = vld [vmem:[%s5 + $0x1b8] sm:$0xff]
        %v2143 = vld [vmem:[%s5 + $0x1c0] sm:$0xff]
        %v2144 = vld [vmem:[%s5 + $0x1c8] sm:$0xff]
        %v2145 = vld [vmem:[%s5 + $0x1d0] sm:$0xff]
        %v2146 = vld [vmem:[%s5 + $0x1d8] sm:$0xff]
        %v2147 = vld [vmem:[%s5 + $0x1e0] sm:$0xff]
        %v2148 = vld [vmem:[%s5 + $0x1e8] sm:$0xff]
        %v2149 = vld [vmem:[%s5 + $0x1f0] sm:$0xff]
        %v2150 = vld [vmem:[%s5 + $0x1f8] sm:$0xff]
        %v2151 = vpack.c.bf16 %v2082, %v2082
        %v2152 = vpack.c.bf16 %v2083, %v2083
        %v2153 = vld [vmem:[#allocation4] sm:$0xff]
        %v2154 = vld [vmem:[#allocation4 + $0x8] sm:$0xff]
        %v2155 = vld [vmem:[#allocation4 + $0x10] sm:$0xff]
        %v2156 = vld [vmem:[#allocation4 + $0x18] sm:$0xff]
        %v2157 = vld [vmem:[#allocation4 + $0x20] sm:$0xff]
        %v2158 = vld [vmem:[#allocation4 + $0x28] sm:$0xff]
        %v2159 = vld [vmem:[#allocation4 + $0x30] sm:$0xff]
        %v2160 = vld [vmem:[#allocation4 + $0x38] sm:$0xff]
        %v2161 = vld [vmem:[#allocation4 + $0x40] sm:$0xff]
        %v2162 = vld [vmem:[#allocation4 + $0x48] sm:$0xff]
        %v2163 = vld [vmem:[#allocation4 + $0x50] sm:$0xff]
        %v2164 = vld [vmem:[#allocation4 + $0x58] sm:$0xff]
        %v2165 = vld [vmem:[#allocation4 + $0x60] sm:$0xff]
        %v2166 = vld [vmem:[#allocation4 + $0x68] sm:$0xff]
        %v2167 = vld [vmem:[#allocation4 + $0x70] sm:$0xff]
        %v2168 = vld [vmem:[#allocation4 + $0x78] sm:$0xff]
        %v2169 = vld [vmem:[#allocation4 + $0x80] sm:$0xff]
        %v2170 = vld [vmem:[#allocation4 + $0x88] sm:$0xff]
        %v2171 = vld [vmem:[#allocation4 + $0x90] sm:$0xff]
        %v2172 = vld [vmem:[#allocation4 + $0x98] sm:$0xff]
        %v2173 = vld [vmem:[#allocation4 + $0xa0] sm:$0xff]
        %v2174 = vld [vmem:[#allocation4 + $0xa8] sm:$0xff]
        %v2175 = vld [vmem:[#allocation4 + $0xb0] sm:$0xff]
        %v2176 = vld [vmem:[#allocation4 + $0xb8] sm:$0xff]
        %v2177 = vld [vmem:[#allocation4 + $0xc0] sm:$0xff]
        %v2178 = vld [vmem:[#allocation4 + $0xc8] sm:$0xff]
        %v2179 = vld [vmem:[#allocation4 + $0xd0] sm:$0xff]
        %v2180 = vld [vmem:[#allocation4 + $0xd8] sm:$0xff]
        %v2181 = vld [vmem:[#allocation4 + $0xe0] sm:$0xff]
        %v2182 = vld [vmem:[#allocation4 + $0xe8] sm:$0xff]
        %v2183 = vld [vmem:[#allocation4 + $0xf0] sm:$0xff]
        %v2184 = vld [vmem:[#allocation4 + $0xf8] sm:$0xff]
        %v2185 = vld [vmem:[#allocation4 + $0x100] sm:$0xff]
        %v2186 = vld [vmem:[#allocation4 + $0x108] sm:$0xff]
        %v2187 = vld [vmem:[#allocation4 + $0x110] sm:$0xff]
        %v2188 = vld [vmem:[#allocation4 + $0x118] sm:$0xff]
        %v2189 = vld [vmem:[#allocation4 + $0x120] sm:$0xff]
        %v2190 = vld [vmem:[#allocation4 + $0x128] sm:$0xff]
        %v2191 = vld [vmem:[#allocation4 + $0x130] sm:$0xff]
        %v2192 = vld [vmem:[#allocation4 + $0x138] sm:$0xff]
        %v2193 = vld [vmem:[#allocation4 + $0x140] sm:$0xff]
        %v2194 = vld [vmem:[#allocation4 + $0x148] sm:$0xff]
        %v2195 = vld [vmem:[#allocation4 + $0x150] sm:$0xff]
        %v2196 = vld [vmem:[#allocation4 + $0x158] sm:$0xff]
        %v2197 = vld [vmem:[#allocation4 + $0x160] sm:$0xff]
        %v2198 = vld [vmem:[#allocation4 + $0x168] sm:$0xff]
        %v2199 = vld [vmem:[#allocation4 + $0x170] sm:$0xff]
        %v2200 = vld [vmem:[#allocation4 + $0x178] sm:$0xff]
        %v2201 = vld [vmem:[#allocation4 + $0x180] sm:$0xff]
        %v2202 = vld [vmem:[#allocation4 + $0x188] sm:$0xff]
        %v2203 = vld [vmem:[#allocation4 + $0x190] sm:$0xff]
        %v2204 = vld [vmem:[#allocation4 + $0x198] sm:$0xff]
        %v2205 = vld [vmem:[#allocation4 + $0x1a0] sm:$0xff]
        %v2206 = vld [vmem:[#allocation4 + $0x1a8] sm:$0xff]
        %v2207 = vld [vmem:[#allocation4 + $0x1b0] sm:$0xff]
        %v2208 = vld [vmem:[#allocation4 + $0x1b8] sm:$0xff]
        %v2209 = vld [vmem:[#allocation4 + $0x1c0] sm:$0xff]
        %v2210 = vld [vmem:[#allocation4 + $0x1c8] sm:$0xff]
        %v2211 = vld [vmem:[#allocation4 + $0x1d0] sm:$0xff]
        %v2212 = vld [vmem:[#allocation4 + $0x1d8] sm:$0xff]
        %v2213 = vld [vmem:[#allocation4 + $0x1e0] sm:$0xff]
        %v2214 = vld [vmem:[#allocation4 + $0x1e8] sm:$0xff]
        %v2215 = vld [vmem:[#allocation4 + $0x1f0] sm:$0xff]
        %v2216 = vld [vmem:[#allocation4 + $0x1f8] sm:$0xff]
        %v2217 = vld [vmem:[#allocation4 + $0x200] sm:$0xff]
        %v2218 = vld [vmem:[#allocation4 + $0x208] sm:$0xff]
        %v2219 = vld [vmem:[#allocation4 + $0x210] sm:$0xff]
        %v2220 = vld [vmem:[#allocation4 + $0x218] sm:$0xff]
        %v2221 = vld [vmem:[#allocation4 + $0x220] sm:$0xff]
        %v2222 = vld [vmem:[#allocation4 + $0x228] sm:$0xff]
        %v2223 = vld [vmem:[#allocation4 + $0x230] sm:$0xff]
        %v2224 = vld [vmem:[#allocation4 + $0x238] sm:$0xff]
        %v2225 = vld [vmem:[#allocation4 + $0x240] sm:$0xff]
        %v2226 = vld [vmem:[#allocation4 + $0x248] sm:$0xff]
        %v2227 = vld [vmem:[#allocation4 + $0x250] sm:$0xff]
        %v2228 = vld [vmem:[#allocation4 + $0x258] sm:$0xff]
        %v2229 = vld [vmem:[#allocation4 + $0x260] sm:$0xff]
        %v2230 = vld [vmem:[#allocation4 + $0x268] sm:$0xff]
        %v2231 = vld [vmem:[#allocation4 + $0x270] sm:$0xff]
        %v2232 = vld [vmem:[#allocation4 + $0x278] sm:$0xff]
        %v2233 = vld [vmem:[#allocation4 + $0x280] sm:$0xff]
        %v2234 = vld [vmem:[#allocation4 + $0x288] sm:$0xff]
        %v2235 = vld [vmem:[#allocation4 + $0x290] sm:$0xff]
        %v2236 = vld [vmem:[#allocation4 + $0x298] sm:$0xff]
        %v2237 = vld [vmem:[#allocation4 + $0x2a0] sm:$0xff]
        %v2238 = vld [vmem:[#allocation4 + $0x2a8] sm:$0xff]
        %v2239 = vld [vmem:[#allocation4 + $0x2b0] sm:$0xff]
        %v2240 = vld [vmem:[#allocation4 + $0x2b8] sm:$0xff]
        %v2241 = vld [vmem:[#allocation4 + $0x2c0] sm:$0xff]
        %v2242 = vld [vmem:[#allocation4 + $0x2c8] sm:$0xff]
        %v2243 = vld [vmem:[#allocation4 + $0x2d0] sm:$0xff]
        %v2244 = vld [vmem:[#allocation4 + $0x2d8] sm:$0xff]
        %v2245 = vld [vmem:[#allocation4 + $0x2e0] sm:$0xff]
        %v2246 = vld [vmem:[#allocation4 + $0x2e8] sm:$0xff]
        %v2247 = vld [vmem:[#allocation4 + $0x2f0] sm:$0xff]
        %v2248 = vld [vmem:[#allocation4 + $0x2f8] sm:$0xff]
        %v2249 = vld [vmem:[#allocation4 + $0x300] sm:$0xff]
        %v2250 = vld [vmem:[#allocation4 + $0x308] sm:$0xff]
        %v2251 = vld [vmem:[#allocation4 + $0x310] sm:$0xff]
        %v2252 = vld [vmem:[#allocation4 + $0x318] sm:$0xff]
        %v2253 = vld [vmem:[#allocation4 + $0x320] sm:$0xff]
        %v2254 = vld [vmem:[#allocation4 + $0x328] sm:$0xff]
        %v2255 = vld [vmem:[#allocation4 + $0x330] sm:$0xff]
        %v2256 = vld [vmem:[#allocation4 + $0x338] sm:$0xff]
        %v2257 = vld [vmem:[#allocation4 + $0x340] sm:$0xff]
        %v2258 = vld [vmem:[#allocation4 + $0x348] sm:$0xff]
        %v2259 = vld [vmem:[#allocation4 + $0x350] sm:$0xff]
        %v2260 = vld [vmem:[#allocation4 + $0x358] sm:$0xff]
        %v2261 = vld [vmem:[#allocation4 + $0x360] sm:$0xff]
        %v2262 = vld [vmem:[#allocation4 + $0x368] sm:$0xff]
        %v2263 = vld [vmem:[#allocation4 + $0x370] sm:$0xff]
        %v2264 = vld [vmem:[#allocation4 + $0x378] sm:$0xff]
        %v2265 = vld [vmem:[#allocation4 + $0x380] sm:$0xff]
        %v2266 = vld [vmem:[#allocation4 + $0x388] sm:$0xff]
        %v2267 = vld [vmem:[#allocation4 + $0x390] sm:$0xff]
        %v2268 = vld [vmem:[#allocation4 + $0x398] sm:$0xff]
        %v2269 = vld [vmem:[#allocation4 + $0x3a0] sm:$0xff]
        %v2270 = vld [vmem:[#allocation4 + $0x3a8] sm:$0xff]
        %v2271 = vld [vmem:[#allocation4 + $0x3b0] sm:$0xff]
        %v2272 = vld [vmem:[#allocation4 + $0x3b8] sm:$0xff]
        %v2273 = vld [vmem:[#allocation4 + $0x3c0] sm:$0xff]
        %v2274 = vld [vmem:[#allocation4 + $0x3c8] sm:$0xff]
        %v2275 = vld [vmem:[#allocation4 + $0x3d0] sm:$0xff]
        %v2276 = vld [vmem:[#allocation4 + $0x3d8] sm:$0xff]
        %v2277 = vld [vmem:[#allocation4 + $0x3e0] sm:$0xff]
        %v2278 = vld [vmem:[#allocation4 + $0x3e8] sm:$0xff]
        %v2279 = vld [vmem:[#allocation4 + $0x3f0] sm:$0xff]
        %v2280 = vld [vmem:[#allocation4 + $0x3f8] sm:$0xff]
        %v2409 = vunpack.c.l.b16 %v2153
        %v2410 = vunpack.c.h.b16 %v2153
        %v2411 = vunpack.c.l.b16 %v2154
        %v2412 = vunpack.c.h.b16 %v2154
        %v2413 = vunpack.c.l.b16 %v2155
        %v2414 = vunpack.c.h.b16 %v2155
        %v2415 = vunpack.c.l.b16 %v2156
        %v2416 = vunpack.c.h.b16 %v2156
        %v2417 = vunpack.c.l.b16 %v2157
        %v2418 = vunpack.c.h.b16 %v2157
        %v2419 = vunpack.c.l.b16 %v2158
        %v2420 = vunpack.c.h.b16 %v2158
        %v2421 = vunpack.c.l.b16 %v2159
        %v2422 = vunpack.c.h.b16 %v2159
        %v2423 = vunpack.c.l.b16 %v2160
        %v2424 = vunpack.c.h.b16 %v2160
        %v2425 = vunpack.c.l.b16 %v2161
        %v2426 = vunpack.c.h.b16 %v2161
        %v2427 = vunpack.c.l.b16 %v2162
        %v2428 = vunpack.c.h.b16 %v2162
        %v2429 = vunpack.c.l.b16 %v2163
        %v2430 = vunpack.c.h.b16 %v2163
        %v2431 = vunpack.c.l.b16 %v2164
        %v2432 = vunpack.c.h.b16 %v2164
        %v2433 = vunpack.c.l.b16 %v2165
        %v2434 = vunpack.c.h.b16 %v2165
        %v2435 = vunpack.c.l.b16 %v2166
        %v2436 = vunpack.c.h.b16 %v2166
        %v2437 = vunpack.c.l.b16 %v2167
        %v2438 = vunpack.c.h.b16 %v2167
        %v2439 = vunpack.c.l.b16 %v2168
        %v2440 = vunpack.c.h.b16 %v2168
        %v2441 = vunpack.c.l.b16 %v2169
        %v2442 = vunpack.c.h.b16 %v2169
        %v2443 = vunpack.c.l.b16 %v2170
        %v2444 = vunpack.c.h.b16 %v2170
        %v2445 = vunpack.c.l.b16 %v2171
        %v2446 = vunpack.c.h.b16 %v2171
        %v2447 = vunpack.c.l.b16 %v2172
        %v2448 = vunpack.c.h.b16 %v2172
        %v2449 = vunpack.c.l.b16 %v2173
        %v2450 = vunpack.c.h.b16 %v2173
        %v2451 = vunpack.c.l.b16 %v2174
        %v2452 = vunpack.c.h.b16 %v2174
        %v2453 = vunpack.c.l.b16 %v2175
        %v2454 = vunpack.c.h.b16 %v2175
        %v2455 = vunpack.c.l.b16 %v2176
        %v2456 = vunpack.c.h.b16 %v2176
        %v2457 = vunpack.c.l.b16 %v2177
        %v2458 = vunpack.c.h.b16 %v2177
        %v2459 = vunpack.c.l.b16 %v2178
        %v2460 = vunpack.c.h.b16 %v2178
        %v2461 = vunpack.c.l.b16 %v2179
        %v2462 = vunpack.c.h.b16 %v2179
        %v2463 = vunpack.c.l.b16 %v2180
        %v2464 = vunpack.c.h.b16 %v2180
        %v2465 = vunpack.c.l.b16 %v2181
        %v2466 = vunpack.c.h.b16 %v2181
        %v2467 = vunpack.c.l.b16 %v2182
        %v2468 = vunpack.c.h.b16 %v2182
        %v2469 = vunpack.c.l.b16 %v2183
        %v2470 = vunpack.c.h.b16 %v2183
        %v2471 = vunpack.c.l.b16 %v2184
        %v2472 = vunpack.c.h.b16 %v2184
        %v2473 = vunpack.c.l.b16 %v2185
        %v2474 = vunpack.c.h.b16 %v2185
        %v2475 = vunpack.c.l.b16 %v2186
        %v2476 = vunpack.c.h.b16 %v2186
        %v2477 = vunpack.c.l.b16 %v2187
        %v2478 = vunpack.c.h.b16 %v2187
        %v2479 = vunpack.c.l.b16 %v2188
        %v2480 = vunpack.c.h.b16 %v2188
        %v2481 = vunpack.c.l.b16 %v2189
        %v2482 = vunpack.c.h.b16 %v2189
        %v2483 = vunpack.c.l.b16 %v2190
        %v2484 = vunpack.c.h.b16 %v2190
        %v2485 = vunpack.c.l.b16 %v2191
        %v2486 = vunpack.c.h.b16 %v2191
        %v2487 = vunpack.c.l.b16 %v2192
        %v2488 = vunpack.c.h.b16 %v2192
        %v2489 = vunpack.c.l.b16 %v2193
        %v2490 = vunpack.c.h.b16 %v2193
        %v2491 = vunpack.c.l.b16 %v2194
        %v2492 = vunpack.c.h.b16 %v2194
        %v2493 = vunpack.c.l.b16 %v2195
        %v2494 = vunpack.c.h.b16 %v2195
        %v2495 = vunpack.c.l.b16 %v2196
        %v2496 = vunpack.c.h.b16 %v2196
        %v2497 = vunpack.c.l.b16 %v2197
        %v2498 = vunpack.c.h.b16 %v2197
        %v2499 = vunpack.c.l.b16 %v2198
        %v2500 = vunpack.c.h.b16 %v2198
        %v2501 = vunpack.c.l.b16 %v2199
        %v2502 = vunpack.c.h.b16 %v2199
        %v2503 = vunpack.c.l.b16 %v2200
        %v2504 = vunpack.c.h.b16 %v2200
        %v2505 = vunpack.c.l.b16 %v2201
        %v2506 = vunpack.c.h.b16 %v2201
        %v2507 = vunpack.c.l.b16 %v2202
        %v2508 = vunpack.c.h.b16 %v2202
        %v2509 = vunpack.c.l.b16 %v2203
        %v2510 = vunpack.c.h.b16 %v2203
        %v2511 = vunpack.c.l.b16 %v2204
        %v2512 = vunpack.c.h.b16 %v2204
        %v2513 = vunpack.c.l.b16 %v2205
        %v2514 = vunpack.c.h.b16 %v2205
        %v2515 = vunpack.c.l.b16 %v2206
        %v2516 = vunpack.c.h.b16 %v2206
        %v2517 = vunpack.c.l.b16 %v2207
        %v2518 = vunpack.c.h.b16 %v2207
        %v2519 = vunpack.c.l.b16 %v2208
        %v2520 = vunpack.c.h.b16 %v2208
        %v2521 = vunpack.c.l.b16 %v2209
        %v2522 = vunpack.c.h.b16 %v2209
        %v2523 = vunpack.c.l.b16 %v2210
        %v2524 = vunpack.c.h.b16 %v2210
        %v2525 = vunpack.c.l.b16 %v2211
        %v2526 = vunpack.c.h.b16 %v2211
        %v2527 = vunpack.c.l.b16 %v2212
        %v2528 = vunpack.c.h.b16 %v2212
        %v2529 = vunpack.c.l.b16 %v2213
        %v2530 = vunpack.c.h.b16 %v2213
        %v2531 = vunpack.c.l.b16 %v2214
        %v2532 = vunpack.c.h.b16 %v2214
        %v2533 = vunpack.c.l.b16 %v2215
        %v2534 = vunpack.c.h.b16 %v2215
        %v2535 = vunpack.c.l.b16 %v2216
        %v2536 = vunpack.c.h.b16 %v2216
        %v2537 = vunpack.c.l.b16 %v2217
        %v2538 = vunpack.c.h.b16 %v2217
        %v2539 = vunpack.c.l.b16 %v2218
        %v2540 = vunpack.c.h.b16 %v2218
        %v2541 = vunpack.c.l.b16 %v2219
        %v2542 = vunpack.c.h.b16 %v2219
        %v2543 = vunpack.c.l.b16 %v2220
        %v2544 = vunpack.c.h.b16 %v2220
        %v2545 = vunpack.c.l.b16 %v2221
        %v2546 = vunpack.c.h.b16 %v2221
        %v2547 = vunpack.c.l.b16 %v2222
        %v2548 = vunpack.c.h.b16 %v2222
        %v2549 = vunpack.c.l.b16 %v2223
        %v2550 = vunpack.c.h.b16 %v2223
        %v2551 = vunpack.c.l.b16 %v2224
        %v2552 = vunpack.c.h.b16 %v2224
        %v2553 = vunpack.c.l.b16 %v2225
        %v2554 = vunpack.c.h.b16 %v2225
        %v2555 = vunpack.c.l.b16 %v2226
        %v2556 = vunpack.c.h.b16 %v2226
        %v2557 = vunpack.c.l.b16 %v2227
        %v2558 = vunpack.c.h.b16 %v2227
        %v2559 = vunpack.c.l.b16 %v2228
        %v2560 = vunpack.c.h.b16 %v2228
        %v2561 = vunpack.c.l.b16 %v2229
        %v2562 = vunpack.c.h.b16 %v2229
        %v2563 = vunpack.c.l.b16 %v2230
        %v2564 = vunpack.c.h.b16 %v2230
        %v2565 = vunpack.c.l.b16 %v2231
        %v2566 = vunpack.c.h.b16 %v2231
        %v2567 = vunpack.c.l.b16 %v2232
        %v2568 = vunpack.c.h.b16 %v2232
        %v2569 = vunpack.c.l.b16 %v2233
        %v2570 = vunpack.c.h.b16 %v2233
        %v2571 = vunpack.c.l.b16 %v2234
        %v2572 = vunpack.c.h.b16 %v2234
        %v2573 = vunpack.c.l.b16 %v2235
        %v2574 = vunpack.c.h.b16 %v2235
        %v2575 = vunpack.c.l.b16 %v2236
        %v2576 = vunpack.c.h.b16 %v2236
        %v2577 = vunpack.c.l.b16 %v2237
        %v2578 = vunpack.c.h.b16 %v2237
        %v2579 = vunpack.c.l.b16 %v2238
        %v2580 = vunpack.c.h.b16 %v2238
        %v2581 = vunpack.c.l.b16 %v2239
        %v2582 = vunpack.c.h.b16 %v2239
        %v2583 = vunpack.c.l.b16 %v2240
        %v2584 = vunpack.c.h.b16 %v2240
        %v2585 = vunpack.c.l.b16 %v2241
        %v2586 = vunpack.c.h.b16 %v2241
        %v2587 = vunpack.c.l.b16 %v2242
        %v2588 = vunpack.c.h.b16 %v2242
        %v2589 = vunpack.c.l.b16 %v2243
        %v2590 = vunpack.c.h.b16 %v2243
        %v2591 = vunpack.c.l.b16 %v2244
        %v2592 = vunpack.c.h.b16 %v2244
        %v2593 = vunpack.c.l.b16 %v2245
        %v2594 = vunpack.c.h.b16 %v2245
        %v2595 = vunpack.c.l.b16 %v2246
        %v2596 = vunpack.c.h.b16 %v2246
        %v2597 = vunpack.c.l.b16 %v2247
        %v2598 = vunpack.c.h.b16 %v2247
        %v2599 = vunpack.c.l.b16 %v2248
        %v2600 = vunpack.c.h.b16 %v2248
        %v2601 = vunpack.c.l.b16 %v2249
        %v2602 = vunpack.c.h.b16 %v2249
        %v2603 = vunpack.c.l.b16 %v2250
        %v2604 = vunpack.c.h.b16 %v2250
        %v2605 = vunpack.c.l.b16 %v2251
        %v2606 = vunpack.c.h.b16 %v2251
        %v2607 = vunpack.c.l.b16 %v2252
        %v2608 = vunpack.c.h.b16 %v2252
        %v2609 = vunpack.c.l.b16 %v2253
        %v2610 = vunpack.c.h.b16 %v2253
        %v2611 = vunpack.c.l.b16 %v2254
        %v2612 = vunpack.c.h.b16 %v2254
        %v2613 = vunpack.c.l.b16 %v2255
        %v2614 = vunpack.c.h.b16 %v2255
        %v2615 = vunpack.c.l.b16 %v2256
        %v2616 = vunpack.c.h.b16 %v2256
        %v2617 = vunpack.c.l.b16 %v2257
        %v2618 = vunpack.c.h.b16 %v2257
        %v2619 = vunpack.c.l.b16 %v2258
        %v2620 = vunpack.c.h.b16 %v2258
        %v2621 = vunpack.c.l.b16 %v2259
        %v2622 = vunpack.c.h.b16 %v2259
        %v2623 = vunpack.c.l.b16 %v2260
        %v2624 = vunpack.c.h.b16 %v2260
        %v2625 = vunpack.c.l.b16 %v2261
        %v2626 = vunpack.c.h.b16 %v2261
        %v2627 = vunpack.c.l.b16 %v2262
        %v2628 = vunpack.c.h.b16 %v2262
        %v2629 = vunpack.c.l.b16 %v2263
        %v2630 = vunpack.c.h.b16 %v2263
        %v2631 = vunpack.c.l.b16 %v2264
        %v2632 = vunpack.c.h.b16 %v2264
        %v2633 = vunpack.c.l.b16 %v2265
        %v2634 = vunpack.c.h.b16 %v2265
        %v2635 = vunpack.c.l.b16 %v2266
        %v2636 = vunpack.c.h.b16 %v2266
        %v2637 = vunpack.c.l.b16 %v2267
        %v2638 = vunpack.c.h.b16 %v2267
        %v2639 = vunpack.c.l.b16 %v2268
        %v2640 = vunpack.c.h.b16 %v2268
        %v2641 = vunpack.c.l.b16 %v2269
        %v2642 = vunpack.c.h.b16 %v2269
        %v2643 = vunpack.c.l.b16 %v2270
        %v2644 = vunpack.c.h.b16 %v2270
        %v2645 = vunpack.c.l.b16 %v2271
        %v2646 = vunpack.c.h.b16 %v2271
        %v2647 = vunpack.c.l.b16 %v2272
        %v2648 = vunpack.c.h.b16 %v2272
        %v2649 = vunpack.c.l.b16 %v2273
        %v2650 = vunpack.c.h.b16 %v2273
        %v2651 = vunpack.c.l.b16 %v2274
        %v2652 = vunpack.c.h.b16 %v2274
        %v2653 = vunpack.c.l.b16 %v2275
        %v2654 = vunpack.c.h.b16 %v2275
        %v2655 = vunpack.c.l.b16 %v2276
        %v2656 = vunpack.c.h.b16 %v2276
        %v2657 = vunpack.c.l.b16 %v2277
        %v2658 = vunpack.c.h.b16 %v2277
        %v2659 = vunpack.c.l.b16 %v2278
        %v2660 = vunpack.c.h.b16 %v2278
        %v2661 = vunpack.c.l.b16 %v2279
        %v2662 = vunpack.c.h.b16 %v2279
        %v2663 = vunpack.c.l.b16 %v2280
        %v2664 = vunpack.c.h.b16 %v2280
        %v2665 = vpack.c.b16 %v2417, %v2409
        %v2666 = vpack.c.b16 %v2418, %v2410
        %v2667 = vpack.c.b16 %v2419, %v2411
        %v2668 = vpack.c.b16 %v2420, %v2412
        %v2669 = vpack.c.b16 %v2421, %v2413
        %v2670 = vpack.c.b16 %v2422, %v2414
        %v2671 = vpack.c.b16 %v2423, %v2415
        %v2672 = vpack.c.b16 %v2424, %v2416
        %v2673 = vpack.c.b16 %v2433, %v2425
        %v2674 = vpack.c.b16 %v2434, %v2426
        %v2675 = vpack.c.b16 %v2435, %v2427
        %v2676 = vpack.c.b16 %v2436, %v2428
        %v2677 = vpack.c.b16 %v2437, %v2429
        %v2678 = vpack.c.b16 %v2438, %v2430
        %v2679 = vpack.c.b16 %v2439, %v2431
        %v2680 = vpack.c.b16 %v2440, %v2432
        %v2681 = vpack.c.b16 %v2449, %v2441
        %v2682 = vpack.c.b16 %v2450, %v2442
        %v2683 = vpack.c.b16 %v2451, %v2443
        %v2684 = vpack.c.b16 %v2452, %v2444
        %v2685 = vpack.c.b16 %v2453, %v2445
        %v2686 = vpack.c.b16 %v2454, %v2446
        %v2687 = vpack.c.b16 %v2455, %v2447
        %v2688 = vpack.c.b16 %v2456, %v2448
        %v2689 = vpack.c.b16 %v2465, %v2457
        %v2690 = vpack.c.b16 %v2466, %v2458
        %v2691 = vpack.c.b16 %v2467, %v2459
        %v2692 = vpack.c.b16 %v2468, %v2460
        %v2693 = vpack.c.b16 %v2469, %v2461
        %v2694 = vpack.c.b16 %v2470, %v2462
        %v2695 = vpack.c.b16 %v2471, %v2463
        %v2696 = vpack.c.b16 %v2472, %v2464
        %v2697 = vpack.c.b16 %v2481, %v2473
        %v2698 = vpack.c.b16 %v2482, %v2474
        %v2699 = vpack.c.b16 %v2483, %v2475
        %v2700 = vpack.c.b16 %v2484, %v2476
        %v2701 = vpack.c.b16 %v2485, %v2477
        %v2702 = vpack.c.b16 %v2486, %v2478
        %v2703 = vpack.c.b16 %v2487, %v2479
        %v2704 = vpack.c.b16 %v2488, %v2480
        %v2705 = vpack.c.b16 %v2497, %v2489
        %v2706 = vpack.c.b16 %v2498, %v2490
        %v2707 = vpack.c.b16 %v2499, %v2491
        %v2708 = vpack.c.b16 %v2500, %v2492
        %v2709 = vpack.c.b16 %v2501, %v2493
        %v2710 = vpack.c.b16 %v2502, %v2494
        %v2711 = vpack.c.b16 %v2503, %v2495
        %v2712 = vpack.c.b16 %v2504, %v2496
        %v2713 = vpack.c.b16 %v2513, %v2505
        %v2714 = vpack.c.b16 %v2514, %v2506
        %v2715 = vpack.c.b16 %v2515, %v2507
        %v2716 = vpack.c.b16 %v2516, %v2508
        %v2717 = vpack.c.b16 %v2517, %v2509
        %v2718 = vpack.c.b16 %v2518, %v2510
        %v2719 = vpack.c.b16 %v2519, %v2511
        %v2720 = vpack.c.b16 %v2520, %v2512
        %v2721 = vpack.c.b16 %v2529, %v2521
        %v2722 = vpack.c.b16 %v2530, %v2522
        %v2723 = vpack.c.b16 %v2531, %v2523
        %v2724 = vpack.c.b16 %v2532, %v2524
        %v2725 = vpack.c.b16 %v2533, %v2525
        %v2726 = vpack.c.b16 %v2534, %v2526
        %v2727 = vpack.c.b16 %v2535, %v2527
        %v2728 = vpack.c.b16 %v2536, %v2528
        %v2729 = vpack.c.b16 %v2545, %v2537
        %v2730 = vpack.c.b16 %v2546, %v2538
        %v2731 = vpack.c.b16 %v2547, %v2539
        %v2732 = vpack.c.b16 %v2548, %v2540
        %v2733 = vpack.c.b16 %v2549, %v2541
        %v2734 = vpack.c.b16 %v2550, %v2542
        %v2735 = vpack.c.b16 %v2551, %v2543
        %v2736 = vpack.c.b16 %v2552, %v2544
        %v2737 = vpack.c.b16 %v2561, %v2553
        %v2738 = vpack.c.b16 %v2562, %v2554
        %v2739 = vpack.c.b16 %v2563, %v2555
        %v2740 = vpack.c.b16 %v2564, %v2556
        %v2741 = vpack.c.b16 %v2565, %v2557
        %v2742 = vpack.c.b16 %v2566, %v2558
        %v2743 = vpack.c.b16 %v2567, %v2559
        %v2744 = vpack.c.b16 %v2568, %v2560
        %v2745 = vpack.c.b16 %v2577, %v2569
        %v2746 = vpack.c.b16 %v2578, %v2570
        %v2747 = vpack.c.b16 %v2579, %v2571
        %v2748 = vpack.c.b16 %v2580, %v2572
        %v2749 = vpack.c.b16 %v2581, %v2573
        %v2750 = vpack.c.b16 %v2582, %v2574
        %v2751 = vpack.c.b16 %v2583, %v2575
        %v2752 = vpack.c.b16 %v2584, %v2576
        %v2753 = vpack.c.b16 %v2593, %v2585
        %v2754 = vpack.c.b16 %v2594, %v2586
        %v2755 = vpack.c.b16 %v2595, %v2587
        %v2756 = vpack.c.b16 %v2596, %v2588
        %v2757 = vpack.c.b16 %v2597, %v2589
        %v2758 = vpack.c.b16 %v2598, %v2590
        %v2759 = vpack.c.b16 %v2599, %v2591
        %v2760 = vpack.c.b16 %v2600, %v2592
        %v2761 = vpack.c.b16 %v2609, %v2601
        %v2762 = vpack.c.b16 %v2610, %v2602
        %v2763 = vpack.c.b16 %v2611, %v2603
        %v2764 = vpack.c.b16 %v2612, %v2604
        %v2765 = vpack.c.b16 %v2613, %v2605
        %v2766 = vpack.c.b16 %v2614, %v2606
        %v2767 = vpack.c.b16 %v2615, %v2607
        %v2768 = vpack.c.b16 %v2616, %v2608
        %v2769 = vpack.c.b16 %v2625, %v2617
        %v2770 = vpack.c.b16 %v2626, %v2618
        %v2771 = vpack.c.b16 %v2627, %v2619
        %v2772 = vpack.c.b16 %v2628, %v2620
        %v2773 = vpack.c.b16 %v2629, %v2621
        %v2774 = vpack.c.b16 %v2630, %v2622
        %v2775 = vpack.c.b16 %v2631, %v2623
        %v2776 = vpack.c.b16 %v2632, %v2624
        %v2777 = vpack.c.b16 %v2641, %v2633
        %v2778 = vpack.c.b16 %v2642, %v2634
        %v2779 = vpack.c.b16 %v2643, %v2635
        %v2780 = vpack.c.b16 %v2644, %v2636
        %v2781 = vpack.c.b16 %v2645, %v2637
        %v2782 = vpack.c.b16 %v2646, %v2638
        %v2783 = vpack.c.b16 %v2647, %v2639
        %v2784 = vpack.c.b16 %v2648, %v2640
        %v2785 = vpack.c.b16 %v2657, %v2649
        %v2786 = vpack.c.b16 %v2658, %v2650
        %v2787 = vpack.c.b16 %v2659, %v2651
        %v2788 = vpack.c.b16 %v2660, %v2652
        %v2789 = vpack.c.b16 %v2661, %v2653
        %v2790 = vpack.c.b16 %v2662, %v2654
        %v2791 = vpack.c.b16 %v2663, %v2655
        %v2792 = vpack.c.b16 %v2664, %v2656
        %2921 = vmatpush.bf16.msra.mxu0 %v2721
        %2922 = vmatpush.bf16.msra.mxu0 %v2713
        %2923 = vmatpush.bf16.msra.mxu0 %v2705
        %2924 = vmatpush.bf16.msra.mxu0 %v2697
        %2925 = vmatpush.bf16.msra.mxu0 %v2689
        %2926 = vmatpush.bf16.msra.mxu0 %v2681
        %2927 = vmatpush.bf16.msra.mxu0 %v2673
        %2928 = vmatpush.bf16.msra.mxu0 %v2665
        %2929 = vmatmul.bf16.gmra.mxu0 %v2151
        %v2930 = vpop.f32.mrf.mxu0
        %v2931 = vadd.f32 0.0, %v2930
        %v2932 = vpop.f32.mrf.mxu0
        %2933 = vdwg.mxu0
        %2934 = vmatpush.bf16.msra.mxu0 %v2785
        %2935 = vmatpush.bf16.msra.mxu0 %v2777
        %2936 = vmatpush.bf16.msra.mxu0 %v2769
        %2937 = vmatpush.bf16.msra.mxu0 %v2761
        %2938 = vmatpush.bf16.msra.mxu0 %v2753
        %2939 = vmatpush.bf16.msra.mxu0 %v2745
        %2940 = vmatpush.bf16.msra.mxu0 %v2737
        %2941 = vmatpush.bf16.msra.mxu0 %v2729
        %2942 = vmatmul.bf16.gmra.mxu0 %v2152
        %v2943 = vpop.f32.mrf.mxu0
        %v2944 = vadd.f32 %v2931, %v2943
        %v2945 = vpop.f32.mrf.mxu0
        %2946 = vdwg.mxu0
        %2947 = vmatpush.bf16.msra.mxu0 %v2722
        %2948 = vmatpush.bf16.msra.mxu0 %v2714
        %2949 = vmatpush.bf16.msra.mxu0 %v2706
        %2950 = vmatpush.bf16.msra.mxu0 %v2698
        %2951 = vmatpush.bf16.msra.mxu0 %v2690
        %2952 = vmatpush.bf16.msra.mxu0 %v2682
        %2953 = vmatpush.bf16.msra.mxu0 %v2674
        %2954 = vmatpush.bf16.msra.mxu0 %v2666
        %2955 = vmatmul.bf16.gmra.mxu0 %v2151
        %v2956 = vpop.f32.mrf.mxu0
        %v2957 = vadd.f32 0.0, %v2956
        %v2958 = vpop.f32.mrf.mxu0
        %2959 = vdwg.mxu0
        %2960 = vmatpush.bf16.msra.mxu0 %v2786
        %2961 = vmatpush.bf16.msra.mxu0 %v2778
        %2962 = vmatpush.bf16.msra.mxu0 %v2770
        %2963 = vmatpush.bf16.msra.mxu0 %v2762
        %2964 = vmatpush.bf16.msra.mxu0 %v2754
        %2965 = vmatpush.bf16.msra.mxu0 %v2746
        %2966 = vmatpush.bf16.msra.mxu0 %v2738
        %2967 = vmatpush.bf16.msra.mxu0 %v2730
        %2968 = vmatmul.bf16.gmra.mxu0 %v2152
        %v2969 = vpop.f32.mrf.mxu0
        %v2970 = vadd.f32 %v2957, %v2969
        %v2971 = vpop.f32.mrf.mxu0
        %2972 = vdwg.mxu0
        %2973 = vmatpush.bf16.msra.mxu0 %v2723
        %2974 = vmatpush.bf16.msra.mxu0 %v2715
        %2975 = vmatpush.bf16.msra.mxu0 %v2707
        %2976 = vmatpush.bf16.msra.mxu0 %v2699
        %2977 = vmatpush.bf16.msra.mxu0 %v2691
        %2978 = vmatpush.bf16.msra.mxu0 %v2683
        %2979 = vmatpush.bf16.msra.mxu0 %v2675
        %2980 = vmatpush.bf16.msra.mxu0 %v2667
        %2981 = vmatmul.bf16.gmra.mxu0 %v2151
        %v2982 = vpop.f32.mrf.mxu0
        %v2983 = vadd.f32 0.0, %v2982
        %v2984 = vpop.f32.mrf.mxu0
        %2985 = vdwg.mxu0
        %2986 = vmatpush.bf16.msra.mxu0 %v2787
        %2987 = vmatpush.bf16.msra.mxu0 %v2779
        %2988 = vmatpush.bf16.msra.mxu0 %v2771
        %2989 = vmatpush.bf16.msra.mxu0 %v2763
        %2990 = vmatpush.bf16.msra.mxu0 %v2755
        %2991 = vmatpush.bf16.msra.mxu0 %v2747
        %2992 = vmatpush.bf16.msra.mxu0 %v2739
        %2993 = vmatpush.bf16.msra.mxu0 %v2731
        %2994 = vmatmul.bf16.gmra.mxu0 %v2152
        %v2995 = vpop.f32.mrf.mxu0
        %v2996 = vadd.f32 %v2983, %v2995
        %v2997 = vpop.f32.mrf.mxu0
        %2998 = vdwg.mxu0
        %2999 = vmatpush.bf16.msra.mxu0 %v2724
        %3000 = vmatpush.bf16.msra.mxu0 %v2716
        %3001 = vmatpush.bf16.msra.mxu0 %v2708
        %3002 = vmatpush.bf16.msra.mxu0 %v2700
        %3003 = vmatpush.bf16.msra.mxu0 %v2692
        %3004 = vmatpush.bf16.msra.mxu0 %v2684
        %3005 = vmatpush.bf16.msra.mxu0 %v2676
        %3006 = vmatpush.bf16.msra.mxu0 %v2668
        %3007 = vmatmul.bf16.gmra.mxu0 %v2151
        %v3008 = vpop.f32.mrf.mxu0
        %v3009 = vadd.f32 0.0, %v3008
        %v3010 = vpop.f32.mrf.mxu0
        %3011 = vdwg.mxu0
        %3012 = vmatpush.bf16.msra.mxu0 %v2788
        %3013 = vmatpush.bf16.msra.mxu0 %v2780
        %3014 = vmatpush.bf16.msra.mxu0 %v2772
        %3015 = vmatpush.bf16.msra.mxu0 %v2764
        %3016 = vmatpush.bf16.msra.mxu0 %v2756
        %3017 = vmatpush.bf16.msra.mxu0 %v2748
        %3018 = vmatpush.bf16.msra.mxu0 %v2740
        %3019 = vmatpush.bf16.msra.mxu0 %v2732
        %3020 = vmatmul.bf16.gmra.mxu0 %v2152
        %v3021 = vpop.f32.mrf.mxu0
        %v3022 = vadd.f32 %v3009, %v3021
        %v3023 = vpop.f32.mrf.mxu0
        %3024 = vdwg.mxu0
        %3025 = vmatpush.bf16.msra.mxu0 %v2725
        %3026 = vmatpush.bf16.msra.mxu0 %v2717
        %3027 = vmatpush.bf16.msra.mxu0 %v2709
        %3028 = vmatpush.bf16.msra.mxu0 %v2701
        %3029 = vmatpush.bf16.msra.mxu0 %v2693
        %3030 = vmatpush.bf16.msra.mxu0 %v2685
        %3031 = vmatpush.bf16.msra.mxu0 %v2677
        %3032 = vmatpush.bf16.msra.mxu0 %v2669
        %3033 = vmatmul.bf16.gmra.mxu0 %v2151
        %v3034 = vpop.f32.mrf.mxu0
        %v3035 = vadd.f32 0.0, %v3034
        %v3036 = vpop.f32.mrf.mxu0
        %3037 = vdwg.mxu0
        %3038 = vmatpush.bf16.msra.mxu0 %v2789
        %3039 = vmatpush.bf16.msra.mxu0 %v2781
        %3040 = vmatpush.bf16.msra.mxu0 %v2773
        %3041 = vmatpush.bf16.msra.mxu0 %v2765
        %3042 = vmatpush.bf16.msra.mxu0 %v2757
        %3043 = vmatpush.bf16.msra.mxu0 %v2749
        %3044 = vmatpush.bf16.msra.mxu0 %v2741
        %3045 = vmatpush.bf16.msra.mxu0 %v2733
        %3046 = vmatmul.bf16.gmra.mxu0 %v2152
        %v3047 = vpop.f32.mrf.mxu0
        %v3048 = vadd.f32 %v3035, %v3047
        %v3049 = vpop.f32.mrf.mxu0
        %3050 = vdwg.mxu0
        %3051 = vmatpush.bf16.msra.mxu0 %v2726
        %3052 = vmatpush.bf16.msra.mxu0 %v2718
        %3053 = vmatpush.bf16.msra.mxu0 %v2710
        %3054 = vmatpush.bf16.msra.mxu0 %v2702
        %3055 = vmatpush.bf16.msra.mxu0 %v2694
        %3056 = vmatpush.bf16.msra.mxu0 %v2686
        %3057 = vmatpush.bf16.msra.mxu0 %v2678
        %3058 = vmatpush.bf16.msra.mxu0 %v2670
        %3059 = vmatmul.bf16.gmra.mxu0 %v2151
        %v3060 = vpop.f32.mrf.mxu0
        %v3061 = vadd.f32 0.0, %v3060
        %v3062 = vpop.f32.mrf.mxu0
        %3063 = vdwg.mxu0
        %3064 = vmatpush.bf16.msra.mxu0 %v2790
        %3065 = vmatpush.bf16.msra.mxu0 %v2782
        %3066 = vmatpush.bf16.msra.mxu0 %v2774
        %3067 = vmatpush.bf16.msra.mxu0 %v2766
        %3068 = vmatpush.bf16.msra.mxu0 %v2758
        %3069 = vmatpush.bf16.msra.mxu0 %v2750
        %3070 = vmatpush.bf16.msra.mxu0 %v2742
        %3071 = vmatpush.bf16.msra.mxu0 %v2734
        %3072 = vmatmul.bf16.gmra.mxu0 %v2152
        %v3073 = vpop.f32.mrf.mxu0
        %v3074 = vadd.f32 %v3061, %v3073
        %v3075 = vpop.f32.mrf.mxu0
        %3076 = vdwg.mxu0
        %3077 = vmatpush.bf16.msra.mxu0 %v2727
        %3078 = vmatpush.bf16.msra.mxu0 %v2719
        %3079 = vmatpush.bf16.msra.mxu0 %v2711
        %3080 = vmatpush.bf16.msra.mxu0 %v2703
        %3081 = vmatpush.bf16.msra.mxu0 %v2695
        %3082 = vmatpush.bf16.msra.mxu0 %v2687
        %3083 = vmatpush.bf16.msra.mxu0 %v2679
        %3084 = vmatpush.bf16.msra.mxu0 %v2671
        %3085 = vmatmul.bf16.gmra.mxu0 %v2151
        %v3086 = vpop.f32.mrf.mxu0
        %v3087 = vadd.f32 0.0, %v3086
        %v3088 = vpop.f32.mrf.mxu0
        %3089 = vdwg.mxu0
        %3090 = vmatpush.bf16.msra.mxu0 %v2791
        %3091 = vmatpush.bf16.msra.mxu0 %v2783
        %3092 = vmatpush.bf16.msra.mxu0 %v2775
        %3093 = vmatpush.bf16.msra.mxu0 %v2767
        %3094 = vmatpush.bf16.msra.mxu0 %v2759
        %3095 = vmatpush.bf16.msra.mxu0 %v2751
        %3096 = vmatpush.bf16.msra.mxu0 %v2743
        %3097 = vmatpush.bf16.msra.mxu0 %v2735
        %3098 = vmatmul.bf16.gmra.mxu0 %v2152
        %v3099 = vpop.f32.mrf.mxu0
        %v3100 = vadd.f32 %v3087, %v3099
        %v3101 = vpop.f32.mrf.mxu0
        %3102 = vdwg.mxu0
        %3103 = vmatpush.bf16.msra.mxu0 %v2728
        %3104 = vmatpush.bf16.msra.mxu0 %v2720
        %3105 = vmatpush.bf16.msra.mxu0 %v2712
        %3106 = vmatpush.bf16.msra.mxu0 %v2704
        %3107 = vmatpush.bf16.msra.mxu0 %v2696
        %3108 = vmatpush.bf16.msra.mxu0 %v2688
        %3109 = vmatpush.bf16.msra.mxu0 %v2680
        %3110 = vmatpush.bf16.msra.mxu0 %v2672
        %3111 = vmatmul.bf16.gmra.mxu0 %v2151
        %v3112 = vpop.f32.mrf.mxu0
        %v3113 = vadd.f32 0.0, %v3112
        %v3114 = vpop.f32.mrf.mxu0
        %3115 = vdwg.mxu0
        %3116 = vmatpush.bf16.msra.mxu0 %v2792
        %3117 = vmatpush.bf16.msra.mxu0 %v2784
        %3118 = vmatpush.bf16.msra.mxu0 %v2776
        %3119 = vmatpush.bf16.msra.mxu0 %v2768
        %3120 = vmatpush.bf16.msra.mxu0 %v2760
        %3121 = vmatpush.bf16.msra.mxu0 %v2752
        %3122 = vmatpush.bf16.msra.mxu0 %v2744
        %3123 = vmatpush.bf16.msra.mxu0 %v2736
        %3124 = vmatmul.bf16.gmra.mxu0 %v2152
        %v3125 = vpop.f32.mrf.mxu0
        %v3126 = vadd.f32 %v3113, %v3125
        %v3127 = vpop.f32.mrf.mxu0
        %3128 = vdwg.mxu0
        %v3193 = vunpack.c.l.b16 %v2087
        %v3194 = vunpack.c.h.b16 %v2087
        %v3195 = vunpack.c.l.b16 %v2088
        %v3196 = vunpack.c.h.b16 %v2088
        %v3197 = vunpack.c.l.b16 %v2089
        %v3198 = vunpack.c.h.b16 %v2089
        %v3199 = vunpack.c.l.b16 %v2090
        %v3200 = vunpack.c.h.b16 %v2090
        %v3201 = vunpack.c.l.b16 %v2091
        %v3202 = vunpack.c.h.b16 %v2091
        %v3203 = vunpack.c.l.b16 %v2092
        %v3204 = vunpack.c.h.b16 %v2092
        %v3205 = vunpack.c.l.b16 %v2093
        %v3206 = vunpack.c.h.b16 %v2093
        %v3207 = vunpack.c.l.b16 %v2094
        %v3208 = vunpack.c.h.b16 %v2094
        %v3209 = vunpack.c.l.b16 %v2095
        %v3210 = vunpack.c.h.b16 %v2095
        %v3211 = vunpack.c.l.b16 %v2096
        %v3212 = vunpack.c.h.b16 %v2096
        %v3213 = vunpack.c.l.b16 %v2097
        %v3214 = vunpack.c.h.b16 %v2097
        %v3215 = vunpack.c.l.b16 %v2098
        %v3216 = vunpack.c.h.b16 %v2098
        %v3217 = vunpack.c.l.b16 %v2099
        %v3218 = vunpack.c.h.b16 %v2099
        %v3219 = vunpack.c.l.b16 %v2100
        %v3220 = vunpack.c.h.b16 %v2100
        %v3221 = vunpack.c.l.b16 %v2101
        %v3222 = vunpack.c.h.b16 %v2101
        %v3223 = vunpack.c.l.b16 %v2102
        %v3224 = vunpack.c.h.b16 %v2102
        %v3225 = vunpack.c.l.b16 %v2103
        %v3226 = vunpack.c.h.b16 %v2103
        %v3227 = vunpack.c.l.b16 %v2104
        %v3228 = vunpack.c.h.b16 %v2104
        %v3229 = vunpack.c.l.b16 %v2105
        %v3230 = vunpack.c.h.b16 %v2105
        %v3231 = vunpack.c.l.b16 %v2106
        %v3232 = vunpack.c.h.b16 %v2106
        %v3233 = vunpack.c.l.b16 %v2107
        %v3234 = vunpack.c.h.b16 %v2107
        %v3235 = vunpack.c.l.b16 %v2108
        %v3236 = vunpack.c.h.b16 %v2108
        %v3237 = vunpack.c.l.b16 %v2109
        %v3238 = vunpack.c.h.b16 %v2109
        %v3239 = vunpack.c.l.b16 %v2110
        %v3240 = vunpack.c.h.b16 %v2110
        %v3241 = vunpack.c.l.b16 %v2111
        %v3242 = vunpack.c.h.b16 %v2111
        %v3243 = vunpack.c.l.b16 %v2112
        %v3244 = vunpack.c.h.b16 %v2112
        %v3245 = vunpack.c.l.b16 %v2113
        %v3246 = vunpack.c.h.b16 %v2113
        %v3247 = vunpack.c.l.b16 %v2114
        %v3248 = vunpack.c.h.b16 %v2114
        %v3249 = vunpack.c.l.b16 %v2115
        %v3250 = vunpack.c.h.b16 %v2115
        %v3251 = vunpack.c.l.b16 %v2116
        %v3252 = vunpack.c.h.b16 %v2116
        %v3253 = vunpack.c.l.b16 %v2117
        %v3254 = vunpack.c.h.b16 %v2117
        %v3255 = vunpack.c.l.b16 %v2118
        %v3256 = vunpack.c.h.b16 %v2118
        %v3257 = vunpack.c.l.b16 %v2119
        %v3258 = vunpack.c.h.b16 %v2119
        %v3259 = vunpack.c.l.b16 %v2120
        %v3260 = vunpack.c.h.b16 %v2120
        %v3261 = vunpack.c.l.b16 %v2121
        %v3262 = vunpack.c.h.b16 %v2121
        %v3263 = vunpack.c.l.b16 %v2122
        %v3264 = vunpack.c.h.b16 %v2122
        %v3265 = vunpack.c.l.b16 %v2123
        %v3266 = vunpack.c.h.b16 %v2123
        %v3267 = vunpack.c.l.b16 %v2124
        %v3268 = vunpack.c.h.b16 %v2124
        %v3269 = vunpack.c.l.b16 %v2125
        %v3270 = vunpack.c.h.b16 %v2125
        %v3271 = vunpack.c.l.b16 %v2126
        %v3272 = vunpack.c.h.b16 %v2126
        %v3273 = vunpack.c.l.b16 %v2127
        %v3274 = vunpack.c.h.b16 %v2127
        %v3275 = vunpack.c.l.b16 %v2128
        %v3276 = vunpack.c.h.b16 %v2128
        %v3277 = vunpack.c.l.b16 %v2129
        %v3278 = vunpack.c.h.b16 %v2129
        %v3279 = vunpack.c.l.b16 %v2130
        %v3280 = vunpack.c.h.b16 %v2130
        %v3281 = vunpack.c.l.b16 %v2131
        %v3282 = vunpack.c.h.b16 %v2131
        %v3283 = vunpack.c.l.b16 %v2132
        %v3284 = vunpack.c.h.b16 %v2132
        %v3285 = vunpack.c.l.b16 %v2133
        %v3286 = vunpack.c.h.b16 %v2133
        %v3287 = vunpack.c.l.b16 %v2134
        %v3288 = vunpack.c.h.b16 %v2134
        %v3289 = vunpack.c.l.b16 %v2135
        %v3290 = vunpack.c.h.b16 %v2135
        %v3291 = vunpack.c.l.b16 %v2136
        %v3292 = vunpack.c.h.b16 %v2136
        %v3293 = vunpack.c.l.b16 %v2137
        %v3294 = vunpack.c.h.b16 %v2137
        %v3295 = vunpack.c.l.b16 %v2138
        %v3296 = vunpack.c.h.b16 %v2138
        %v3297 = vunpack.c.l.b16 %v2139
        %v3298 = vunpack.c.h.b16 %v2139
        %v3299 = vunpack.c.l.b16 %v2140
        %v3300 = vunpack.c.h.b16 %v2140
        %v3301 = vunpack.c.l.b16 %v2141
        %v3302 = vunpack.c.h.b16 %v2141
        %v3303 = vunpack.c.l.b16 %v2142
        %v3304 = vunpack.c.h.b16 %v2142
        %v3305 = vunpack.c.l.b16 %v2143
        %v3306 = vunpack.c.h.b16 %v2143
        %v3307 = vunpack.c.l.b16 %v2144
        %v3308 = vunpack.c.h.b16 %v2144
        %v3309 = vunpack.c.l.b16 %v2145
        %v3310 = vunpack.c.h.b16 %v2145
        %v3311 = vunpack.c.l.b16 %v2146
        %v3312 = vunpack.c.h.b16 %v2146
        %v3313 = vunpack.c.l.b16 %v2147
        %v3314 = vunpack.c.h.b16 %v2147
        %v3315 = vunpack.c.l.b16 %v2148
        %v3316 = vunpack.c.h.b16 %v2148
        %v3317 = vunpack.c.l.b16 %v2149
        %v3318 = vunpack.c.h.b16 %v2149
        %v3319 = vunpack.c.l.b16 %v2150
        %v3320 = vunpack.c.h.b16 %v2150
        %v3321 = vpack.c.b16 %v3201, %v3193
        %v3322 = vpack.c.b16 %v3202, %v3194
        %v3323 = vpack.c.b16 %v3203, %v3195
        %v3324 = vpack.c.b16 %v3204, %v3196
        %v3325 = vpack.c.b16 %v3205, %v3197
        %v3326 = vpack.c.b16 %v3206, %v3198
        %v3327 = vpack.c.b16 %v3207, %v3199
        %v3328 = vpack.c.b16 %v3208, %v3200
        %v3329 = vpack.c.b16 %v3217, %v3209
        %v3330 = vpack.c.b16 %v3218, %v3210
        %v3331 = vpack.c.b16 %v3219, %v3211
        %v3332 = vpack.c.b16 %v3220, %v3212
        %v3333 = vpack.c.b16 %v3221, %v3213
        %v3334 = vpack.c.b16 %v3222, %v3214
        %v3335 = vpack.c.b16 %v3223, %v3215
        %v3336 = vpack.c.b16 %v3224, %v3216
        %v3337 = vpack.c.b16 %v3233, %v3225
        %v3338 = vpack.c.b16 %v3234, %v3226
        %v3339 = vpack.c.b16 %v3235, %v3227
        %v3340 = vpack.c.b16 %v3236, %v3228
        %v3341 = vpack.c.b16 %v3237, %v3229
        %v3342 = vpack.c.b16 %v3238, %v3230
        %v3343 = vpack.c.b16 %v3239, %v3231
        %v3344 = vpack.c.b16 %v3240, %v3232
        %v3345 = vpack.c.b16 %v3249, %v3241
        %v3346 = vpack.c.b16 %v3250, %v3242
        %v3347 = vpack.c.b16 %v3251, %v3243
        %v3348 = vpack.c.b16 %v3252, %v3244
        %v3349 = vpack.c.b16 %v3253, %v3245
        %v3350 = vpack.c.b16 %v3254, %v3246
        %v3351 = vpack.c.b16 %v3255, %v3247
        %v3352 = vpack.c.b16 %v3256, %v3248
        %v3353 = vpack.c.b16 %v3265, %v3257
        %v3354 = vpack.c.b16 %v3266, %v3258
        %v3355 = vpack.c.b16 %v3267, %v3259
        %v3356 = vpack.c.b16 %v3268, %v3260
        %v3357 = vpack.c.b16 %v3269, %v3261
        %v3358 = vpack.c.b16 %v3270, %v3262
        %v3359 = vpack.c.b16 %v3271, %v3263
        %v3360 = vpack.c.b16 %v3272, %v3264
        %v3361 = vpack.c.b16 %v3281, %v3273
        %v3362 = vpack.c.b16 %v3282, %v3274
        %v3363 = vpack.c.b16 %v3283, %v3275
        %v3364 = vpack.c.b16 %v3284, %v3276
        %v3365 = vpack.c.b16 %v3285, %v3277
        %v3366 = vpack.c.b16 %v3286, %v3278
        %v3367 = vpack.c.b16 %v3287, %v3279
        %v3368 = vpack.c.b16 %v3288, %v3280
        %v3369 = vpack.c.b16 %v3297, %v3289
        %v3370 = vpack.c.b16 %v3298, %v3290
        %v3371 = vpack.c.b16 %v3299, %v3291
        %v3372 = vpack.c.b16 %v3300, %v3292
        %v3373 = vpack.c.b16 %v3301, %v3293
        %v3374 = vpack.c.b16 %v3302, %v3294
        %v3375 = vpack.c.b16 %v3303, %v3295
        %v3376 = vpack.c.b16 %v3304, %v3296
        %v3377 = vpack.c.b16 %v3313, %v3305
        %v3378 = vpack.c.b16 %v3314, %v3306
        %v3379 = vpack.c.b16 %v3315, %v3307
        %v3380 = vpack.c.b16 %v3316, %v3308
        %v3381 = vpack.c.b16 %v3317, %v3309
        %v3382 = vpack.c.b16 %v3318, %v3310
        %v3383 = vpack.c.b16 %v3319, %v3311
        %v3384 = vpack.c.b16 %v3320, %v3312
        %3449 = vmatpush.bf16.msra.mxu0 %v3377
        %3450 = vmatpush.bf16.msra.mxu0 %v3369
        %3451 = vmatpush.bf16.msra.mxu0 %v3361
        %3452 = vmatpush.bf16.msra.mxu0 %v3353
        %3453 = vmatpush.bf16.msra.mxu0 %v3345
        %3454 = vmatpush.bf16.msra.mxu0 %v3337
        %3455 = vmatpush.bf16.msra.mxu0 %v3329
        %3456 = vmatpush.bf16.msra.mxu0 %v3321
        %3457 = vmatmul.bf16.gmra.mxu0 %v2086
        %v3458 = vpop.f32.mrf.mxu0
        %v3459 = vadd.f32 %v2944, %v3458
        %v3460 = vpop.f32.mrf.mxu0
        %3461 = vdwg.mxu0
        %3462 = vmatpush.bf16.msra.mxu0 %v3378
        %3463 = vmatpush.bf16.msra.mxu0 %v3370
        %3464 = vmatpush.bf16.msra.mxu0 %v3362
        %3465 = vmatpush.bf16.msra.mxu0 %v3354
        %3466 = vmatpush.bf16.msra.mxu0 %v3346
        %3467 = vmatpush.bf16.msra.mxu0 %v3338
        %3468 = vmatpush.bf16.msra.mxu0 %v3330
        %3469 = vmatpush.bf16.msra.mxu0 %v3322
        %3470 = vmatmul.bf16.gmra.mxu0 %v2086
        %v3471 = vpop.f32.mrf.mxu0
        %v3472 = vadd.f32 %v2970, %v3471
        %v3473 = vpop.f32.mrf.mxu0
        %3474 = vdwg.mxu0
        %3475 = vmatpush.bf16.msra.mxu0 %v3379
        %3476 = vmatpush.bf16.msra.mxu0 %v3371
        %3477 = vmatpush.bf16.msra.mxu0 %v3363
        %3478 = vmatpush.bf16.msra.mxu0 %v3355
        %3479 = vmatpush.bf16.msra.mxu0 %v3347
        %3480 = vmatpush.bf16.msra.mxu0 %v3339
        %3481 = vmatpush.bf16.msra.mxu0 %v3331
        %3482 = vmatpush.bf16.msra.mxu0 %v3323
        %3483 = vmatmul.bf16.gmra.mxu0 %v2086
        %v3484 = vpop.f32.mrf.mxu0
        %v3485 = vadd.f32 %v2996, %v3484
        %v3486 = vpop.f32.mrf.mxu0
        %3487 = vdwg.mxu0
        %3488 = vmatpush.bf16.msra.mxu0 %v3380
        %3489 = vmatpush.bf16.msra.mxu0 %v3372
        %3490 = vmatpush.bf16.msra.mxu0 %v3364
        %3491 = vmatpush.bf16.msra.mxu0 %v3356
        %3492 = vmatpush.bf16.msra.mxu0 %v3348
        %3493 = vmatpush.bf16.msra.mxu0 %v3340
        %3494 = vmatpush.bf16.msra.mxu0 %v3332
        %3495 = vmatpush.bf16.msra.mxu0 %v3324
        %3496 = vmatmul.bf16.gmra.mxu0 %v2086
        %v3497 = vpop.f32.mrf.mxu0
        %v3498 = vadd.f32 %v3022, %v3497
        %v3499 = vpop.f32.mrf.mxu0
        %3500 = vdwg.mxu0
        %3501 = vmatpush.bf16.msra.mxu0 %v3381
        %3502 = vmatpush.bf16.msra.mxu0 %v3373
        %3503 = vmatpush.bf16.msra.mxu0 %v3365
        %3504 = vmatpush.bf16.msra.mxu0 %v3357
        %3505 = vmatpush.bf16.msra.mxu0 %v3349
        %3506 = vmatpush.bf16.msra.mxu0 %v3341
        %3507 = vmatpush.bf16.msra.mxu0 %v3333
        %3508 = vmatpush.bf16.msra.mxu0 %v3325
        %3509 = vmatmul.bf16.gmra.mxu0 %v2086
        %v3510 = vpop.f32.mrf.mxu0
        %v3511 = vadd.f32 %v3048, %v3510
        %v3512 = vpop.f32.mrf.mxu0
        %3513 = vdwg.mxu0
        %3514 = vmatpush.bf16.msra.mxu0 %v3382
        %3515 = vmatpush.bf16.msra.mxu0 %v3374
        %3516 = vmatpush.bf16.msra.mxu0 %v3366
        %3517 = vmatpush.bf16.msra.mxu0 %v3358
        %3518 = vmatpush.bf16.msra.mxu0 %v3350
        %3519 = vmatpush.bf16.msra.mxu0 %v3342
        %3520 = vmatpush.bf16.msra.mxu0 %v3334
        %3521 = vmatpush.bf16.msra.mxu0 %v3326
        %3522 = vmatmul.bf16.gmra.mxu0 %v2086
        %v3523 = vpop.f32.mrf.mxu0
        %v3524 = vadd.f32 %v3074, %v3523
        %v3525 = vpop.f32.mrf.mxu0
        %3526 = vdwg.mxu0
        %3527 = vmatpush.bf16.msra.mxu0 %v3383
        %3528 = vmatpush.bf16.msra.mxu0 %v3375
        %3529 = vmatpush.bf16.msra.mxu0 %v3367
        %3530 = vmatpush.bf16.msra.mxu0 %v3359
        %3531 = vmatpush.bf16.msra.mxu0 %v3351
        %3532 = vmatpush.bf16.msra.mxu0 %v3343
        %3533 = vmatpush.bf16.msra.mxu0 %v3335
        %3534 = vmatpush.bf16.msra.mxu0 %v3327
        %3535 = vmatmul.bf16.gmra.mxu0 %v2086
        %v3536 = vpop.f32.mrf.mxu0
        %v3537 = vadd.f32 %v3100, %v3536
        %v3538 = vpop.f32.mrf.mxu0
        %3539 = vdwg.mxu0
        %3540 = vmatpush.bf16.msra.mxu0 %v3384
        %3541 = vmatpush.bf16.msra.mxu0 %v3376
        %3542 = vmatpush.bf16.msra.mxu0 %v3368
        %3543 = vmatpush.bf16.msra.mxu0 %v3360
        %3544 = vmatpush.bf16.msra.mxu0 %v3352
        %3545 = vmatpush.bf16.msra.mxu0 %v3344
        %3546 = vmatpush.bf16.msra.mxu0 %v3336
        %3547 = vmatpush.bf16.msra.mxu0 %v3328
        %3548 = vmatmul.bf16.gmra.mxu0 %v2086
        %v3549 = vpop.f32.mrf.mxu0
        %v3550 = vadd.f32 %v3126, %v3549
        %v3551 = vpop.f32.mrf.mxu0
        %3552 = vdwg.mxu0
        %v3554 = vperm.slane %v2084, 0
        %v3555 = vperm.slane %v2084, 1
        %v3556 = vperm.slane %v2084, 2
        %v3557 = vperm.slane %v2084, 3
        %v3558 = vperm.slane %v2084, 4
        %v3559 = vperm.slane %v2084, 5
        %v3560 = vperm.slane %v2084, 6
        %v3561 = vperm.slane %v2084, 7
        %v3570 = vadd.f32 %v3459, %v3554
        %v3571 = vadd.f32 %v3472, %v3555
        %v3572 = vadd.f32 %v3485, %v3556
        %v3573 = vadd.f32 %v3498, %v3557
        %v3574 = vadd.f32 %v3511, %v3558
        %v3575 = vadd.f32 %v3524, %v3559
        %v3576 = vadd.f32 %v3537, %v3560
        %v3577 = vadd.f32 %v3550, %v3561
        %v3578 = vmax.f32 %v3570, 0.0
        %v3579 = vmax.f32 %v3571, 0.0
        %v3580 = vmax.f32 %v3572, 0.0
        %v3581 = vmax.f32 %v3573, 0.0
        %v3582 = vmax.f32 %v3574, 0.0
        %v3583 = vmax.f32 %v3575, 0.0
        %v3584 = vmax.f32 %v3576, 0.0
        %v3585 = vmax.f32 %v3577, 0.0
        %v3586 = vpack.c.bf16 %v3578, %v3578
        %v3587 = vpack.c.bf16 %v3579, %v3579
        %v3588 = vpack.c.bf16 %v3580, %v3580
        %v3589 = vpack.c.bf16 %v3581, %v3581
        %v3590 = vpack.c.bf16 %v3582, %v3582
        %v3591 = vpack.c.bf16 %v3583, %v3583
        %v3592 = vpack.c.bf16 %v3584, %v3584
        %v3593 = vpack.c.bf16 %v3585, %v3585
        %v3594 = vld [vmem:[#allocation6] sm:$0xf]
        %v3595 = vld [vmem:[#allocation6 + $0x4] sm:$0xf]
        %v3596 = vld [vmem:[#allocation6 + $0x8] sm:$0xf]
        %v3597 = vld [vmem:[#allocation6 + $0xc] sm:$0xf]
        %v3598 = vld [vmem:[#allocation6 + $0x10] sm:$0xf]
        %v3599 = vld [vmem:[#allocation6 + $0x14] sm:$0xf]
        %v3600 = vld [vmem:[#allocation6 + $0x18] sm:$0xf]
        %v3601 = vld [vmem:[#allocation6 + $0x1c] sm:$0xf]
        %v3602 = vld [vmem:[#allocation6 + $0x20] sm:$0xf]
        %v3603 = vld [vmem:[#allocation6 + $0x24] sm:$0xf]
        %v3604 = vld [vmem:[#allocation6 + $0x28] sm:$0xf]
        %v3605 = vld [vmem:[#allocation6 + $0x2c] sm:$0xf]
        %v3606 = vld [vmem:[#allocation6 + $0x30] sm:$0xf]
        %v3607 = vld [vmem:[#allocation6 + $0x34] sm:$0xf]
        %v3608 = vld [vmem:[#allocation6 + $0x38] sm:$0xf]
        %v3609 = vld [vmem:[#allocation6 + $0x3c] sm:$0xf]
        %v3610 = vld [vmem:[#allocation6 + $0x40] sm:$0xf]
        %v3611 = vld [vmem:[#allocation6 + $0x44] sm:$0xf]
        %v3612 = vld [vmem:[#allocation6 + $0x48] sm:$0xf]
        %v3613 = vld [vmem:[#allocation6 + $0x4c] sm:$0xf]
        %v3614 = vld [vmem:[#allocation6 + $0x50] sm:$0xf]
        %v3615 = vld [vmem:[#allocation6 + $0x54] sm:$0xf]
        %v3616 = vld [vmem:[#allocation6 + $0x58] sm:$0xf]
        %v3617 = vld [vmem:[#allocation6 + $0x5c] sm:$0xf]
        %v3618 = vld [vmem:[#allocation6 + $0x60] sm:$0xf]
        %v3619 = vld [vmem:[#allocation6 + $0x64] sm:$0xf]
        %v3620 = vld [vmem:[#allocation6 + $0x68] sm:$0xf]
        %v3621 = vld [vmem:[#allocation6 + $0x6c] sm:$0xf]
        %v3622 = vld [vmem:[#allocation6 + $0x70] sm:$0xf]
        %v3623 = vld [vmem:[#allocation6 + $0x74] sm:$0xf]
        %v3624 = vld [vmem:[#allocation6 + $0x78] sm:$0xf]
        %v3625 = vld [vmem:[#allocation6 + $0x7c] sm:$0xf]
        %v3626 = vld [vmem:[#allocation6 + $0x80] sm:$0xf]
        %v3627 = vld [vmem:[#allocation6 + $0x84] sm:$0xf]
        %v3628 = vld [vmem:[#allocation6 + $0x88] sm:$0xf]
        %v3629 = vld [vmem:[#allocation6 + $0x8c] sm:$0xf]
        %v3630 = vld [vmem:[#allocation6 + $0x90] sm:$0xf]
        %v3631 = vld [vmem:[#allocation6 + $0x94] sm:$0xf]
        %v3632 = vld [vmem:[#allocation6 + $0x98] sm:$0xf]
        %v3633 = vld [vmem:[#allocation6 + $0x9c] sm:$0xf]
        %v3634 = vld [vmem:[#allocation6 + $0xa0] sm:$0xf]
        %v3635 = vld [vmem:[#allocation6 + $0xa4] sm:$0xf]
        %v3636 = vld [vmem:[#allocation6 + $0xa8] sm:$0xf]
        %v3637 = vld [vmem:[#allocation6 + $0xac] sm:$0xf]
        %v3638 = vld [vmem:[#allocation6 + $0xb0] sm:$0xf]
        %v3639 = vld [vmem:[#allocation6 + $0xb4] sm:$0xf]
        %v3640 = vld [vmem:[#allocation6 + $0xb8] sm:$0xf]
        %v3641 = vld [vmem:[#allocation6 + $0xbc] sm:$0xf]
        %v3642 = vld [vmem:[#allocation6 + $0xc0] sm:$0xf]
        %v3643 = vld [vmem:[#allocation6 + $0xc4] sm:$0xf]
        %v3644 = vld [vmem:[#allocation6 + $0xc8] sm:$0xf]
        %v3645 = vld [vmem:[#allocation6 + $0xcc] sm:$0xf]
        %v3646 = vld [vmem:[#allocation6 + $0xd0] sm:$0xf]
        %v3647 = vld [vmem:[#allocation6 + $0xd4] sm:$0xf]
        %v3648 = vld [vmem:[#allocation6 + $0xd8] sm:$0xf]
        %v3649 = vld [vmem:[#allocation6 + $0xdc] sm:$0xf]
        %v3650 = vld [vmem:[#allocation6 + $0xe0] sm:$0xf]
        %v3651 = vld [vmem:[#allocation6 + $0xe4] sm:$0xf]
        %v3652 = vld [vmem:[#allocation6 + $0xe8] sm:$0xf]
        %v3653 = vld [vmem:[#allocation6 + $0xec] sm:$0xf]
        %v3654 = vld [vmem:[#allocation6 + $0xf0] sm:$0xf]
        %v3655 = vld [vmem:[#allocation6 + $0xf4] sm:$0xf]
        %v3656 = vld [vmem:[#allocation6 + $0xf8] sm:$0xf]
        %v3657 = vld [vmem:[#allocation6 + $0xfc] sm:$0xf]
        %v3658 = vld [vmem:[#allocation6 + $0x100] sm:$0xf]
        %v3659 = vld [vmem:[#allocation6 + $0x104] sm:$0xf]
        %v3660 = vld [vmem:[#allocation6 + $0x108] sm:$0xf]
        %v3661 = vld [vmem:[#allocation6 + $0x10c] sm:$0xf]
        %v3662 = vld [vmem:[#allocation6 + $0x110] sm:$0xf]
        %v3663 = vld [vmem:[#allocation6 + $0x114] sm:$0xf]
        %v3664 = vld [vmem:[#allocation6 + $0x118] sm:$0xf]
        %v3665 = vld [vmem:[#allocation6 + $0x11c] sm:$0xf]
        %v3666 = vld [vmem:[#allocation6 + $0x120] sm:$0xf]
        %v3667 = vld [vmem:[#allocation6 + $0x124] sm:$0xf]
        %v3668 = vld [vmem:[#allocation6 + $0x128] sm:$0xf]
        %v3669 = vld [vmem:[#allocation6 + $0x12c] sm:$0xf]
        %v3670 = vld [vmem:[#allocation6 + $0x130] sm:$0xf]
        %v3671 = vld [vmem:[#allocation6 + $0x134] sm:$0xf]
        %v3672 = vld [vmem:[#allocation6 + $0x138] sm:$0xf]
        %v3673 = vld [vmem:[#allocation6 + $0x13c] sm:$0xf]
        %v3674 = vld [vmem:[#allocation6 + $0x140] sm:$0xf]
        %v3675 = vld [vmem:[#allocation6 + $0x144] sm:$0xf]
        %v3676 = vld [vmem:[#allocation6 + $0x148] sm:$0xf]
        %v3677 = vld [vmem:[#allocation6 + $0x14c] sm:$0xf]
        %v3678 = vld [vmem:[#allocation6 + $0x150] sm:$0xf]
        %v3679 = vld [vmem:[#allocation6 + $0x154] sm:$0xf]
        %v3680 = vld [vmem:[#allocation6 + $0x158] sm:$0xf]
        %v3681 = vld [vmem:[#allocation6 + $0x15c] sm:$0xf]
        %v3682 = vld [vmem:[#allocation6 + $0x160] sm:$0xf]
        %v3683 = vld [vmem:[#allocation6 + $0x164] sm:$0xf]
        %v3684 = vld [vmem:[#allocation6 + $0x168] sm:$0xf]
        %v3685 = vld [vmem:[#allocation6 + $0x16c] sm:$0xf]
        %v3686 = vld [vmem:[#allocation6 + $0x170] sm:$0xf]
        %v3687 = vld [vmem:[#allocation6 + $0x174] sm:$0xf]
        %v3688 = vld [vmem:[#allocation6 + $0x178] sm:$0xf]
        %v3689 = vld [vmem:[#allocation6 + $0x17c] sm:$0xf]
        %v3690 = vld [vmem:[#allocation6 + $0x180] sm:$0xf]
        %v3691 = vld [vmem:[#allocation6 + $0x184] sm:$0xf]
        %v3692 = vld [vmem:[#allocation6 + $0x188] sm:$0xf]
        %v3693 = vld [vmem:[#allocation6 + $0x18c] sm:$0xf]
        %v3694 = vld [vmem:[#allocation6 + $0x190] sm:$0xf]
        %v3695 = vld [vmem:[#allocation6 + $0x194] sm:$0xf]
        %v3696 = vld [vmem:[#allocation6 + $0x198] sm:$0xf]
        %v3697 = vld [vmem:[#allocation6 + $0x19c] sm:$0xf]
        %v3698 = vld [vmem:[#allocation6 + $0x1a0] sm:$0xf]
        %v3699 = vld [vmem:[#allocation6 + $0x1a4] sm:$0xf]
        %v3700 = vld [vmem:[#allocation6 + $0x1a8] sm:$0xf]
        %v3701 = vld [vmem:[#allocation6 + $0x1ac] sm:$0xf]
        %v3702 = vld [vmem:[#allocation6 + $0x1b0] sm:$0xf]
        %v3703 = vld [vmem:[#allocation6 + $0x1b4] sm:$0xf]
        %v3704 = vld [vmem:[#allocation6 + $0x1b8] sm:$0xf]
        %v3705 = vld [vmem:[#allocation6 + $0x1bc] sm:$0xf]
        %v3706 = vld [vmem:[#allocation6 + $0x1c0] sm:$0xf]
        %v3707 = vld [vmem:[#allocation6 + $0x1c4] sm:$0xf]
        %v3708 = vld [vmem:[#allocation6 + $0x1c8] sm:$0xf]
        %v3709 = vld [vmem:[#allocation6 + $0x1cc] sm:$0xf]
        %v3710 = vld [vmem:[#allocation6 + $0x1d0] sm:$0xf]
        %v3711 = vld [vmem:[#allocation6 + $0x1d4] sm:$0xf]
        %v3712 = vld [vmem:[#allocation6 + $0x1d8] sm:$0xf]
        %v3713 = vld [vmem:[#allocation6 + $0x1dc] sm:$0xf]
        %v3714 = vld [vmem:[#allocation6 + $0x1e0] sm:$0xf]
        %v3715 = vld [vmem:[#allocation6 + $0x1e4] sm:$0xf]
        %v3716 = vld [vmem:[#allocation6 + $0x1e8] sm:$0xf]
        %v3717 = vld [vmem:[#allocation6 + $0x1ec] sm:$0xf]
        %v3718 = vld [vmem:[#allocation6 + $0x1f0] sm:$0xf]
        %v3719 = vld [vmem:[#allocation6 + $0x1f4] sm:$0xf]
        %v3720 = vld [vmem:[#allocation6 + $0x1f8] sm:$0xf]
        %v3721 = vld [vmem:[#allocation6 + $0x1fc] sm:$0xf]
        %v3723 = vperm.slane %v2085, 0
        %v3853 = vunpack.c.l.b16 %v3594
        %v3854 = vunpack.c.l.b16 %v3595
        %v3855 = vunpack.c.l.b16 %v3596
        %v3856 = vunpack.c.l.b16 %v3597
        %v3857 = vunpack.c.l.b16 %v3598
        %v3858 = vunpack.c.l.b16 %v3599
        %v3859 = vunpack.c.l.b16 %v3600
        %v3860 = vunpack.c.l.b16 %v3601
        %v3861 = vunpack.c.l.b16 %v3602
        %v3862 = vunpack.c.l.b16 %v3603
        %v3863 = vunpack.c.l.b16 %v3604
        %v3864 = vunpack.c.l.b16 %v3605
        %v3865 = vunpack.c.l.b16 %v3606
        %v3866 = vunpack.c.l.b16 %v3607
        %v3867 = vunpack.c.l.b16 %v3608
        %v3868 = vunpack.c.l.b16 %v3609
        %v3869 = vunpack.c.l.b16 %v3610
        %v3870 = vunpack.c.l.b16 %v3611
        %v3871 = vunpack.c.l.b16 %v3612
        %v3872 = vunpack.c.l.b16 %v3613
        %v3873 = vunpack.c.l.b16 %v3614
        %v3874 = vunpack.c.l.b16 %v3615
        %v3875 = vunpack.c.l.b16 %v3616
        %v3876 = vunpack.c.l.b16 %v3617
        %v3877 = vunpack.c.l.b16 %v3618
        %v3878 = vunpack.c.l.b16 %v3619
        %v3879 = vunpack.c.l.b16 %v3620
        %v3880 = vunpack.c.l.b16 %v3621
        %v3881 = vunpack.c.l.b16 %v3622
        %v3882 = vunpack.c.l.b16 %v3623
        %v3883 = vunpack.c.l.b16 %v3624
        %v3884 = vunpack.c.l.b16 %v3625
        %v3885 = vunpack.c.l.b16 %v3626
        %v3886 = vunpack.c.l.b16 %v3627
        %v3887 = vunpack.c.l.b16 %v3628
        %v3888 = vunpack.c.l.b16 %v3629
        %v3889 = vunpack.c.l.b16 %v3630
        %v3890 = vunpack.c.l.b16 %v3631
        %v3891 = vunpack.c.l.b16 %v3632
        %v3892 = vunpack.c.l.b16 %v3633
        %v3893 = vunpack.c.l.b16 %v3634
        %v3894 = vunpack.c.l.b16 %v3635
        %v3895 = vunpack.c.l.b16 %v3636
        %v3896 = vunpack.c.l.b16 %v3637
        %v3897 = vunpack.c.l.b16 %v3638
        %v3898 = vunpack.c.l.b16 %v3639
        %v3899 = vunpack.c.l.b16 %v3640
        %v3900 = vunpack.c.l.b16 %v3641
        %v3901 = vunpack.c.l.b16 %v3642
        %v3902 = vunpack.c.l.b16 %v3643
        %v3903 = vunpack.c.l.b16 %v3644
        %v3904 = vunpack.c.l.b16 %v3645
        %v3905 = vunpack.c.l.b16 %v3646
        %v3906 = vunpack.c.l.b16 %v3647
        %v3907 = vunpack.c.l.b16 %v3648
        %v3908 = vunpack.c.l.b16 %v3649
        %v3909 = vunpack.c.l.b16 %v3650
        %v3910 = vunpack.c.l.b16 %v3651
        %v3911 = vunpack.c.l.b16 %v3652
        %v3912 = vunpack.c.l.b16 %v3653
        %v3913 = vunpack.c.l.b16 %v3654
        %v3914 = vunpack.c.l.b16 %v3655
        %v3915 = vunpack.c.l.b16 %v3656
        %v3916 = vunpack.c.l.b16 %v3657
        %v3917 = vunpack.c.l.b16 %v3658
        %v3918 = vunpack.c.l.b16 %v3659
        %v3919 = vunpack.c.l.b16 %v3660
        %v3920 = vunpack.c.l.b16 %v3661
        %v3921 = vunpack.c.l.b16 %v3662
        %v3922 = vunpack.c.l.b16 %v3663
        %v3923 = vunpack.c.l.b16 %v3664
        %v3924 = vunpack.c.l.b16 %v3665
        %v3925 = vunpack.c.l.b16 %v3666
        %v3926 = vunpack.c.l.b16 %v3667
        %v3927 = vunpack.c.l.b16 %v3668
        %v3928 = vunpack.c.l.b16 %v3669
        %v3929 = vunpack.c.l.b16 %v3670
        %v3930 = vunpack.c.l.b16 %v3671
        %v3931 = vunpack.c.l.b16 %v3672
        %v3932 = vunpack.c.l.b16 %v3673
        %v3933 = vunpack.c.l.b16 %v3674
        %v3934 = vunpack.c.l.b16 %v3675
        %v3935 = vunpack.c.l.b16 %v3676
        %v3936 = vunpack.c.l.b16 %v3677
        %v3937 = vunpack.c.l.b16 %v3678
        %v3938 = vunpack.c.l.b16 %v3679
        %v3939 = vunpack.c.l.b16 %v3680
        %v3940 = vunpack.c.l.b16 %v3681
        %v3941 = vunpack.c.l.b16 %v3682
        %v3942 = vunpack.c.l.b16 %v3683
        %v3943 = vunpack.c.l.b16 %v3684
        %v3944 = vunpack.c.l.b16 %v3685
        %v3945 = vunpack.c.l.b16 %v3686
        %v3946 = vunpack.c.l.b16 %v3687
        %v3947 = vunpack.c.l.b16 %v3688
        %v3948 = vunpack.c.l.b16 %v3689
        %v3949 = vunpack.c.l.b16 %v3690
        %v3950 = vunpack.c.l.b16 %v3691
        %v3951 = vunpack.c.l.b16 %v3692
        %v3952 = vunpack.c.l.b16 %v3693
        %v3953 = vunpack.c.l.b16 %v3694
        %v3954 = vunpack.c.l.b16 %v3695
        %v3955 = vunpack.c.l.b16 %v3696
        %v3956 = vunpack.c.l.b16 %v3697
        %v3957 = vunpack.c.l.b16 %v3698
        %v3958 = vunpack.c.l.b16 %v3699
        %v3959 = vunpack.c.l.b16 %v3700
        %v3960 = vunpack.c.l.b16 %v3701
        %v3961 = vunpack.c.l.b16 %v3702
        %v3962 = vunpack.c.l.b16 %v3703
        %v3963 = vunpack.c.l.b16 %v3704
        %v3964 = vunpack.c.l.b16 %v3705
        %v3965 = vunpack.c.l.b16 %v3706
        %v3966 = vunpack.c.l.b16 %v3707
        %v3967 = vunpack.c.l.b16 %v3708
        %v3968 = vunpack.c.l.b16 %v3709
        %v3969 = vunpack.c.l.b16 %v3710
        %v3970 = vunpack.c.l.b16 %v3711
        %v3971 = vunpack.c.l.b16 %v3712
        %v3972 = vunpack.c.l.b16 %v3713
        %v3973 = vunpack.c.l.b16 %v3714
        %v3974 = vunpack.c.l.b16 %v3715
        %v3975 = vunpack.c.l.b16 %v3716
        %v3976 = vunpack.c.l.b16 %v3717
        %v3977 = vunpack.c.l.b16 %v3718
        %v3978 = vunpack.c.l.b16 %v3719
        %v3979 = vunpack.c.l.b16 %v3720
        %v3980 = vunpack.c.l.b16 %v3721
        %v3981 = vpack.c.b16 %v3854, %v3853
        %v3982 = vpack.c.b16 %v3856, %v3855
        %v3983 = vpack.c.b16 %v3858, %v3857
        %v3984 = vpack.c.b16 %v3860, %v3859
        %v3985 = vpack.c.b16 %v3862, %v3861
        %v3986 = vpack.c.b16 %v3864, %v3863
        %v3987 = vpack.c.b16 %v3866, %v3865
        %v3988 = vpack.c.b16 %v3868, %v3867
        %v3989 = vpack.c.b16 %v3870, %v3869
        %v3990 = vpack.c.b16 %v3872, %v3871
        %v3991 = vpack.c.b16 %v3874, %v3873
        %v3992 = vpack.c.b16 %v3876, %v3875
        %v3993 = vpack.c.b16 %v3878, %v3877
        %v3994 = vpack.c.b16 %v3880, %v3879
        %v3995 = vpack.c.b16 %v3882, %v3881
        %v3996 = vpack.c.b16 %v3884, %v3883
        %v3997 = vpack.c.b16 %v3886, %v3885
        %v3998 = vpack.c.b16 %v3888, %v3887
        %v3999 = vpack.c.b16 %v3890, %v3889
        %v4000 = vpack.c.b16 %v3892, %v3891
        %v4001 = vpack.c.b16 %v3894, %v3893
        %v4002 = vpack.c.b16 %v3896, %v3895
        %v4003 = vpack.c.b16 %v3898, %v3897
        %v4004 = vpack.c.b16 %v3900, %v3899
        %v4005 = vpack.c.b16 %v3902, %v3901
        %v4006 = vpack.c.b16 %v3904, %v3903
        %v4007 = vpack.c.b16 %v3906, %v3905
        %v4008 = vpack.c.b16 %v3908, %v3907
        %v4009 = vpack.c.b16 %v3910, %v3909
        %v4010 = vpack.c.b16 %v3912, %v3911
        %v4011 = vpack.c.b16 %v3914, %v3913
        %v4012 = vpack.c.b16 %v3916, %v3915
        %v4013 = vpack.c.b16 %v3918, %v3917
        %v4014 = vpack.c.b16 %v3920, %v3919
        %v4015 = vpack.c.b16 %v3922, %v3921
        %v4016 = vpack.c.b16 %v3924, %v3923
        %v4017 = vpack.c.b16 %v3926, %v3925
        %v4018 = vpack.c.b16 %v3928, %v3927
        %v4019 = vpack.c.b16 %v3930, %v3929
        %v4020 = vpack.c.b16 %v3932, %v3931
        %v4021 = vpack.c.b16 %v3934, %v3933
        %v4022 = vpack.c.b16 %v3936, %v3935
        %v4023 = vpack.c.b16 %v3938, %v3937
        %v4024 = vpack.c.b16 %v3940, %v3939
        %v4025 = vpack.c.b16 %v3942, %v3941
        %v4026 = vpack.c.b16 %v3944, %v3943
        %v4027 = vpack.c.b16 %v3946, %v3945
        %v4028 = vpack.c.b16 %v3948, %v3947
        %v4029 = vpack.c.b16 %v3950, %v3949
        %v4030 = vpack.c.b16 %v3952, %v3951
        %v4031 = vpack.c.b16 %v3954, %v3953
        %v4032 = vpack.c.b16 %v3956, %v3955
        %v4033 = vpack.c.b16 %v3958, %v3957
        %v4034 = vpack.c.b16 %v3960, %v3959
        %v4035 = vpack.c.b16 %v3962, %v3961
        %v4036 = vpack.c.b16 %v3964, %v3963
        %v4037 = vpack.c.b16 %v3966, %v3965
        %v4038 = vpack.c.b16 %v3968, %v3967
        %v4039 = vpack.c.b16 %v3970, %v3969
        %v4040 = vpack.c.b16 %v3972, %v3971
        %v4041 = vpack.c.b16 %v3974, %v3973
        %v4042 = vpack.c.b16 %v3976, %v3975
        %v4043 = vpack.c.b16 %v3978, %v3977
        %v4044 = vpack.c.b16 %v3980, %v3979
        %4109 = vmatpush.bf16.msra.mxu0 %v3988
        %4110 = vmatpush.bf16.msra.mxu0 %v3987
        %4111 = vmatpush.bf16.msra.mxu0 %v3986
        %4112 = vmatpush.bf16.msra.mxu0 %v3985
        %4113 = vmatpush.bf16.msra.mxu0 %v3984
        %4114 = vmatpush.bf16.msra.mxu0 %v3983
        %4115 = vmatpush.bf16.msra.mxu0 %v3982
        %4116 = vmatpush.bf16.msra.mxu0 %v3981
        %4117 = vmatmul.bf16.gmra.mxu0 %v3586
        %v4118 = vpop.f32.mrf.mxu0
        %v4119 = vadd.f32 %v3723, %v4118
        %v4120 = vpop.f32.mrf.mxu0
        %4121 = vdwg.mxu0
        %4122 = vmatpush.bf16.msra.mxu0 %v3996
        %4123 = vmatpush.bf16.msra.mxu0 %v3995
        %4124 = vmatpush.bf16.msra.mxu0 %v3994
        %4125 = vmatpush.bf16.msra.mxu0 %v3993
        %4126 = vmatpush.bf16.msra.mxu0 %v3992
        %4127 = vmatpush.bf16.msra.mxu0 %v3991
        %4128 = vmatpush.bf16.msra.mxu0 %v3990
        %4129 = vmatpush.bf16.msra.mxu0 %v3989
        %4130 = vmatmul.bf16.gmra.mxu0 %v3587
        %v4131 = vpop.f32.mrf.mxu0
        %v4132 = vadd.f32 %v4119, %v4131
        %v4133 = vpop.f32.mrf.mxu0
        %4134 = vdwg.mxu0
        %4135 = vmatpush.bf16.msra.mxu0 %v4004
        %4136 = vmatpush.bf16.msra.mxu0 %v4003
        %4137 = vmatpush.bf16.msra.mxu0 %v4002
        %4138 = vmatpush.bf16.msra.mxu0 %v4001
        %4139 = vmatpush.bf16.msra.mxu0 %v4000
        %4140 = vmatpush.bf16.msra.mxu0 %v3999
        %4141 = vmatpush.bf16.msra.mxu0 %v3998
        %4142 = vmatpush.bf16.msra.mxu0 %v3997
        %4143 = vmatmul.bf16.gmra.mxu0 %v3588
        %v4144 = vpop.f32.mrf.mxu0
        %v4145 = vadd.f32 %v4132, %v4144
        %v4146 = vpop.f32.mrf.mxu0
        %4147 = vdwg.mxu0
        %4148 = vmatpush.bf16.msra.mxu0 %v4012
        %4149 = vmatpush.bf16.msra.mxu0 %v4011
        %4150 = vmatpush.bf16.msra.mxu0 %v4010
        %4151 = vmatpush.bf16.msra.mxu0 %v4009
        %4152 = vmatpush.bf16.msra.mxu0 %v4008
        %4153 = vmatpush.bf16.msra.mxu0 %v4007
        %4154 = vmatpush.bf16.msra.mxu0 %v4006
        %4155 = vmatpush.bf16.msra.mxu0 %v4005
        %4156 = vmatmul.bf16.gmra.mxu0 %v3589
        %v4157 = vpop.f32.mrf.mxu0
        %v4158 = vadd.f32 %v4145, %v4157
        %v4159 = vpop.f32.mrf.mxu0
        %4160 = vdwg.mxu0
        %4161 = vmatpush.bf16.msra.mxu0 %v4020
        %4162 = vmatpush.bf16.msra.mxu0 %v4019
        %4163 = vmatpush.bf16.msra.mxu0 %v4018
        %4164 = vmatpush.bf16.msra.mxu0 %v4017
        %4165 = vmatpush.bf16.msra.mxu0 %v4016
        %4166 = vmatpush.bf16.msra.mxu0 %v4015
        %4167 = vmatpush.bf16.msra.mxu0 %v4014
        %4168 = vmatpush.bf16.msra.mxu0 %v4013
        %4169 = vmatmul.bf16.gmra.mxu0 %v3590
        %v4170 = vpop.f32.mrf.mxu0
        %v4171 = vadd.f32 %v4158, %v4170
        %v4172 = vpop.f32.mrf.mxu0
        %4173 = vdwg.mxu0
        %4174 = vmatpush.bf16.msra.mxu0 %v4028
        %4175 = vmatpush.bf16.msra.mxu0 %v4027
        %4176 = vmatpush.bf16.msra.mxu0 %v4026
        %4177 = vmatpush.bf16.msra.mxu0 %v4025
        %4178 = vmatpush.bf16.msra.mxu0 %v4024
        %4179 = vmatpush.bf16.msra.mxu0 %v4023
        %4180 = vmatpush.bf16.msra.mxu0 %v4022
        %4181 = vmatpush.bf16.msra.mxu0 %v4021
        %4182 = vmatmul.bf16.gmra.mxu0 %v3591
        %v4183 = vpop.f32.mrf.mxu0
        %v4184 = vadd.f32 %v4171, %v4183
        %v4185 = vpop.f32.mrf.mxu0
        %4186 = vdwg.mxu0
        %4187 = vmatpush.bf16.msra.mxu0 %v4036
        %4188 = vmatpush.bf16.msra.mxu0 %v4035
        %4189 = vmatpush.bf16.msra.mxu0 %v4034
        %4190 = vmatpush.bf16.msra.mxu0 %v4033
        %4191 = vmatpush.bf16.msra.mxu0 %v4032
        %4192 = vmatpush.bf16.msra.mxu0 %v4031
        %4193 = vmatpush.bf16.msra.mxu0 %v4030
        %4194 = vmatpush.bf16.msra.mxu0 %v4029
        %4195 = vmatmul.bf16.gmra.mxu0 %v3592
        %v4196 = vpop.f32.mrf.mxu0
        %v4197 = vadd.f32 %v4184, %v4196
        %v4198 = vpop.f32.mrf.mxu0
        %4199 = vdwg.mxu0
        %4200 = vmatpush.bf16.msra.mxu0 %v4044
        %4201 = vmatpush.bf16.msra.mxu0 %v4043
        %4202 = vmatpush.bf16.msra.mxu0 %v4042
        %4203 = vmatpush.bf16.msra.mxu0 %v4041
        %4204 = vmatpush.bf16.msra.mxu0 %v4040
        %4205 = vmatpush.bf16.msra.mxu0 %v4039
        %4206 = vmatpush.bf16.msra.mxu0 %v4038
        %4207 = vmatpush.bf16.msra.mxu0 %v4037
        %4208 = vmatmul.bf16.gmra.mxu0 %v3593
        %v4209 = vpop.f32.mrf.mxu0
        %v4210 = vadd.f32 %v4197, %v4209
        %v4211 = vpop.f32.mrf.mxu0
        %4212 = vdwg.mxu0
        %4213 = vst [vmem:[%s397] sm:$0xff] %v4210
        %p4214 = scmp.lt.s32.totalorder %s22, 1
        %s4215 = scalar_select %p4214, %s22, 1
        %s4216 = smul.addr %s4215, 8
        %s4217 = scalar_lea.vmem %s9, %s4216
        // Predicated region
        $region69: #{direct_pose_net_forward.1} parent=55 // pred_check
          %p4218 = pneg %p239
        $region70: #{direct_pose_net_forward.1} parent=55 // pred_check_branch
          %4220 = sbr.rel (%p4218) target = $region72
        $region71: #{direct_pose_net_forward.1} parent=55 // pred_region
          _
        $region72: #{direct_pose_net_forward.1} parent=55 // pred_fallthru
          _
      $region56: #{direct_pose_net_forward.1} parent=5 // pred_fallthru
        _
      %p4221 = scmp.le.s32.totalorder 2, %s17
      // Predicated region
      $region73: #{direct_pose_net_forward.1} parent=5 // pred_check
        %p4222 = pneg %p4221
      $region74: #{direct_pose_net_forward.1} parent=5 // pred_check_branch
        %4224 = sbr.rel (%p4222) target = $region76
      $region75: #{direct_pose_net_forward.1} parent=5 // pred_region
        %s4225 = ssub.s32 %s17, 2
        // Predicated region
        $region77: #{direct_pose_net_forward.1} parent=75 // pred_check
          %p4226 = pneg %p245
        $region78: #{direct_pose_net_forward.1} parent=75 // pred_check_branch
          %4228 = sbr.rel (%p4226) target = $region80
        $region79: #{direct_pose_net_forward.1} parent=75 // pred_region
          %p4229 = scmp.lt.s32.totalorder %s23, 1
          %s4230 = scalar_select %p4229, %s23, 1
          %s4231 = smul.addr %s4230, 8
          %s4232 = scalar_lea.vmem %s9, %s4231
        $region80: #{direct_pose_net_forward.1} parent=75 // pred_fallthru
          _
      $region76: #{direct_pose_net_forward.1} parent=5 // pred_fallthru
        _
    $region6: #{direct_pose_net_forward.1} parent=1 // loop_footer
      %s21 = sadd.s32 1, %s17
    $region7: #{direct_pose_net_forward.1} parent=1 // loop_footer_branch
      %16 = sbr.rel target = $region3
    $region8: #{direct_pose_net_forward.1} parent=1 // loop_exit
      _
    %4233 = vsyncpa [#allocation3], 1
    %s4234 = scalar_lea.sflag [#allocation3], 1
    %4235 = vsyncpa %s4234, 1
    %4236 = vsyncpa [#allocation5], 1

</llo_original>
